<compile_context>
chip_gen: v7x
topology: tpu7x:2x2x1
jax: 0.10.0
libtpu: 0.0.40
codegen_flags: <defaults>
</compile_context>

<pallas_src>
import math

import jax
import jax.numpy as jnp
from jax import lax
from jax.experimental import pallas as pl
from jax.experimental.pallas import tpu as pltpu


def _pad_to_128(n):
    return max(128, ((n + 127) // 128) * 128)


def bottleneck_kernel(x_ref, w1_ref, b1_ref, w2_ref, b2_ref,
                      w3_ref, b3_ref, o_ref, pad_ref):
    H, W, Cp = x_ref.shape
    Pp = w1_ref.shape[1]
    Cop = w3_ref.shape[1]

    x2d = x_ref[...].reshape(H * W, Cp)          # f32, kept for the residual add

    # conv1 (1x1, BN1 scale folded into w1) + bias + relu  -- one MXU matmul.
    t = jnp.dot(x2d.astype(jnp.bfloat16), w1_ref[...],
                preferred_element_type=jnp.float32)
    t = jnp.maximum(t + b1_ref[...], 0.0)                       # (HW, Pp) f32

    # Stage conv1 result in the interior of a zero-halo scratch so the nine
    # 3x3 taps become plain static slices (no shifted concat-with-zeros
    # copies).  Zeroing the full scratch every step keeps the halo valid on
    # every TensorCore (megacore-safe) and is one cheap extra store pass.
    pad_ref[...] = jnp.zeros_like(pad_ref)
    pad_ref[pl.ds(1, H), pl.ds(1, W), :] = (
        t.astype(jnp.bfloat16).reshape(H, W, Pp))

    # conv2 (3x3, pad=1): im2col patch (HW, 9*Pp) -> single wide-K MXU matmul
    # against the pre-fused (9*Pp, Pp) weight (BN2 scale folded in).
    taps = [pad_ref[pl.ds(dh, H), pl.ds(dw, W), :].reshape(H * W, Pp)
            for dh in range(3) for dw in range(3)]
    patch = jnp.concatenate(taps, axis=-1)                      # (HW, 9*Pp) bf16
    t = jnp.dot(patch, w2_ref[...], preferred_element_type=jnp.float32)
    t = jnp.maximum(t + b2_ref[...], 0.0)                       # (HW, Pp) f32

    # conv3 (1x1, BN3 scale folded into w3) + bias.
    out = jnp.dot(t.astype(jnp.bfloat16), w3_ref[...],
                  preferred_element_type=jnp.float32)
    out = out + b3_ref[...]                                     # (HW, Cop) f32

    # identity residual + relu (dim_change is None for this block).
    out = jnp.maximum(out + x2d, 0.0)
    o_ref[...] = out.reshape(H, W, Cop)


def prepare_params(p):
    """Fold BN scales into the conv weights (per output channel), cast matmul
    weights to bf16 and zero-pad every channel dim up to a multiple of 128."""
    Cin, P = p["w1"].shape
    Cout = p["w3"].shape[1]
    Cp, Pp, Cop = _pad_to_128(Cin), _pad_to_128(P), _pad_to_128(Cout)

    w1 = (p["w1"] * p["s1"]).astype(jnp.bfloat16)               # (Cin, P)
    w2 = (p["w2"] * p["s2"][None]).astype(jnp.bfloat16)         # (9, P, P)
    w3 = (p["w3"] * p["s3"]).astype(jnp.bfloat16)               # (P, Cout)

    w1p = jnp.zeros((Cp, Pp), jnp.bfloat16).at[:Cin, :P].set(w1)
    w2p = jnp.zeros((9, Pp, Pp), jnp.bfloat16).at[:, :P, :P].set(w2)
    w2p = w2p.reshape(9 * Pp, Pp)                               # fused-K weight
    w3p = jnp.zeros((Pp, Cop), jnp.bfloat16).at[:P, :Cout].set(w3)

    b1p = jnp.zeros((1, Pp), jnp.float32).at[:, :P].set(p["b1"])
    b2p = jnp.zeros((1, Pp), jnp.float32).at[:, :P].set(p["b2"])
    b3p = jnp.zeros((1, Cop), jnp.float32).at[:, :Cout].set(p["b3"])

    return dict(w1=w1p, b1=b1p, w2=w2p, b2=b2p, w3=w3p, b3=b3p,
                Cin=Cin, Cout=Cout, Cp=Cp, Pp=Pp, Cop=Cop)


def bottleneck_forward(x_nchw, prep):
    """x_nchw: (N, Cin, H, W) float32 (PyTorch layout) -> (N, Cout, H, W)."""
    x = jnp.transpose(x_nchw, (0, 2, 3, 1)).astype(jnp.float32)   # NHWC
    N, H, W, Cin = x.shape
    Cp, Pp, Cop = prep["Cp"], prep["Pp"], prep["Cop"]
    assert Cp == Cop, "identity residual requires Cin == Cout (dim_change=None)"

    # lane-dense channel padding (zeros contribute nothing through the convs
    # and keep the padded output channels exactly zero through the residual).
    xp = jnp.zeros((N, H, W, Cp), jnp.float32).at[..., :Cin].set(x)

    out_nhwc = pl.pallas_call(
        bottleneck_kernel,
        out_shape=jax.ShapeDtypeStruct((N, H, W, Cop), jnp.float32),
        grid=(N,),
        in_specs=[
            pl.BlockSpec((pl.Squeezed(), H, W, Cp), lambda n: (n, 0, 0, 0)),
            pl.BlockSpec((Cp, Pp), lambda n: (0, 0)),
            pl.BlockSpec((1, Pp), lambda n: (0, 0)),
            pl.BlockSpec((9 * Pp, Pp), lambda n: (0, 0)),
            pl.BlockSpec((1, Pp), lambda n: (0, 0)),
            pl.BlockSpec((Pp, Cop), lambda n: (0, 0)),
            pl.BlockSpec((1, Cop), lambda n: (0, 0)),
        ],
        out_specs=pl.BlockSpec((pl.Squeezed(), H, W, Cop),
                               lambda n: (n, 0, 0, 0)),
        scratch_shapes=[pltpu.VMEM((H + 2, W + 2, Pp), jnp.bfloat16)],
        compiler_params=pltpu.CompilerParams(
            dimension_semantics=("parallel",)),
    )(xp, prep["w1"], prep["b1"], prep["w2"], prep["b2"],
      prep["w3"], prep["b3"])

    out_nhwc = out_nhwc[..., :prep["Cout"]]
    return jnp.transpose(out_nhwc, (0, 3, 1, 2))


def make_params(key, inplanes, planes, expansion=4, eps=1e-5):
    """Deterministic synthetic weights. Conv weights stored as (Cin, Cout)
    (or (9, Cin, Cout) for 3x3); BN folded to per-channel scale/bias."""
    P, Cout = planes, planes * expansion
    ks = jax.random.split(key, 15)
    w1 = jax.random.normal(ks[0], (inplanes, P), jnp.float32) / math.sqrt(inplanes)
    w2 = jax.random.normal(ks[1], (9, P, P), jnp.float32) / math.sqrt(9 * P)
    w3 = jax.random.normal(ks[2], (P, Cout), jnp.float32) / math.sqrt(P)

    def bn(kg, kb, km, kv, C):
        gamma = 1.0 + 0.1 * jax.random.normal(kg, (C,), jnp.float32)
        beta = 0.1 * jax.random.normal(kb, (C,), jnp.float32)
        mean = 0.1 * jax.random.normal(km, (C,), jnp.float32)
        var = jax.random.uniform(kv, (C,), jnp.float32, minval=0.5, maxval=1.5)
        scale = gamma / jnp.sqrt(var + eps)
        bias = beta - mean * scale
        return scale.reshape(1, C), bias.reshape(1, C)

    s1, b1 = bn(ks[3], ks[4], ks[5], ks[6], P)
    s2, b2 = bn(ks[7], ks[8], ks[9], ks[10], P)
    s3, b3 = bn(ks[11], ks[12], ks[13], ks[14], Cout)
    return dict(w1=w1, w2=w2, w3=w3, s1=s1, b1=b1, s2=s2, b2=b2, s3=s3, b3=b3)


def ref_forward(x_nchw, p):
    """Pure-JAX reference (lax.conv) with matching numerics: BN scales folded
    into the weights, matmul inputs rounded to bf16, f32 accumulation."""
    x = jnp.transpose(x_nchw, (0, 2, 3, 1)).astype(jnp.float32)
    dn = ("NHWC", "HWIO", "NHWC")
    Cin, P = p["w1"].shape
    Cout = p["w3"].shape[1]

    w1 = (p["w1"] * p["s1"]).astype(jnp.bfloat16).reshape(1, 1, Cin, P)
    w2 = (p["w2"] * p["s2"][None]).astype(jnp.bfloat16).reshape(3, 3, P, P)
    w3 = (p["w3"] * p["s3"]).astype(jnp.bfloat16).reshape(1, 1, P, Cout)

    t = lax.conv_general_dilated(x.astype(jnp.bfloat16), w1, (1, 1), "VALID",
                                 dimension_numbers=dn,
                                 preferred_element_type=jnp.float32)
    t = jnp.maximum(t + p["b1"][0], 0.0)
    t = lax.conv_general_dilated(t.astype(jnp.bfloat16), w2, (1, 1),
                                 ((1, 1), (1, 1)), dimension_numbers=dn,
                                 preferred_element_type=jnp.float32)
    t = jnp.maximum(t + p["b2"][0], 0.0)
    t = lax.conv_general_dilated(t.astype(jnp.bfloat16), w3, (1, 1), "VALID",
                                 dimension_numbers=dn,
                                 preferred_element_type=jnp.float32)
    t = t + p["b3"][0]
    out = jnp.maximum(t + x, 0.0)
    return jnp.transpose(out, (0, 3, 1, 2))


if __name__ == "__main__":
    N, H, W = 2, 16, 16
    planes = 4
    inplanes = planes * 4      # identity residual path (dim_change=None), stride=1

    key = jax.random.PRNGKey(0)
    kx, kp = jax.random.split(key)
    x = jax.random.normal(kx, (N, inplanes, H, W), jnp.float32)   # NCHW input
    params = make_params(kp, inplanes, planes)
    prep = prepare_params(params)

    out = bottleneck_forward(x, prep)
    out = jax.block_until_ready(out)

    ref = ref_forward(x, params)
    assert out.shape == (N, planes * 4, H, W), out.shape
    max_err = float(jnp.max(jnp.abs(out - ref)))
    assert jnp.allclose(out, ref, atol=2e-3, rtol=2e-3), max_err

    print("KERNEL_OK")
</pallas_src>

<mosaic_0001>
module attributes {stable_mosaic.version = 11 : i64} {
  func.func @bottleneck_kernel(%arg0: i32, %arg1: memref<1x16x16x128xf32, #tpu.memory_space<vmem>>, %arg2: memref<128x128xbf16, #tpu.memory_space<vmem>>, %arg3: memref<1x128xf32, #tpu.memory_space<vmem>>, %arg4: memref<1152x128xbf16, #tpu.memory_space<vmem>>, %arg5: memref<1x128xf32, #tpu.memory_space<vmem>>, %arg6: memref<128x128xbf16, #tpu.memory_space<vmem>>, %arg7: memref<1x128xf32, #tpu.memory_space<vmem>>, %arg8: memref<1x16x16x128xf32, #tpu.memory_space<vmem>>, %arg9: memref<18x18x128xbf16, #tpu.memory_space<vmem>>) attributes {dimension_semantics = [#tpu.dimension_semantics<parallel>], iteration_bounds = array<i64: 2>, scalar_prefetch = 0 : i64, scratch_operands = 1 : i64, tpu.core_type = #tpu.core_type<tc>, window_params = [{transform_indices = @transform_0, window_bounds = array<i64: 1, 16, 16, 128>}, {pipeline_mode = #tpu.pipeline_mode<synchronous>, transform_indices = @transform_1, window_bounds = array<i64: 128, 128>}, {pipeline_mode = #tpu.pipeline_mode<synchronous>, transform_indices = @transform_2, window_bounds = array<i64: 1, 128>}, {pipeline_mode = #tpu.pipeline_mode<synchronous>, transform_indices = @transform_3, window_bounds = array<i64: 1152, 128>}, {pipeline_mode = #tpu.pipeline_mode<synchronous>, transform_indices = @transform_4, window_bounds = array<i64: 1, 128>}, {pipeline_mode = #tpu.pipeline_mode<synchronous>, transform_indices = @transform_5, window_bounds = array<i64: 128, 128>}, {pipeline_mode = #tpu.pipeline_mode<synchronous>, transform_indices = @transform_6, window_bounds = array<i64: 1, 128>}, {transform_indices = @transform_7, window_bounds = array<i64: 1, 16, 16, 128>}]} {
    %c0 = arith.constant 0 : index
    %c0_0 = arith.constant 0 : index
    %c0_1 = arith.constant 0 : index
    %c0_2 = arith.constant 0 : index
    %0 = vector.load %arg1[%c0, %c0_0, %c0_1, %c0_2] : memref<1x16x16x128xf32, #tpu.memory_space<vmem>>, vector<1x16x16x128xf32>
    %1 = vector.shape_cast %0 : vector<1x16x16x128xf32> to vector<16x16x128xf32>
    %2 = vector.shape_cast %1 : vector<16x16x128xf32> to vector<256x128xf32>
    %3 = arith.truncf %2 : vector<256x128xf32> to vector<256x128xbf16>
    %c0_3 = arith.constant 0 : index
    %c0_4 = arith.constant 0 : index
    %4 = vector.load %arg2[%c0_3, %c0_4] : memref<128x128xbf16, #tpu.memory_space<vmem>>, vector<128x128xbf16>
    %cst = arith.constant dense<0.000000e+00> : vector<256x128xf32>
    %5 = tpu.matmul %3, %4, %cst {dimension_numbers = #tpu.dot_dimension_numbers<[1], [0], [0], [1], [0, 0, 1, 1], [], []>} : vector<256x128xbf16>, vector<128x128xbf16>, vector<256x128xf32> -> vector<256x128xf32>
    %c0_5 = arith.constant 0 : index
    %c0_6 = arith.constant 0 : index
    %6 = vector.load %arg3[%c0_5, %c0_6] : memref<1x128xf32, #tpu.memory_space<vmem>>, vector<1x128xf32>
    %7 = vector.broadcast %6 : vector<1x128xf32> to vector<256x128xf32>
    %8 = arith.addf %5, %7 : vector<256x128xf32>
    %cst_7 = arith.constant 0.000000e+00 : f32
    %9 = vector.broadcast %cst_7 : f32 to vector<256x128xf32>
    %10 = arith.maximumf %8, %9 : vector<256x128xf32>
    %cst_8 = arith.constant 0.000000e+00 : bf16
    %11 = vector.broadcast %cst_8 : bf16 to vector<18x18x128xbf16>
    %c0_9 = arith.constant 0 : index
    %c0_10 = arith.constant 0 : index
    %c0_11 = arith.constant 0 : index
    %12 = vector.load %arg9[%c0_9, %c0_10, %c0_11] : memref<18x18x128xbf16, #tpu.memory_space<vmem>>, vector<18x18x128xbf16>
    tpu.vector_store %arg9[%c0_9, %c0_10, %c0_11], %11 {strides = array<i32>} : memref<18x18x128xbf16, #tpu.memory_space<vmem>>, vector<18x18x128xbf16>,
    %13 = arith.truncf %10 : vector<256x128xf32> to vector<256x128xbf16>
    %14 = vector.shape_cast %13 : vector<256x128xbf16> to vector<16x16x128xbf16>
    %c1 = arith.constant 1 : index
    %c1_12 = arith.constant 1 : index
    %c0_13 = arith.constant 0 : index
    %15 = vector.load %arg9[%c1, %c1_12, %c0_13] : memref<18x18x128xbf16, #tpu.memory_space<vmem>>, vector<16x16x128xbf16>
    tpu.vector_store %arg9[%c1, %c1_12, %c0_13], %14 {strides = array<i32>} : memref<18x18x128xbf16, #tpu.memory_space<vmem>>, vector<16x16x128xbf16>,
    %c0_14 = arith.constant 0 : index
    %c0_15 = arith.constant 0 : index
    %c0_16 = arith.constant 0 : index
    %16 = vector.load %arg9[%c0_14, %c0_15, %c0_16] : memref<18x18x128xbf16, #tpu.memory_space<vmem>>, vector<16x16x128xbf16>
    %17 = vector.shape_cast %16 : vector<16x16x128xbf16> to vector<256x128xbf16>
    %c0_17 = arith.constant 0 : index
    %c1_18 = arith.constant 1 : index
    %c0_19 = arith.constant 0 : index
    %18 = vector.load %arg9[%c0_17, %c1_18, %c0_19] : memref<18x18x128xbf16, #tpu.memory_space<vmem>>, vector<16x16x128xbf16>
    %19 = vector.shape_cast %18 : vector<16x16x128xbf16> to vector<256x128xbf16>
    %c0_20 = arith.constant 0 : index
    %c2 = arith.constant 2 : index
    %c0_21 = arith.constant 0 : index
    %20 = vector.load %arg9[%c0_20, %c2, %c0_21] : memref<18x18x128xbf16, #tpu.memory_space<vmem>>, vector<16x16x128xbf16>
    %21 = vector.shape_cast %20 : vector<16x16x128xbf16> to vector<256x128xbf16>
    %c1_22 = arith.constant 1 : index
    %c0_23 = arith.constant 0 : index
    %c0_24 = arith.constant 0 : index
    %22 = vector.load %arg9[%c1_22, %c0_23, %c0_24] : memref<18x18x128xbf16, #tpu.memory_space<vmem>>, vector<16x16x128xbf16>
    %23 = vector.shape_cast %22 : vector<16x16x128xbf16> to vector<256x128xbf16>
    %c1_25 = arith.constant 1 : index
    %c1_26 = arith.constant 1 : index
    %c0_27 = arith.constant 0 : index
    %24 = vector.load %arg9[%c1_25, %c1_26, %c0_27] : memref<18x18x128xbf16, #tpu.memory_space<vmem>>, vector<16x16x128xbf16>
    %25 = vector.shape_cast %24 : vector<16x16x128xbf16> to vector<256x128xbf16>
    %c1_28 = arith.constant 1 : index
    %c2_29 = arith.constant 2 : index
    %c0_30 = arith.constant 0 : index
    %26 = vector.load %arg9[%c1_28, %c2_29, %c0_30] : memref<18x18x128xbf16, #tpu.memory_space<vmem>>, vector<16x16x128xbf16>
    %27 = vector.shape_cast %26 : vector<16x16x128xbf16> to vector<256x128xbf16>
    %c2_31 = arith.constant 2 : index
    %c0_32 = arith.constant 0 : index
    %c0_33 = arith.constant 0 : index
    %28 = vector.load %arg9[%c2_31, %c0_32, %c0_33] : memref<18x18x128xbf16, #tpu.memory_space<vmem>>, vector<16x16x128xbf16>
    %29 = vector.shape_cast %28 : vector<16x16x128xbf16> to vector<256x128xbf16>
    %c2_34 = arith.constant 2 : index
    %c1_35 = arith.constant 1 : index
    %c0_36 = arith.constant 0 : index
    %30 = vector.load %arg9[%c2_34, %c1_35, %c0_36] : memref<18x18x128xbf16, #tpu.memory_space<vmem>>, vector<16x16x128xbf16>
    %31 = vector.shape_cast %30 : vector<16x16x128xbf16> to vector<256x128xbf16>
    %c2_37 = arith.constant 2 : index
    %c2_38 = arith.constant 2 : index
    %c0_39 = arith.constant 0 : index
    %32 = vector.load %arg9[%c2_37, %c2_38, %c0_39] : memref<18x18x128xbf16, #tpu.memory_space<vmem>>, vector<16x16x128xbf16>
    %33 = vector.shape_cast %32 : vector<16x16x128xbf16> to vector<256x128xbf16>
    %34 = tpu.concatenate %17, %19, %21, %23, %25, %27, %29, %31, %33 in 1 : vector<256x128xbf16>, vector<256x128xbf16>, vector<256x128xbf16>, vector<256x128xbf16>, vector<256x128xbf16>, vector<256x128xbf16>, vector<256x128xbf16>, vector<256x128xbf16>, vector<256x128xbf16> -> vector<256x1152xbf16>
    %c0_40 = arith.constant 0 : index
    %c0_41 = arith.constant 0 : index
    %35 = vector.load %arg4[%c0_40, %c0_41] : memref<1152x128xbf16, #tpu.memory_space<vmem>>, vector<1152x128xbf16>
    %cst_42 = arith.constant dense<0.000000e+00> : vector<256x128xf32>
    %36 = tpu.matmul %34, %35, %cst_42 {dimension_numbers = #tpu.dot_dimension_numbers<[1], [0], [0], [1], [0, 0, 1, 1], [], []>} : vector<256x1152xbf16>, vector<1152x128xbf16>, vector<256x128xf32> -> vector<256x128xf32>
    %c0_43 = arith.constant 0 : index
    %c0_44 = arith.constant 0 : index
    %37 = vector.load %arg5[%c0_43, %c0_44] : memref<1x128xf32, #tpu.memory_space<vmem>>, vector<1x128xf32>
    %38 = vector.broadcast %37 : vector<1x128xf32> to vector<256x128xf32>
    %39 = arith.addf %36, %38 : vector<256x128xf32>
    %cst_45 = arith.constant 0.000000e+00 : f32
    %40 = vector.broadcast %cst_45 : f32 to vector<256x128xf32>
    %41 = arith.maximumf %39, %40 : vector<256x128xf32>
    %42 = arith.truncf %41 : vector<256x128xf32> to vector<256x128xbf16>
    %c0_46 = arith.constant 0 : index
    %c0_47 = arith.constant 0 : index
    %43 = vector.load %arg6[%c0_46, %c0_47] : memref<128x128xbf16, #tpu.memory_space<vmem>>, vector<128x128xbf16>
    %cst_48 = arith.constant dense<0.000000e+00> : vector<256x128xf32>
    %44 = tpu.matmul %42, %43, %cst_48 {dimension_numbers = #tpu.dot_dimension_numbers<[1], [0], [0], [1], [0, 0, 1, 1], [], []>} : vector<256x128xbf16>, vector<128x128xbf16>, vector<256x128xf32> -> vector<256x128xf32>
    %c0_49 = arith.constant 0 : index
    %c0_50 = arith.constant 0 : index
    %45 = vector.load %arg7[%c0_49, %c0_50] : memref<1x128xf32, #tpu.memory_space<vmem>>, vector<1x128xf32>
    %46 = vector.broadcast %45 : vector<1x128xf32> to vector<256x128xf32>
    %47 = arith.addf %44, %46 : vector<256x128xf32>
    %48 = arith.addf %47, %2 : vector<256x128xf32>
    %cst_51 = arith.constant 0.000000e+00 : f32
    %49 = vector.broadcast %cst_51 : f32 to vector<256x128xf32>
    %50 = arith.maximumf %48, %49 : vector<256x128xf32>
    %51 = vector.shape_cast %50 : vector<256x128xf32> to vector<16x16x128xf32>
    %c0_52 = arith.constant 0 : index
    %c0_53 = arith.constant 0 : index
    %c0_54 = arith.constant 0 : index
    %c0_55 = arith.constant 0 : index
    %52 = vector.load %arg8[%c0_52, %c0_53, %c0_54, %c0_55] : memref<1x16x16x128xf32, #tpu.memory_space<vmem>>, vector<1x16x16x128xf32>
    %53 = vector.shape_cast %52 : vector<1x16x16x128xf32> to vector<16x16x128xf32>
    %54 = vector.shape_cast %51 : vector<16x16x128xf32> to vector<1x16x16x128xf32>
    tpu.vector_store %arg8[%c0_52, %c0_53, %c0_54, %c0_55], %54 {strides = array<i32>} : memref<1x16x16x128xf32, #tpu.memory_space<vmem>>, vector<1x16x16x128xf32>,
    return
  }
  func.func @transform_0(%arg0: i32) -> (i32, i32, i32, i32) {
    %c0_i32 = arith.constant 0 : i32
    %c0_i32_0 = arith.constant 0 : i32
    %c0_i32_1 = arith.constant 0 : i32
    %c0_i32_2 = arith.constant 0 : i32
    return %arg0, %c0_i32, %c0_i32_0, %c0_i32_1 : i32, i32, i32, i32
  }
  func.func @transform_1(%arg0: i32) -> (i32, i32) {
    %c0_i32 = arith.constant 0 : i32
    %c0_i32_0 = arith.constant 0 : i32
    %c0_i32_1 = arith.constant 0 : i32
    return %c0_i32, %c0_i32_0 : i32, i32
  }
  func.func @transform_2(%arg0: i32) -> (i32, i32) {
    %c0_i32 = arith.constant 0 : i32
    %c0_i32_0 = arith.constant 0 : i32
    %c0_i32_1 = arith.constant 0 : i32
    return %c0_i32, %c0_i32_0 : i32, i32
  }
  func.func @transform_3(%arg0: i32) -> (i32, i32) {
    %c0_i32 = arith.constant 0 : i32
    %c0_i32_0 = arith.constant 0 : i32
    %c0_i32_1 = arith.constant 0 : i32
    return %c0_i32, %c0_i32_0 : i32, i32
  }
  func.func @transform_4(%arg0: i32) -> (i32, i32) {
    %c0_i32 = arith.constant 0 : i32
    %c0_i32_0 = arith.constant 0 : i32
    %c0_i32_1 = arith.constant 0 : i32
    return %c0_i32, %c0_i32_0 : i32, i32
  }
  func.func @transform_5(%arg0: i32) -> (i32, i32) {
    %c0_i32 = arith.constant 0 : i32
    %c0_i32_0 = arith.constant 0 : i32
    %c0_i32_1 = arith.constant 0 : i32
    return %c0_i32, %c0_i32_0 : i32, i32
  }
  func.func @transform_6(%arg0: i32) -> (i32, i32) {
    %c0_i32 = arith.constant 0 : i32
    %c0_i32_0 = arith.constant 0 : i32
    %c0_i32_1 = arith.constant 0 : i32
    return %c0_i32, %c0_i32_0 : i32, i32
  }
  func.func @transform_7(%arg0: i32) -> (i32, i32, i32, i32) {
    %c0_i32 = arith.constant 0 : i32
    %c0_i32_0 = arith.constant 0 : i32
    %c0_i32_1 = arith.constant 0 : i32
    %c0_i32_2 = arith.constant 0 : i32
    return %arg0, %c0_i32, %c0_i32_0, %c0_i32_1 : i32, i32, i32, i32
  }
}

</mosaic_0001>

<llo_original>
// kernel: tpu_custom_call.1
$region0: #{tpu_custom_call.1}
  #allocation0 [shape = 'u32[]', space=smem, size = 0x4, offset = 0x4, fixed_abs, tag = 'smem constant byte address 0x4 - core index']
  #allocation1 [shape = 'u32[144,128]{1,0:T(1,128)}', space=vmem, size = 0x12000, scoped, tag = 'internal scratch']
  #allocation2 [shape = 'bf16[18,18,128]{2,1,0:T(8,128)(2,1)}', space=vmem, size = 0x1b000, scoped, tag = 'scratch operand']
  %s0 = inlined_call_operand.hbm [shape: f32[2,16,16,128], index: 0, kind: input, shape index: {}]
  %s1 = inlined_call_operand.hbm [shape: bf16[128,128], index: 1, kind: input, shape index: {}]
  %s2 = inlined_call_operand.vmem [shape: f32[1,128], index: 2, kind: input, shape index: {}]
  %s3 = inlined_call_operand.hbm [shape: bf16[1152,128], index: 3, kind: input, shape index: {}]
  %s4 = inlined_call_operand.vmem [shape: f32[1,128], index: 4, kind: input, shape index: {}]
  %s5 = inlined_call_operand.hbm [shape: bf16[128,128], index: 5, kind: input, shape index: {}]
  %s6 = inlined_call_operand.vmem [shape: f32[1,128], index: 6, kind: input, shape index: {}]
  %s7 = inlined_call_operand.hbm [shape: f32[2,16,16,128], index: 7, kind: output, shape index: {}]
  %s8 = sld [smem:[#allocation0]]
  $region77: #{tpu_custom_call.1} parent=0
    _
  %s10 = ssub.s32 1, %s8
  %s11 = scalar_select 0, %s10, %s8
  $region1: #{tpu_custom_call.1} parent=0
    #allocation3 [shape = 'u8[262144]{0}', space=vmem, size = 0x40000, scoped, tag = 'input window, operand 0']
    #allocation4 [shape = 's32[2]{0}', space=sflag, size = 0x8, scoped, tag = 'scoped memory for tpu_custom_call.1']
    #allocation5 [shape = 's32[2]{0}', space=sflag, size = 0x8, scoped, tag = 'scoped memory for tpu_custom_call.1']
    #allocation6 [shape = 'u8[32768]{0}', space=vmem, size = 0x8000, scoped, tag = 'input window, operand 1, single buffered']
    #allocation7 [shape = 's32[1]{0}', space=sflag, size = 0x4, scoped, tag = 'scoped memory for tpu_custom_call.1']
    #allocation8 [shape = 'u8[294912]{0}', space=vmem, size = 0x48000, scoped, tag = 'input window, operand 3, single buffered']
    #allocation9 [shape = 'u8[32768]{0}', space=vmem, size = 0x8000, scoped, tag = 'input window, operand 5, single buffered']
    #allocation10 [shape = 's32[1]{0}', space=sflag, size = 0x4, scoped, tag = 'scoped memory for tpu_custom_call.1']
    #allocation11 [shape = 'u8[262144]{0}', space=vmem, size = 0x40000, scoped, tag = 'output window, operand 0']
    %12 = vsyncpa [#allocation4], 0
    %s13 = scalar_lea.sflag [#allocation4], 1
    %14 = vsyncpa %s13, 0
    %15 = vsyncpa [#allocation7], 0
    %16 = vsyncpa [#allocation10], 0
    %17 = vsyncpa [#allocation5], 0
    %s18 = scalar_lea.sflag [#allocation5], 1
    %19 = vsyncpa %s18, 0
    loop: start=0, step=1, limit=4
    $region2: #{tpu_custom_call.1} parent=1 // loop_pre_header
      _
    $region3: #{tpu_custom_call.1} parent=1 // loop_header
      %s21 = sphi 0, %s25
      %p22 = scmp.ge.s32.totalorder %s21, 4
      %s31 = sphi 0, %s33
      %s34 = sphi 0, %s31
      %s35 = sphi 0, %s34
      %s51 = sphi 0, %s35
      %s55 = sphi 0, %s55
      %s57 = sphi 0, %s55
      %s58 = sphi 0, %s57
      %s72 = sphi 0, %s58
      %s76 = sphi 0, %s76
      %s78 = sphi 0, %s76
      %s79 = sphi 0, %s78
      %s93 = sphi 0, %s79
      %s97 = sphi 0, %s97
      %s99 = sphi 0, %s97
      %s100 = sphi 0, %s99
      %s114 = sphi 0, %s100
      %s118 = sphi 0, %s118
      %s120 = sphi 0, %s118
      %s121 = sphi 0, %s120
      %s135 = sphi 0, %s121
      %s139 = sphi 0, %s139
      %s141 = sphi 0, %s139
      %s142 = sphi 0, %s141
      %s156 = sphi 0, %s142
      %s160 = sphi 0, %s160
      %s162 = sphi 0, %s160
      %s163 = sphi 0, %s162
      %s177 = sphi 0, %s163
      %s183 = sphi 0, %s185
      %s186 = sphi 0, %s183
      %s187 = sphi 0, %s186
      %s203 = sphi 0, %s187
    $region4: #{tpu_custom_call.1} parent=1 // loop_header_branch
      %24 = sbr.rel (%p22) target = $region8
    $region5: #{tpu_custom_call.1} parent=1 // loop_body
      %s26 = ssub.s32 %s21, 1
      %s27 = ssub.s32 %s21, 2
      %s28 = sadd.s32 %s21, 1
      %s29 = ssub.s32 %s21, %s28
      %p30 = scmp.eq.s32.totalorder %s29, 0
      %s32 = sadd.s32 %s31, 1
      %s33 = scalar_select %p30, %s31, %s32
      %p36 = pneg %p30
      %p37 = scmp.eq.s32.totalorder %s21, 1
      %p38 = por %p36, %p37
      %p39 = scmp.ne.s32.totalorder %s31, %s34
      %p40 = scmp.eq.s32.totalorder %s21, 0
      %p41 = por %p39, %p40
      %p42 = scmp.ne.s32.totalorder %s31, %s34
      %p43 = scmp.eq.s32.totalorder %s26, 1
      %p44 = por %p42, %p43
      %p45 = scmp.ne.s32.totalorder %s34, %s35
      %p46 = scmp.eq.s32.totalorder %s26, 0
      %p47 = por %p45, %p46
      %p48 = scmp.ne.s32.totalorder %s34, %s35
      %p49 = scmp.eq.s32.totalorder %s27, 1
      %p50 = por %p48, %p49
      %p52 = scmp.ne.s32.totalorder %s35, %s51
      %p53 = scmp.eq.s32.totalorder %s27, 0
      %p54 = por %p52, %p53
      %s56 = sadd.s32 %s55, 1
      %p59 = scmp.eq.s32.totalorder %s21, 1
      %p60 = scmp.ne.s32.totalorder %s55, %s57
      %p61 = scmp.eq.s32.totalorder %s21, 0
      %p62 = por %p60, %p61
      %p63 = scmp.ne.s32.totalorder %s55, %s57
      %p64 = scmp.eq.s32.totalorder %s26, 1
      %p65 = por %p63, %p64
      %p66 = scmp.ne.s32.totalorder %s57, %s58
      %p67 = scmp.eq.s32.totalorder %s26, 0
      %p68 = por %p66, %p67
      %p69 = scmp.ne.s32.totalorder %s57, %s58
      %p70 = scmp.eq.s32.totalorder %s27, 1
      %p71 = por %p69, %p70
      %p73 = scmp.ne.s32.totalorder %s58, %s72
      %p74 = scmp.eq.s32.totalorder %s27, 0
      %p75 = por %p73, %p74
      %s77 = sadd.s32 %s76, 1
      %p80 = scmp.eq.s32.totalorder %s21, 1
      %p81 = scmp.ne.s32.totalorder %s76, %s78
      %p82 = scmp.eq.s32.totalorder %s21, 0
      %p83 = por %p81, %p82
      %p84 = scmp.ne.s32.totalorder %s76, %s78
      %p85 = scmp.eq.s32.totalorder %s26, 1
      %p86 = por %p84, %p85
      %p87 = scmp.ne.s32.totalorder %s78, %s79
      %p88 = scmp.eq.s32.totalorder %s26, 0
      %p89 = por %p87, %p88
      %p90 = scmp.ne.s32.totalorder %s78, %s79
      %p91 = scmp.eq.s32.totalorder %s27, 1
      %p92 = por %p90, %p91
      %p94 = scmp.ne.s32.totalorder %s79, %s93
      %p95 = scmp.eq.s32.totalorder %s27, 0
      %p96 = por %p94, %p95
      %s98 = sadd.s32 %s97, 1
      %p101 = scmp.eq.s32.totalorder %s21, 1
      %p102 = scmp.ne.s32.totalorder %s97, %s99
      %p103 = scmp.eq.s32.totalorder %s21, 0
      %p104 = por %p102, %p103
      %p105 = scmp.ne.s32.totalorder %s97, %s99
      %p106 = scmp.eq.s32.totalorder %s26, 1
      %p107 = por %p105, %p106
      %p108 = scmp.ne.s32.totalorder %s99, %s100
      %p109 = scmp.eq.s32.totalorder %s26, 0
      %p110 = por %p108, %p109
      %p111 = scmp.ne.s32.totalorder %s99, %s100
      %p112 = scmp.eq.s32.totalorder %s27, 1
      %p113 = por %p111, %p112
      %p115 = scmp.ne.s32.totalorder %s100, %s114
      %p116 = scmp.eq.s32.totalorder %s27, 0
      %p117 = por %p115, %p116
      %s119 = sadd.s32 %s118, 1
      %p122 = scmp.eq.s32.totalorder %s21, 1
      %p123 = scmp.ne.s32.totalorder %s118, %s120
      %p124 = scmp.eq.s32.totalorder %s21, 0
      %p125 = por %p123, %p124
      %p126 = scmp.ne.s32.totalorder %s118, %s120
      %p127 = scmp.eq.s32.totalorder %s26, 1
      %p128 = por %p126, %p127
      %p129 = scmp.ne.s32.totalorder %s120, %s121
      %p130 = scmp.eq.s32.totalorder %s26, 0
      %p131 = por %p129, %p130
      %p132 = scmp.ne.s32.totalorder %s120, %s121
      %p133 = scmp.eq.s32.totalorder %s27, 1
      %p134 = por %p132, %p133
      %p136 = scmp.ne.s32.totalorder %s121, %s135
      %p137 = scmp.eq.s32.totalorder %s27, 0
      %p138 = por %p136, %p137
      %s140 = sadd.s32 %s139, 1
      %p143 = scmp.eq.s32.totalorder %s21, 1
      %p144 = scmp.ne.s32.totalorder %s139, %s141
      %p145 = scmp.eq.s32.totalorder %s21, 0
      %p146 = por %p144, %p145
      %p147 = scmp.ne.s32.totalorder %s139, %s141
      %p148 = scmp.eq.s32.totalorder %s26, 1
      %p149 = por %p147, %p148
      %p150 = scmp.ne.s32.totalorder %s141, %s142
      %p151 = scmp.eq.s32.totalorder %s26, 0
      %p152 = por %p150, %p151
      %p153 = scmp.ne.s32.totalorder %s141, %s142
      %p154 = scmp.eq.s32.totalorder %s27, 1
      %p155 = por %p153, %p154
      %p157 = scmp.ne.s32.totalorder %s142, %s156
      %p158 = scmp.eq.s32.totalorder %s27, 0
      %p159 = por %p157, %p158
      %s161 = sadd.s32 %s160, 1
      %p164 = scmp.eq.s32.totalorder %s21, 1
      %p165 = scmp.ne.s32.totalorder %s160, %s162
      %p166 = scmp.eq.s32.totalorder %s21, 0
      %p167 = por %p165, %p166
      %p168 = scmp.ne.s32.totalorder %s160, %s162
      %p169 = scmp.eq.s32.totalorder %s26, 1
      %p170 = por %p168, %p169
      %p171 = scmp.ne.s32.totalorder %s162, %s163
      %p172 = scmp.eq.s32.totalorder %s26, 0
      %p173 = por %p171, %p172
      %p174 = scmp.ne.s32.totalorder %s162, %s163
      %p175 = scmp.eq.s32.totalorder %s27, 1
      %p176 = por %p174, %p175
      %p178 = scmp.ne.s32.totalorder %s163, %s177
      %p179 = scmp.eq.s32.totalorder %s27, 0
      %p180 = por %p178, %p179
      %s181 = ssub.s32 %s21, %s28
      %p182 = scmp.eq.s32.totalorder %s181, 0
      %s184 = sadd.s32 %s183, 1
      %s185 = scalar_select %p182, %s183, %s184
      %p188 = pneg %p182
      %p189 = scmp.eq.s32.totalorder %s21, 1
      %p190 = por %p188, %p189
      %p191 = scmp.ne.s32.totalorder %s183, %s186
      %p192 = scmp.eq.s32.totalorder %s21, 0
      %p193 = por %p191, %p192
      %p194 = scmp.ne.s32.totalorder %s183, %s186
      %p195 = scmp.eq.s32.totalorder %s26, 1
      %p196 = por %p194, %p195
      %p197 = scmp.ne.s32.totalorder %s186, %s187
      %p198 = scmp.eq.s32.totalorder %s26, 0
      %p199 = por %p197, %p198
      %p200 = scmp.ne.s32.totalorder %s186, %s187
      %p201 = scmp.eq.s32.totalorder %s27, 1
      %p202 = por %p200, %p201
      %p204 = scmp.ne.s32.totalorder %s187, %s203
      %p205 = scmp.eq.s32.totalorder %s27, 0
      %p206 = por %p204, %p205
      %p207 = scmp.le.s32.totalorder 1, %s21
      %p208 = scmp.lt.s32.totalorder %s21, 3
      %p209 = pnand %p207, %p208
      %p210 = pneg %p209
      // Predicated region
      $region9: #{tpu_custom_call.1} parent=5 // pred_check
        _
      $region10: #{tpu_custom_call.1} parent=5 // pred_check_branch
        %212 = sbr.rel (%p209) target = $region12
      $region11: #{tpu_custom_call.1} parent=5 // pred_region
        %s213 = ssub.s32 %s21, 1
        // Predicated region
        $region13: #{tpu_custom_call.1} parent=11 // pred_check
          %p214 = pneg %p68
        $region14: #{tpu_custom_call.1} parent=11 // pred_check_branch
          %216 = sbr.rel (%p214) target = $region16
        $region15: #{tpu_custom_call.1} parent=11 // pred_region
          %s218 = ssub.s32 1024, 1024
          %219 = vsyncadd [#allocation7], %s218
          %s220 = sshll.u32 [#allocation6], 4
          %s221 = int_to_ptr.vmem [resolvable:$true] %s220
          %226 = dma.hbm_to_vmem [thread:$0]  %s1, 1024, %s221, [#allocation7], 64, 64, 4
        $region16: #{tpu_custom_call.1} parent=11 // pred_fallthru
          _
        // Predicated region
        $region17: #{tpu_custom_call.1} parent=11 // pred_check
          %p227 = pneg %p89
        $region18: #{tpu_custom_call.1} parent=11 // pred_check_branch
          %229 = sbr.rel (%p227) target = $region20
        $region19: #{tpu_custom_call.1} parent=11 // pred_region
          _
        $region20: #{tpu_custom_call.1} parent=11 // pred_fallthru
          _
        // Predicated region
        $region21: #{tpu_custom_call.1} parent=11 // pred_check
          %p230 = pneg %p110
        $region22: #{tpu_custom_call.1} parent=11 // pred_check_branch
          %232 = sbr.rel (%p230) target = $region24
        $region23: #{tpu_custom_call.1} parent=11 // pred_region
          %s234 = ssub.s32 9216, 9216
          %235 = vsyncadd [#allocation7], %s234
          %s236 = sshll.u32 [#allocation8], 4
          %s237 = int_to_ptr.vmem [resolvable:$true] %s236
          %242 = dma.hbm_to_vmem [thread:$0]  %s3, 9216, %s237, [#allocation7], 64, 64, 4
        $region24: #{tpu_custom_call.1} parent=11 // pred_fallthru
          _
        // Predicated region
        $region25: #{tpu_custom_call.1} parent=11 // pred_check
          %p243 = pneg %p131
        $region26: #{tpu_custom_call.1} parent=11 // pred_check_branch
          %245 = sbr.rel (%p243) target = $region28
        $region27: #{tpu_custom_call.1} parent=11 // pred_region
          _
        $region28: #{tpu_custom_call.1} parent=11 // pred_fallthru
          _
        // Predicated region
        $region29: #{tpu_custom_call.1} parent=11 // pred_check
          %p246 = pneg %p152
        $region30: #{tpu_custom_call.1} parent=11 // pred_check_branch
          %248 = sbr.rel (%p246) target = $region32
        $region31: #{tpu_custom_call.1} parent=11 // pred_region
          %s250 = ssub.s32 1024, 1024
          %251 = vsyncadd [#allocation10], %s250
          %s252 = sshll.u32 [#allocation9], 4
          %s253 = int_to_ptr.vmem [resolvable:$true] %s252
          %258 = dma.hbm_to_vmem [thread:$0]  %s5, 1024, %s253, [#allocation10], 64, 64, 4
        $region32: #{tpu_custom_call.1} parent=11 // pred_fallthru
          _
        // Predicated region
        $region33: #{tpu_custom_call.1} parent=11 // pred_check
          %p259 = pneg %p173
        $region34: #{tpu_custom_call.1} parent=11 // pred_check_branch
          %261 = sbr.rel (%p259) target = $region36
        $region35: #{tpu_custom_call.1} parent=11 // pred_region
          _
        $region36: #{tpu_custom_call.1} parent=11 // pred_fallthru
          _
      $region12: #{tpu_custom_call.1} parent=5 // pred_fallthru
        _
      %p262 = scmp.lt.s32.totalorder %s21, 2
      // Predicated region
      $region37: #{tpu_custom_call.1} parent=5 // pred_check
        %p263 = pneg %p262
      $region38: #{tpu_custom_call.1} parent=5 // pred_check_branch
        %265 = sbr.rel (%p263) target = $region40
      $region39: #{tpu_custom_call.1} parent=5 // pred_region
        // Predicated region
        $region41: #{tpu_custom_call.1} parent=39 // pred_check
          %p266 = pneg %p41
        $region42: #{tpu_custom_call.1} parent=39 // pred_check_branch
          %268 = sbr.rel (%p266) target = $region44
        $region43: #{tpu_custom_call.1} parent=39 // pred_region
          %s269 = sand.u32 %s31, 1
          %s270 = scalar_lea.sflag [#allocation4], %s269
          %s271 = sand.u32 %s31, 1
          %s272 = smul.addr %s271, 256
          %s273 = scalar_lea.vmem [#allocation3], %s272
          %s275 = ssub.s32 4096, 4096
          %276 = vsyncadd %s270, %s275
          %s277 = smul.addr %s21, 32
          %s278 = smul.addr %s277, 128
          %s279 = scalar_lea.hbm %s0, %s278
          %s280 = sshll.u32 %s273, 4
          %s281 = int_to_ptr.vmem [resolvable:$true] %s280
          %286 = dma.hbm_to_vmem [thread:$0]  %s279, 4096, %s281, %s270, 128, 128, 8
        $region44: #{tpu_custom_call.1} parent=39 // pred_fallthru
          _
      $region40: #{tpu_custom_call.1} parent=5 // pred_fallthru
        _
      %p287 = scmp.le.s32.totalorder 1, %s21
      %p288 = scmp.lt.s32.totalorder %s21, 3
      %p289 = pnand %p287, %p288
      %p290 = pneg %p289
      // Predicated region
      $region45: #{tpu_custom_call.1} parent=5 // pred_check
        _
      $region46: #{tpu_custom_call.1} parent=5 // pred_check_branch
        %292 = sbr.rel (%p289) target = $region48
      $region47: #{tpu_custom_call.1} parent=5 // pred_region
        %s293 = ssub.s32 %s21, 1
        %s294 = sand.u32 %s34, 1
        %s295 = scalar_lea.sflag [#allocation4], %s294
        %s296 = sand.u32 %s34, 1
        %s297 = smul.addr %s296, 256
        %s298 = scalar_lea.vmem [#allocation3], %s297
        // Predicated region
        $region49: #{tpu_custom_call.1} parent=47 // pred_check
          %p299 = pneg %p47
        $region50: #{tpu_custom_call.1} parent=47 // pred_check_branch
          %301 = sbr.rel (%p299) target = $region52
        $region51: #{tpu_custom_call.1} parent=47 // pred_region
          %302 = dma.done %s295, 4096
        $region52: #{tpu_custom_call.1} parent=47 // pred_fallthru
          _
        // Predicated region
        $region53: #{tpu_custom_call.1} parent=47 // pred_check
          %p303 = pneg %p68
        $region54: #{tpu_custom_call.1} parent=47 // pred_check_branch
          %305 = sbr.rel (%p303) target = $region56
        $region55: #{tpu_custom_call.1} parent=47 // pred_region
          %306 = dma.done [#allocation7], 1024
        $region56: #{tpu_custom_call.1} parent=47 // pred_fallthru
          _
        // Predicated region
        $region57: #{tpu_custom_call.1} parent=47 // pred_check
          %p307 = pneg %p110
        $region58: #{tpu_custom_call.1} parent=47 // pred_check_branch
          %309 = sbr.rel (%p307) target = $region60
        $region59: #{tpu_custom_call.1} parent=47 // pred_region
          %310 = dma.done [#allocation7], 9216
        $region60: #{tpu_custom_call.1} parent=47 // pred_fallthru
          _
        // Predicated region
        $region61: #{tpu_custom_call.1} parent=47 // pred_check
          %p311 = pneg %p152
        $region62: #{tpu_custom_call.1} parent=47 // pred_check_branch
          %313 = sbr.rel (%p311) target = $region64
        $region63: #{tpu_custom_call.1} parent=47 // pred_region
          %314 = dma.done [#allocation10], 1024
        $region64: #{tpu_custom_call.1} parent=47 // pred_fallthru
          _
        %s315 = sand.u32 %s34, 1
        %s316 = scalar_lea.sflag [#allocation4], %s315
        %s317 = sand.u32 %s34, 1
        %s318 = smul.addr %s317, 256
        %s319 = scalar_lea.vmem [#allocation3], %s318
        %p320 = pneg %p47
        %p321 = pneg %p44
        %p322 = pneg %p68
        %p323 = pneg %p65
        %p324 = pneg %p89
        %p325 = pneg %p86
        %p326 = pneg %p110
        %p327 = pneg %p107
        %p328 = pneg %p131
        %p329 = pneg %p128
        %p330 = pneg %p152
        %p331 = pneg %p149
        %p332 = pneg %p173
        %p333 = pneg %p170
        %p334 = pneg %p199
        %p335 = pneg %p196
        %s336 = sand.u32 %s186, 1
        %s337 = scalar_lea.sflag [#allocation5], %s336
        %s338 = sand.u32 %s186, 1
        %s339 = smul.addr %s338, 256
        %s340 = scalar_lea.vmem [#allocation11], %s339
        %v342 = vld [vmem:[%s298] sm:$0xff]
        %v343 = vld [vmem:[%s298 + $0x8] sm:$0xff]
        %v344 = vld [vmem:[%s298 + $0x10] sm:$0xff]
        %v345 = vld [vmem:[%s298 + $0x18] sm:$0xff]
        %v346 = vld [vmem:[%s298 + $0x20] sm:$0xff]
        %v347 = vld [vmem:[%s298 + $0x28] sm:$0xff]
        %v348 = vld [vmem:[%s298 + $0x30] sm:$0xff]
        %v349 = vld [vmem:[%s298 + $0x38] sm:$0xff]
        %v350 = vld [vmem:[%s298 + $0x40] sm:$0xff]
        %v351 = vld [vmem:[%s298 + $0x48] sm:$0xff]
        %v352 = vld [vmem:[%s298 + $0x50] sm:$0xff]
        %v353 = vld [vmem:[%s298 + $0x58] sm:$0xff]
        %v354 = vld [vmem:[%s298 + $0x60] sm:$0xff]
        %v355 = vld [vmem:[%s298 + $0x68] sm:$0xff]
        %v356 = vld [vmem:[%s298 + $0x70] sm:$0xff]
        %v357 = vld [vmem:[%s298 + $0x78] sm:$0xff]
        %v358 = vld [vmem:[%s298 + $0x80] sm:$0xff]
        %v359 = vld [vmem:[%s298 + $0x88] sm:$0xff]
        %v360 = vld [vmem:[%s298 + $0x90] sm:$0xff]
        %v361 = vld [vmem:[%s298 + $0x98] sm:$0xff]
        %v362 = vld [vmem:[%s298 + $0xa0] sm:$0xff]
        %v363 = vld [vmem:[%s298 + $0xa8] sm:$0xff]
        %v364 = vld [vmem:[%s298 + $0xb0] sm:$0xff]
        %v365 = vld [vmem:[%s298 + $0xb8] sm:$0xff]
        %v366 = vld [vmem:[%s298 + $0xc0] sm:$0xff]
        %v367 = vld [vmem:[%s298 + $0xc8] sm:$0xff]
        %v368 = vld [vmem:[%s298 + $0xd0] sm:$0xff]
        %v369 = vld [vmem:[%s298 + $0xd8] sm:$0xff]
        %v370 = vld [vmem:[%s298 + $0xe0] sm:$0xff]
        %v371 = vld [vmem:[%s298 + $0xe8] sm:$0xff]
        %v372 = vld [vmem:[%s298 + $0xf0] sm:$0xff]
        %v373 = vld [vmem:[%s298 + $0xf8] sm:$0xff]
        %v374 = vpack.c.bf16 %v343, %v342
        %v375 = vpack.c.bf16 %v345, %v344
        %v376 = vpack.c.bf16 %v347, %v346
        %v377 = vpack.c.bf16 %v349, %v348
        %v378 = vpack.c.bf16 %v351, %v350
        %v379 = vpack.c.bf16 %v353, %v352
        %v380 = vpack.c.bf16 %v355, %v354
        %v381 = vpack.c.bf16 %v357, %v356
        %v382 = vpack.c.bf16 %v359, %v358
        %v383 = vpack.c.bf16 %v361, %v360
        %v384 = vpack.c.bf16 %v363, %v362
        %v385 = vpack.c.bf16 %v365, %v364
        %v386 = vpack.c.bf16 %v367, %v366
        %v387 = vpack.c.bf16 %v369, %v368
        %v388 = vpack.c.bf16 %v371, %v370
        %v389 = vpack.c.bf16 %v373, %v372
        %v390 = vld [vmem:[#allocation6] sm:$0xf]
        %v391 = vld [vmem:[#allocation6 + $0x4] sm:$0xf]
        %v392 = vld [vmem:[#allocation6 + $0x8] sm:$0xf]
        %v393 = vld [vmem:[#allocation6 + $0xc] sm:$0xf]
        %v394 = vld [vmem:[#allocation6 + $0x10] sm:$0xf]
        %v395 = vld [vmem:[#allocation6 + $0x14] sm:$0xf]
        %v396 = vld [vmem:[#allocation6 + $0x18] sm:$0xf]
        %v397 = vld [vmem:[#allocation6 + $0x1c] sm:$0xf]
        %v398 = vld [vmem:[#allocation6 + $0x20] sm:$0xf]
        %v399 = vld [vmem:[#allocation6 + $0x24] sm:$0xf]
        %v400 = vld [vmem:[#allocation6 + $0x28] sm:$0xf]
        %v401 = vld [vmem:[#allocation6 + $0x2c] sm:$0xf]
        %v402 = vld [vmem:[#allocation6 + $0x30] sm:$0xf]
        %v403 = vld [vmem:[#allocation6 + $0x34] sm:$0xf]
        %v404 = vld [vmem:[#allocation6 + $0x38] sm:$0xf]
        %v405 = vld [vmem:[#allocation6 + $0x3c] sm:$0xf]
        %v406 = vld [vmem:[%s2] sm:$0x1]
        %v408 = vlaneseq
        %v409 = vshrl.u32 %v408, 7
        %v410 = vsub.s32 0, %v409
        %v411 = vrot.slane %v406, %v410
        %v429 = vunpack.c.l.b16 %v390
        %v430 = vunpack.c.l.b16 %v391
        %v431 = vunpack.c.l.b16 %v392
        %v432 = vunpack.c.l.b16 %v393
        %v433 = vunpack.c.l.b16 %v394
        %v434 = vunpack.c.l.b16 %v395
        %v435 = vunpack.c.l.b16 %v396
        %v436 = vunpack.c.l.b16 %v397
        %v437 = vunpack.c.l.b16 %v398
        %v438 = vunpack.c.l.b16 %v399
        %v439 = vunpack.c.l.b16 %v400
        %v440 = vunpack.c.l.b16 %v401
        %v441 = vunpack.c.l.b16 %v402
        %v442 = vunpack.c.l.b16 %v403
        %v443 = vunpack.c.l.b16 %v404
        %v444 = vunpack.c.l.b16 %v405
        %v445 = vpack.c.b16 %v430, %v429
        %v446 = vpack.c.b16 %v432, %v431
        %v447 = vpack.c.b16 %v434, %v433
        %v448 = vpack.c.b16 %v436, %v435
        %v449 = vpack.c.b16 %v438, %v437
        %v450 = vpack.c.b16 %v440, %v439
        %v451 = vpack.c.b16 %v442, %v441
        %v452 = vpack.c.b16 %v444, %v443
        %461 = vmatprep.subr.bf16.mxu0 0
        %462 = vmatpush1.bf16.msra.mxu0 %v445
        %463 = vmatprep.subr.bf16.mxu0 0
        %464 = vmatpush1.bf16.msra.mxu0 %v446
        %465 = vmatprep.subr.bf16.mxu0 0
        %466 = vmatpush1.bf16.msra.mxu0 %v447
        %467 = vmatprep.subr.bf16.mxu0 0
        %468 = vmatpush1.bf16.msra.mxu0 %v448
        %469 = vmatprep.subr.bf16.mxu0 0
        %470 = vmatpush1.bf16.msra.mxu0 %v449
        %471 = vmatprep.subr.bf16.mxu0 0
        %472 = vmatpush1.bf16.msra.mxu0 %v450
        %473 = vmatprep.subr.bf16.mxu0 0
        %474 = vmatpush1.bf16.msra.mxu0 %v451
        %475 = vmatprep.subr.bf16.mxu0 0
        %476 = vmatpush1.bf16.msra.mxu0 %v452
        %477 = vmatprep.subr.bf16.mxu0 0
        %478 = vmatpush1.bf16.msra.mxu0 0
        %479 = vmatprep.subr.bf16.mxu0 0
        %480 = vmatpush1.bf16.msra.mxu0 0
        %481 = vmatprep.subr.bf16.mxu0 0
        %482 = vmatpush1.bf16.msra.mxu0 0
        %483 = vmatprep.subr.bf16.mxu0 0
        %484 = vmatpush1.bf16.msra.mxu0 0
        %485 = vmatprep.subr.bf16.mxu0 0
        %486 = vmatpush1.bf16.msra.mxu0 0
        %487 = vmatprep.subr.bf16.mxu0 0
        %488 = vmatpush1.bf16.msra.mxu0 0
        %489 = vmatprep.subr.bf16.mxu0 0
        %490 = vmatpush1.bf16.msra.mxu0 0
        %491 = vmatprep.subr.bf16.mxu0 0
        %492 = vmatpush1.bf16.msra.mxu0 0
        %493 = vmatprep.mubr.bf16.mxu0 0
        %494 = vmatmul.mubr.bf16.gmra.mrb[0].mxu0 %v374
        %v495 = vpop.f32.mrb[0].mxu0
        %v496 = vadd.f32 %v411, %v495
        %v497 = vpop.f32.mrb[0].mxu0
        %v498 = vpop.f32.mrb[0].mxu0
        %v499 = vadd.f32 %v411, %v498
        %v500 = vpop.f32.mrb[0].mxu0
        %501 = vmatprep.mubr.bf16.mxu0 0
        %502 = vmatmul.mubr.bf16.gmra.mrb[0].mxu0 %v375
        %v503 = vpop.f32.mrb[0].mxu0
        %v504 = vadd.f32 %v411, %v503
        %v505 = vpop.f32.mrb[0].mxu0
        %v506 = vpop.f32.mrb[0].mxu0
        %v507 = vadd.f32 %v411, %v506
        %v508 = vpop.f32.mrb[0].mxu0
        %509 = vmatprep.mubr.bf16.mxu0 0
        %510 = vmatmul.mubr.bf16.gmra.mrb[0].mxu0 %v376
        %v511 = vpop.f32.mrb[0].mxu0
        %v512 = vadd.f32 %v411, %v511
        %v513 = vpop.f32.mrb[0].mxu0
        %v514 = vpop.f32.mrb[0].mxu0
        %v515 = vadd.f32 %v411, %v514
        %v516 = vpop.f32.mrb[0].mxu0
        %517 = vmatprep.mubr.bf16.mxu0 0
        %518 = vmatmul.mubr.bf16.gmra.mrb[0].mxu0 %v377
        %v519 = vpop.f32.mrb[0].mxu0
        %v520 = vadd.f32 %v411, %v519
        %v521 = vpop.f32.mrb[0].mxu0
        %v522 = vpop.f32.mrb[0].mxu0
        %v523 = vadd.f32 %v411, %v522
        %v524 = vpop.f32.mrb[0].mxu0
        %525 = vmatprep.mubr.bf16.mxu0 0
        %526 = vmatmul.mubr.bf16.gmra.mrb[0].mxu0 %v378
        %v527 = vpop.f32.mrb[0].mxu0
        %v528 = vadd.f32 %v411, %v527
        %v529 = vpop.f32.mrb[0].mxu0
        %v530 = vpop.f32.mrb[0].mxu0
        %v531 = vadd.f32 %v411, %v530
        %v532 = vpop.f32.mrb[0].mxu0
        %533 = vmatprep.mubr.bf16.mxu0 0
        %534 = vmatmul.mubr.bf16.gmra.mrb[0].mxu0 %v379
        %v535 = vpop.f32.mrb[0].mxu0
        %v536 = vadd.f32 %v411, %v535
        %v537 = vpop.f32.mrb[0].mxu0
        %v538 = vpop.f32.mrb[0].mxu0
        %v539 = vadd.f32 %v411, %v538
        %v540 = vpop.f32.mrb[0].mxu0
        %541 = vmatprep.mubr.bf16.mxu0 0
        %542 = vmatmul.mubr.bf16.gmra.mrb[0].mxu0 %v380
        %v543 = vpop.f32.mrb[0].mxu0
        %v544 = vadd.f32 %v411, %v543
        %v545 = vpop.f32.mrb[0].mxu0
        %v546 = vpop.f32.mrb[0].mxu0
        %v547 = vadd.f32 %v411, %v546
        %v548 = vpop.f32.mrb[0].mxu0
        %549 = vmatprep.mubr.bf16.mxu0 0
        %550 = vmatmul.mubr.bf16.gmra.mrb[0].mxu0 %v381
        %v551 = vpop.f32.mrb[0].mxu0
        %v552 = vadd.f32 %v411, %v551
        %v553 = vpop.f32.mrb[0].mxu0
        %v554 = vpop.f32.mrb[0].mxu0
        %v555 = vadd.f32 %v411, %v554
        %v556 = vpop.f32.mrb[0].mxu0
        %557 = vmatprep.mubr.bf16.mxu0 0
        %558 = vmatmul.mubr.bf16.gmra.mrb[0].mxu0 %v382
        %v559 = vpop.f32.mrb[0].mxu0
        %v560 = vadd.f32 %v411, %v559
        %v561 = vpop.f32.mrb[0].mxu0
        %v562 = vpop.f32.mrb[0].mxu0
        %v563 = vadd.f32 %v411, %v562
        %v564 = vpop.f32.mrb[0].mxu0
        %565 = vmatprep.mubr.bf16.mxu0 0
        %566 = vmatmul.mubr.bf16.gmra.mrb[0].mxu0 %v383
        %v567 = vpop.f32.mrb[0].mxu0
        %v568 = vadd.f32 %v411, %v567
        %v569 = vpop.f32.mrb[0].mxu0
        %v570 = vpop.f32.mrb[0].mxu0
        %v571 = vadd.f32 %v411, %v570
        %v572 = vpop.f32.mrb[0].mxu0
        %573 = vmatprep.mubr.bf16.mxu0 0
        %574 = vmatmul.mubr.bf16.gmra.mrb[0].mxu0 %v384
        %v575 = vpop.f32.mrb[0].mxu0
        %v576 = vadd.f32 %v411, %v575
        %v577 = vpop.f32.mrb[0].mxu0
        %v578 = vpop.f32.mrb[0].mxu0
        %v579 = vadd.f32 %v411, %v578
        %v580 = vpop.f32.mrb[0].mxu0
        %581 = vmatprep.mubr.bf16.mxu0 0
        %582 = vmatmul.mubr.bf16.gmra.mrb[0].mxu0 %v385
        %v583 = vpop.f32.mrb[0].mxu0
        %v584 = vadd.f32 %v411, %v583
        %v585 = vpop.f32.mrb[0].mxu0
        %v586 = vpop.f32.mrb[0].mxu0
        %v587 = vadd.f32 %v411, %v586
        %v588 = vpop.f32.mrb[0].mxu0
        %589 = vmatprep.mubr.bf16.mxu0 0
        %590 = vmatmul.mubr.bf16.gmra.mrb[0].mxu0 %v386
        %v591 = vpop.f32.mrb[0].mxu0
        %v592 = vadd.f32 %v411, %v591
        %v593 = vpop.f32.mrb[0].mxu0
        %v594 = vpop.f32.mrb[0].mxu0
        %v595 = vadd.f32 %v411, %v594
        %v596 = vpop.f32.mrb[0].mxu0
        %597 = vmatprep.mubr.bf16.mxu0 0
        %598 = vmatmul.mubr.bf16.gmra.mrb[0].mxu0 %v387
        %v599 = vpop.f32.mrb[0].mxu0
        %v600 = vadd.f32 %v411, %v599
        %v601 = vpop.f32.mrb[0].mxu0
        %v602 = vpop.f32.mrb[0].mxu0
        %v603 = vadd.f32 %v411, %v602
        %v604 = vpop.f32.mrb[0].mxu0
        %605 = vmatprep.mubr.bf16.mxu0 0
        %606 = vmatmul.mubr.bf16.gmra.mrb[0].mxu0 %v388
        %v607 = vpop.f32.mrb[0].mxu0
        %v608 = vadd.f32 %v411, %v607
        %v609 = vpop.f32.mrb[0].mxu0
        %v610 = vpop.f32.mrb[0].mxu0
        %v611 = vadd.f32 %v411, %v610
        %v612 = vpop.f32.mrb[0].mxu0
        %613 = vmatprep.mubr.bf16.mxu0 0
        %614 = vmatmul.mubr.bf16.gmra.mrb[0].mxu0 %v389
        %v615 = vpop.f32.mrb[0].mxu0
        %v616 = vadd.f32 %v411, %v615
        %v617 = vpop.f32.mrb[0].mxu0
        %v618 = vpop.f32.mrb[0].mxu0
        %v619 = vadd.f32 %v411, %v618
        %v620 = vpop.f32.mrb[0].mxu0
        %621 = vdwg.mxu0
        %v622 = vmax.f32 %v496, 0.0
        %v623 = vmax.f32 %v499, 0.0
        %v624 = vmax.f32 %v504, 0.0
        %v625 = vmax.f32 %v507, 0.0
        %v626 = vmax.f32 %v512, 0.0
        %v627 = vmax.f32 %v515, 0.0
        %v628 = vmax.f32 %v520, 0.0
        %v629 = vmax.f32 %v523, 0.0
        %v630 = vmax.f32 %v528, 0.0
        %v631 = vmax.f32 %v531, 0.0
        %v632 = vmax.f32 %v536, 0.0
        %v633 = vmax.f32 %v539, 0.0
        %v634 = vmax.f32 %v544, 0.0
        %v635 = vmax.f32 %v547, 0.0
        %v636 = vmax.f32 %v552, 0.0
        %v637 = vmax.f32 %v555, 0.0
        %v638 = vmax.f32 %v560, 0.0
        %v639 = vmax.f32 %v563, 0.0
        %v640 = vmax.f32 %v568, 0.0
        %v641 = vmax.f32 %v571, 0.0
        %v642 = vmax.f32 %v576, 0.0
        %v643 = vmax.f32 %v579, 0.0
        %v644 = vmax.f32 %v584, 0.0
        %v645 = vmax.f32 %v587, 0.0
        %v646 = vmax.f32 %v592, 0.0
        %v647 = vmax.f32 %v595, 0.0
        %v648 = vmax.f32 %v600, 0.0
        %v649 = vmax.f32 %v603, 0.0
        %v650 = vmax.f32 %v608, 0.0
        %v651 = vmax.f32 %v611, 0.0
        %v652 = vmax.f32 %v616, 0.0
        %v653 = vmax.f32 %v619, 0.0
        %654 = vst [vmem:[#allocation2] sm:$0xf] 0
        %655 = vst [vmem:[#allocation2 + $0x4] sm:$0xf] 0
        %656 = vst [vmem:[#allocation2 + $0x8] sm:$0x1] 0
        %657 = vst [vmem:[#allocation2 + $0xc] sm:$0xf] 0
        %658 = vst [vmem:[#allocation2 + $0x10] sm:$0xf] 0
        %659 = vst [vmem:[#allocation2 + $0x14] sm:$0x1] 0
        %660 = vst [vmem:[#allocation2 + $0x18] sm:$0xf] 0
        %661 = vst [vmem:[#allocation2 + $0x1c] sm:$0xf] 0
        %662 = vst [vmem:[#allocation2 + $0x20] sm:$0x1] 0
        %663 = vst [vmem:[#allocation2 + $0x24] sm:$0xf] 0
        %664 = vst [vmem:[#allocation2 + $0x28] sm:$0xf] 0
        %665 = vst [vmem:[#allocation2 + $0x2c] sm:$0x1] 0
        %666 = vst [vmem:[#allocation2 + $0x30] sm:$0xf] 0
        %667 = vst [vmem:[#allocation2 + $0x34] sm:$0xf] 0
        %668 = vst [vmem:[#allocation2 + $0x38] sm:$0x1] 0
        %669 = vst [vmem:[#allocation2 + $0x3c] sm:$0xf] 0
        %670 = vst [vmem:[#allocation2 + $0x40] sm:$0xf] 0
        %671 = vst [vmem:[#allocation2 + $0x44] sm:$0x1] 0
        %672 = vst [vmem:[#allocation2 + $0x48] sm:$0xf] 0
        %673 = vst [vmem:[#allocation2 + $0x4c] sm:$0xf] 0
        %674 = vst [vmem:[#allocation2 + $0x50] sm:$0x1] 0
        %675 = vst [vmem:[#allocation2 + $0x54] sm:$0xf] 0
        %676 = vst [vmem:[#allocation2 + $0x58] sm:$0xf] 0
        %677 = vst [vmem:[#allocation2 + $0x5c] sm:$0x1] 0
        %678 = vst [vmem:[#allocation2 + $0x60] sm:$0xf] 0
        %679 = vst [vmem:[#allocation2 + $0x64] sm:$0xf] 0
        %680 = vst [vmem:[#allocation2 + $0x68] sm:$0x1] 0
        %681 = vst [vmem:[#allocation2 + $0x6c] sm:$0xf] 0
        %682 = vst [vmem:[#allocation2 + $0x70] sm:$0xf] 0
        %683 = vst [vmem:[#allocation2 + $0x74] sm:$0x1] 0
        %684 = vst [vmem:[#allocation2 + $0x78] sm:$0xf] 0
        %685 = vst [vmem:[#allocation2 + $0x7c] sm:$0xf] 0
        %686 = vst [vmem:[#allocation2 + $0x80] sm:$0x1] 0
        %687 = vst [vmem:[#allocation2 + $0x84] sm:$0xf] 0
        %688 = vst [vmem:[#allocation2 + $0x88] sm:$0xf] 0
        %689 = vst [vmem:[#allocation2 + $0x8c] sm:$0x1] 0
        %690 = vst [vmem:[#allocation2 + $0x90] sm:$0xf] 0
        %691 = vst [vmem:[#allocation2 + $0x94] sm:$0xf] 0
        %692 = vst [vmem:[#allocation2 + $0x98] sm:$0x1] 0
        %693 = vst [vmem:[#allocation2 + $0x9c] sm:$0xf] 0
        %694 = vst [vmem:[#allocation2 + $0xa0] sm:$0xf] 0
        %695 = vst [vmem:[#allocation2 + $0xa4] sm:$0x1] 0
        %696 = vst [vmem:[#allocation2 + $0xa8] sm:$0xf] 0
        %697 = vst [vmem:[#allocation2 + $0xac] sm:$0xf] 0
        %698 = vst [vmem:[#allocation2 + $0xb0] sm:$0x1] 0
        %699 = vst [vmem:[#allocation2 + $0xb4] sm:$0xf] 0
        %700 = vst [vmem:[#allocation2 + $0xb8] sm:$0xf] 0
        %701 = vst [vmem:[#allocation2 + $0xbc] sm:$0x1] 0
        %702 = vst [vmem:[#allocation2 + $0xc0] sm:$0xf] 0
        %703 = vst [vmem:[#allocation2 + $0xc4] sm:$0xf] 0
        %704 = vst [vmem:[#allocation2 + $0xc8] sm:$0x1] 0
        %705 = vst [vmem:[#allocation2 + $0xcc] sm:$0xf] 0
        %706 = vst [vmem:[#allocation2 + $0xd0] sm:$0xf] 0
        %707 = vst [vmem:[#allocation2 + $0xd4] sm:$0x1] 0
        %v708 = vpack.c.bf16 %v623, %v622
        %v709 = vpack.c.bf16 %v625, %v624
        %v710 = vpack.c.bf16 %v627, %v626
        %v711 = vpack.c.bf16 %v629, %v628
        %v712 = vpack.c.bf16 %v631, %v630
        %v713 = vpack.c.bf16 %v633, %v632
        %v714 = vpack.c.bf16 %v635, %v634
        %v715 = vpack.c.bf16 %v637, %v636
        %v716 = vpack.c.bf16 %v639, %v638
        %v717 = vpack.c.bf16 %v641, %v640
        %v718 = vpack.c.bf16 %v643, %v642
        %v719 = vpack.c.bf16 %v645, %v644
        %v720 = vpack.c.bf16 %v647, %v646
        %v721 = vpack.c.bf16 %v649, %v648
        %v722 = vpack.c.bf16 %v651, %v650
        %v723 = vpack.c.bf16 %v653, %v652
        %v740 = vunpack.c.l.b16 %v708
        %v741 = vunpack.c.h.b16 %v708
        %v742 = vunpack.c.l.b16 %v709
        %v743 = vunpack.c.h.b16 %v709
        %v744 = vunpack.c.l.b16 %v710
        %v745 = vunpack.c.h.b16 %v710
        %v746 = vunpack.c.l.b16 %v711
        %v747 = vunpack.c.h.b16 %v711
        %v748 = vunpack.c.l.b16 %v712
        %v749 = vunpack.c.h.b16 %v712
        %v750 = vunpack.c.l.b16 %v713
        %v751 = vunpack.c.h.b16 %v713
        %v752 = vunpack.c.l.b16 %v714
        %v753 = vunpack.c.h.b16 %v714
        %v754 = vunpack.c.l.b16 %v715
        %v755 = vunpack.c.h.b16 %v715
        %v756 = vunpack.c.l.b16 %v716
        %v757 = vunpack.c.h.b16 %v716
        %v758 = vunpack.c.l.b16 %v717
        %v759 = vunpack.c.h.b16 %v717
        %v760 = vunpack.c.l.b16 %v718
        %v761 = vunpack.c.h.b16 %v718
        %v762 = vunpack.c.l.b16 %v719
        %v763 = vunpack.c.h.b16 %v719
        %v764 = vunpack.c.l.b16 %v720
        %v765 = vunpack.c.h.b16 %v720
        %v766 = vunpack.c.l.b16 %v721
        %v767 = vunpack.c.h.b16 %v721
        %v768 = vunpack.c.l.b16 %v722
        %v769 = vunpack.c.h.b16 %v722
        %v770 = vunpack.c.l.b16 %v723
        %v771 = vunpack.c.h.b16 %v723
        %v772 = vpack.c.b16 %v740, %v740
        %v773 = vpack.c.b16 %v741, %v741
        %v774 = vpack.c.b16 %v742, %v742
        %v775 = vpack.c.b16 %v743, %v743
        %v776 = vpack.c.b16 %v744, %v744
        %v777 = vpack.c.b16 %v745, %v745
        %v778 = vpack.c.b16 %v746, %v746
        %v779 = vpack.c.b16 %v747, %v747
        %v780 = vpack.c.b16 %v748, %v748
        %v781 = vpack.c.b16 %v749, %v749
        %v782 = vpack.c.b16 %v750, %v750
        %v783 = vpack.c.b16 %v751, %v751
        %v784 = vpack.c.b16 %v752, %v752
        %v785 = vpack.c.b16 %v753, %v753
        %v786 = vpack.c.b16 %v754, %v754
        %v787 = vpack.c.b16 %v755, %v755
        %v788 = vpack.c.b16 %v756, %v756
        %v789 = vpack.c.b16 %v757, %v757
        %v790 = vpack.c.b16 %v758, %v758
        %v791 = vpack.c.b16 %v759, %v759
        %v792 = vpack.c.b16 %v760, %v760
        %v793 = vpack.c.b16 %v761, %v761
        %v794 = vpack.c.b16 %v762, %v762
        %v795 = vpack.c.b16 %v763, %v763
        %v796 = vpack.c.b16 %v764, %v764
        %v797 = vpack.c.b16 %v765, %v765
        %v798 = vpack.c.b16 %v766, %v766
        %v799 = vpack.c.b16 %v767, %v767
        %v800 = vpack.c.b16 %v768, %v768
        %v801 = vpack.c.b16 %v769, %v769
        %v802 = vpack.c.b16 %v770, %v770
        %v803 = vpack.c.b16 %v771, %v771
        %vm804 = vsmask.f32 256
        %vm805 = vsmask.f32 4368
        %vm806 = vmor %vm804, %vm805
        %v808 = vshrl.u32 %v772, 16
        %v810 = vrot.slane %v808, 7
        %v811 = vshll.u32 %v772, 16
        %v813 = vor.u32 %v810, %v811
        %v814 = vrot.slane %v810, 4
        %v816 = vshrl.u32 %v773, 16
        %v818 = vrot.slane %v816, 7
        %v819 = vshll.u32 %v773, 16
        %v821 = vor.u32 %v818, %v819
        %v822 = vsel %vm806, %v814, %v821
        %v823 = vrot.slane %v818, 4
        %v825 = vshrl.u32 %v774, 16
        %v827 = vrot.slane %v825, 7
        %v828 = vshll.u32 %v774, 16
        %v830 = vor.u32 %v827, %v828
        %v831 = vrot.slane %v827, 4
        %v833 = vshrl.u32 %v775, 16
        %v835 = vrot.slane %v833, 7
        %v836 = vshll.u32 %v775, 16
        %v838 = vor.u32 %v835, %v836
        %v839 = vsel %vm806, %v831, %v838
        %v840 = vrot.slane %v835, 4
        %v842 = vshrl.u32 %v776, 16
        %v844 = vrot.slane %v842, 7
        %v845 = vshll.u32 %v776, 16
        %v847 = vor.u32 %v844, %v845
        %v848 = vrot.slane %v844, 4
        %v850 = vshrl.u32 %v777, 16
        %v852 = vrot.slane %v850, 7
        %v853 = vshll.u32 %v777, 16
        %v855 = vor.u32 %v852, %v853
        %v856 = vsel %vm806, %v848, %v855
        %v857 = vrot.slane %v852, 4
        %v859 = vshrl.u32 %v778, 16
        %v861 = vrot.slane %v859, 7
        %v862 = vshll.u32 %v778, 16
        %v864 = vor.u32 %v861, %v862
        %v865 = vrot.slane %v861, 4
        %v867 = vshrl.u32 %v779, 16
        %v869 = vrot.slane %v867, 7
        %v870 = vshll.u32 %v779, 16
        %v872 = vor.u32 %v869, %v870
        %v873 = vsel %vm806, %v865, %v872
        %v874 = vrot.slane %v869, 4
        %v876 = vshrl.u32 %v780, 16
        %v878 = vrot.slane %v876, 7
        %v879 = vshll.u32 %v780, 16
        %v881 = vor.u32 %v878, %v879
        %v882 = vrot.slane %v878, 4
        %v884 = vshrl.u32 %v781, 16
        %v886 = vrot.slane %v884, 7
        %v887 = vshll.u32 %v781, 16
        %v889 = vor.u32 %v886, %v887
        %v890 = vsel %vm806, %v882, %v889
        %v891 = vrot.slane %v886, 4
        %v893 = vshrl.u32 %v782, 16
        %v895 = vrot.slane %v893, 7
        %v896 = vshll.u32 %v782, 16
        %v898 = vor.u32 %v895, %v896
        %v899 = vrot.slane %v895, 4
        %v901 = vshrl.u32 %v783, 16
        %v903 = vrot.slane %v901, 7
        %v904 = vshll.u32 %v783, 16
        %v906 = vor.u32 %v903, %v904
        %v907 = vsel %vm806, %v899, %v906
        %v908 = vrot.slane %v903, 4
        %v910 = vshrl.u32 %v784, 16
        %v912 = vrot.slane %v910, 7
        %v913 = vshll.u32 %v784, 16
        %v915 = vor.u32 %v912, %v913
        %v916 = vrot.slane %v912, 4
        %v918 = vshrl.u32 %v785, 16
        %v920 = vrot.slane %v918, 7
        %v921 = vshll.u32 %v785, 16
        %v923 = vor.u32 %v920, %v921
        %v924 = vsel %vm806, %v916, %v923
        %v925 = vrot.slane %v920, 4
        %v927 = vshrl.u32 %v786, 16
        %v929 = vrot.slane %v927, 7
        %v930 = vshll.u32 %v786, 16
        %v932 = vor.u32 %v929, %v930
        %v933 = vrot.slane %v929, 4
        %v935 = vshrl.u32 %v787, 16
        %v937 = vrot.slane %v935, 7
        %v938 = vshll.u32 %v787, 16
        %v940 = vor.u32 %v937, %v938
        %v941 = vsel %vm806, %v933, %v940
        %v942 = vrot.slane %v937, 4
        %v944 = vshrl.u32 %v788, 16
        %v946 = vrot.slane %v944, 7
        %v947 = vshll.u32 %v788, 16
        %v949 = vor.u32 %v946, %v947
        %v950 = vrot.slane %v946, 4
        %v952 = vshrl.u32 %v789, 16
        %v954 = vrot.slane %v952, 7
        %v955 = vshll.u32 %v789, 16
        %v957 = vor.u32 %v954, %v955
        %v958 = vsel %vm806, %v950, %v957
        %v959 = vrot.slane %v954, 4
        %v961 = vshrl.u32 %v790, 16
        %v963 = vrot.slane %v961, 7
        %v964 = vshll.u32 %v790, 16
        %v966 = vor.u32 %v963, %v964
        %v967 = vrot.slane %v963, 4
        %v969 = vshrl.u32 %v791, 16
        %v971 = vrot.slane %v969, 7
        %v972 = vshll.u32 %v791, 16
        %v974 = vor.u32 %v971, %v972
        %v975 = vsel %vm806, %v967, %v974
        %v976 = vrot.slane %v971, 4
        %v978 = vshrl.u32 %v792, 16
        %v980 = vrot.slane %v978, 7
        %v981 = vshll.u32 %v792, 16
        %v983 = vor.u32 %v980, %v981
        %v984 = vrot.slane %v980, 4
        %v986 = vshrl.u32 %v793, 16
        %v988 = vrot.slane %v986, 7
        %v989 = vshll.u32 %v793, 16
        %v991 = vor.u32 %v988, %v989
        %v992 = vsel %vm806, %v984, %v991
        %v993 = vrot.slane %v988, 4
        %v995 = vshrl.u32 %v794, 16
        %v997 = vrot.slane %v995, 7
        %v998 = vshll.u32 %v794, 16
        %v1000 = vor.u32 %v997, %v998
        %v1001 = vrot.slane %v997, 4
        %v1003 = vshrl.u32 %v795, 16
        %v1005 = vrot.slane %v1003, 7
        %v1006 = vshll.u32 %v795, 16
        %v1008 = vor.u32 %v1005, %v1006
        %v1009 = vsel %vm806, %v1001, %v1008
        %v1010 = vrot.slane %v1005, 4
        %v1012 = vshrl.u32 %v796, 16
        %v1014 = vrot.slane %v1012, 7
        %v1015 = vshll.u32 %v796, 16
        %v1017 = vor.u32 %v1014, %v1015
        %v1018 = vrot.slane %v1014, 4
        %v1020 = vshrl.u32 %v797, 16
        %v1022 = vrot.slane %v1020, 7
        %v1023 = vshll.u32 %v797, 16
        %v1025 = vor.u32 %v1022, %v1023
        %v1026 = vsel %vm806, %v1018, %v1025
        %v1027 = vrot.slane %v1022, 4
        %v1029 = vshrl.u32 %v798, 16
        %v1031 = vrot.slane %v1029, 7
        %v1032 = vshll.u32 %v798, 16
        %v1034 = vor.u32 %v1031, %v1032
        %v1035 = vrot.slane %v1031, 4
        %v1037 = vshrl.u32 %v799, 16
        %v1039 = vrot.slane %v1037, 7
        %v1040 = vshll.u32 %v799, 16
        %v1042 = vor.u32 %v1039, %v1040
        %v1043 = vsel %vm806, %v1035, %v1042
        %v1044 = vrot.slane %v1039, 4
        %v1046 = vshrl.u32 %v800, 16
        %v1048 = vrot.slane %v1046, 7
        %v1049 = vshll.u32 %v800, 16
        %v1051 = vor.u32 %v1048, %v1049
        %v1052 = vrot.slane %v1048, 4
        %v1054 = vshrl.u32 %v801, 16
        %v1056 = vrot.slane %v1054, 7
        %v1057 = vshll.u32 %v801, 16
        %v1059 = vor.u32 %v1056, %v1057
        %v1060 = vsel %vm806, %v1052, %v1059
        %v1061 = vrot.slane %v1056, 4
        %v1063 = vshrl.u32 %v802, 16
        %v1065 = vrot.slane %v1063, 7
        %v1066 = vshll.u32 %v802, 16
        %v1068 = vor.u32 %v1065, %v1066
        %v1069 = vrot.slane %v1065, 4
        %v1071 = vshrl.u32 %v803, 16
        %v1073 = vrot.slane %v1071, 7
        %v1074 = vshll.u32 %v803, 16
        %v1076 = vor.u32 %v1073, %v1074
        %v1077 = vsel %vm806, %v1069, %v1076
        %v1078 = vrot.slane %v1073, 4
        %s1127 = scalar_lea.vmem [#allocation2], 12
        %vm1128 = vcmask 1043456
        %vm1129 = vsmask.f32 7938
        %vm1130 = vmand %vm1128, %vm1129
        %v1131 = vld [vmem:[%s1127] sm:$0xf]
        %v1132 = vsel %vm1130, %v813, %v1131
        %1133 = vst [vmem:[%s1127] sm:$0xf] %v1132
        %1134 = vst [vmem:[%s1127 + $0x4] sm:$0xf] %v822
        %vm1135 = vcmask 1040384
        %vm1136 = vmand %vm1135, %vm804
        %v1137 = vld [vmem:[%s1127 + $0x8] sm:$0x1]
        %v1138 = vsel %vm1136, %v823, %v1137
        %1139 = vst [vmem:[%s1127 + $0x8] sm:$0x1] %v1138
        %v1140 = vld [vmem:[%s1127 + $0xc] sm:$0xf]
        %v1141 = vsel %vm1130, %v830, %v1140
        %1142 = vst [vmem:[%s1127 + $0xc] sm:$0xf] %v1141
        %1143 = vst [vmem:[%s1127 + $0x10] sm:$0xf] %v839
        %v1144 = vld [vmem:[%s1127 + $0x14] sm:$0x1]
        %v1145 = vsel %vm1136, %v840, %v1144
        %1146 = vst [vmem:[%s1127 + $0x14] sm:$0x1] %v1145
        %v1147 = vld [vmem:[%s1127 + $0x18] sm:$0xf]
        %v1148 = vsel %vm1130, %v847, %v1147
        %1149 = vst [vmem:[%s1127 + $0x18] sm:$0xf] %v1148
        %1150 = vst [vmem:[%s1127 + $0x1c] sm:$0xf] %v856
        %v1151 = vld [vmem:[%s1127 + $0x20] sm:$0x1]
        %v1152 = vsel %vm1136, %v857, %v1151
        %1153 = vst [vmem:[%s1127 + $0x20] sm:$0x1] %v1152
        %v1154 = vld [vmem:[%s1127 + $0x24] sm:$0xf]
        %v1155 = vsel %vm1130, %v864, %v1154
        %1156 = vst [vmem:[%s1127 + $0x24] sm:$0xf] %v1155
        %1157 = vst [vmem:[%s1127 + $0x28] sm:$0xf] %v873
        %v1158 = vld [vmem:[%s1127 + $0x2c] sm:$0x1]
        %v1159 = vsel %vm1136, %v874, %v1158
        %1160 = vst [vmem:[%s1127 + $0x2c] sm:$0x1] %v1159
        %v1161 = vld [vmem:[%s1127 + $0x30] sm:$0xf]
        %v1162 = vsel %vm1130, %v881, %v1161
        %1163 = vst [vmem:[%s1127 + $0x30] sm:$0xf] %v1162
        %1164 = vst [vmem:[%s1127 + $0x34] sm:$0xf] %v890
        %v1165 = vld [vmem:[%s1127 + $0x38] sm:$0x1]
        %v1166 = vsel %vm1136, %v891, %v1165
        %1167 = vst [vmem:[%s1127 + $0x38] sm:$0x1] %v1166
        %v1168 = vld [vmem:[%s1127 + $0x3c] sm:$0xf]
        %v1169 = vsel %vm1130, %v898, %v1168
        %1170 = vst [vmem:[%s1127 + $0x3c] sm:$0xf] %v1169
        %1171 = vst [vmem:[%s1127 + $0x40] sm:$0xf] %v907
        %v1172 = vld [vmem:[%s1127 + $0x44] sm:$0x1]
        %v1173 = vsel %vm1136, %v908, %v1172
        %1174 = vst [vmem:[%s1127 + $0x44] sm:$0x1] %v1173
        %v1175 = vld [vmem:[%s1127 + $0x48] sm:$0xf]
        %v1176 = vsel %vm1130, %v915, %v1175
        %1177 = vst [vmem:[%s1127 + $0x48] sm:$0xf] %v1176
        %1178 = vst [vmem:[%s1127 + $0x4c] sm:$0xf] %v924
        %v1179 = vld [vmem:[%s1127 + $0x50] sm:$0x1]
        %v1180 = vsel %vm1136, %v925, %v1179
        %1181 = vst [vmem:[%s1127 + $0x50] sm:$0x1] %v1180
        %v1182 = vld [vmem:[%s1127 + $0x54] sm:$0xf]
        %v1183 = vsel %vm1130, %v932, %v1182
        %1184 = vst [vmem:[%s1127 + $0x54] sm:$0xf] %v1183
        %1185 = vst [vmem:[%s1127 + $0x58] sm:$0xf] %v941
        %v1186 = vld [vmem:[%s1127 + $0x5c] sm:$0x1]
        %v1187 = vsel %vm1136, %v942, %v1186
        %1188 = vst [vmem:[%s1127 + $0x5c] sm:$0x1] %v1187
        %v1189 = vld [vmem:[%s1127 + $0x60] sm:$0xf]
        %v1190 = vsel %vm1130, %v949, %v1189
        %1191 = vst [vmem:[%s1127 + $0x60] sm:$0xf] %v1190
        %1192 = vst [vmem:[%s1127 + $0x64] sm:$0xf] %v958
        %v1193 = vld [vmem:[%s1127 + $0x68] sm:$0x1]
        %v1194 = vsel %vm1136, %v959, %v1193
        %1195 = vst [vmem:[%s1127 + $0x68] sm:$0x1] %v1194
        %v1196 = vld [vmem:[%s1127 + $0x6c] sm:$0xf]
        %v1197 = vsel %vm1130, %v966, %v1196
        %1198 = vst [vmem:[%s1127 + $0x6c] sm:$0xf] %v1197
        %1199 = vst [vmem:[%s1127 + $0x70] sm:$0xf] %v975
        %v1200 = vld [vmem:[%s1127 + $0x74] sm:$0x1]
        %v1201 = vsel %vm1136, %v976, %v1200
        %1202 = vst [vmem:[%s1127 + $0x74] sm:$0x1] %v1201
        %v1203 = vld [vmem:[%s1127 + $0x78] sm:$0xf]
        %v1204 = vsel %vm1130, %v983, %v1203
        %1205 = vst [vmem:[%s1127 + $0x78] sm:$0xf] %v1204
        %1206 = vst [vmem:[%s1127 + $0x7c] sm:$0xf] %v992
        %v1207 = vld [vmem:[%s1127 + $0x80] sm:$0x1]
        %v1208 = vsel %vm1136, %v993, %v1207
        %1209 = vst [vmem:[%s1127 + $0x80] sm:$0x1] %v1208
        %v1210 = vld [vmem:[%s1127 + $0x84] sm:$0xf]
        %v1211 = vsel %vm1130, %v1000, %v1210
        %1212 = vst [vmem:[%s1127 + $0x84] sm:$0xf] %v1211
        %1213 = vst [vmem:[%s1127 + $0x88] sm:$0xf] %v1009
        %v1214 = vld [vmem:[%s1127 + $0x8c] sm:$0x1]
        %v1215 = vsel %vm1136, %v1010, %v1214
        %1216 = vst [vmem:[%s1127 + $0x8c] sm:$0x1] %v1215
        %v1217 = vld [vmem:[%s1127 + $0x90] sm:$0xf]
        %v1218 = vsel %vm1130, %v1017, %v1217
        %1219 = vst [vmem:[%s1127 + $0x90] sm:$0xf] %v1218
        %1220 = vst [vmem:[%s1127 + $0x94] sm:$0xf] %v1026
        %v1221 = vld [vmem:[%s1127 + $0x98] sm:$0x1]
        %v1222 = vsel %vm1136, %v1027, %v1221
        %1223 = vst [vmem:[%s1127 + $0x98] sm:$0x1] %v1222
        %v1224 = vld [vmem:[%s1127 + $0x9c] sm:$0xf]
        %v1225 = vsel %vm1130, %v1034, %v1224
        %1226 = vst [vmem:[%s1127 + $0x9c] sm:$0xf] %v1225
        %1227 = vst [vmem:[%s1127 + $0xa0] sm:$0xf] %v1043
        %v1228 = vld [vmem:[%s1127 + $0xa4] sm:$0x1]
        %v1229 = vsel %vm1136, %v1044, %v1228
        %1230 = vst [vmem:[%s1127 + $0xa4] sm:$0x1] %v1229
        %v1231 = vld [vmem:[%s1127 + $0xa8] sm:$0xf]
        %v1232 = vsel %vm1130, %v1051, %v1231
        %1233 = vst [vmem:[%s1127 + $0xa8] sm:$0xf] %v1232
        %1234 = vst [vmem:[%s1127 + $0xac] sm:$0xf] %v1060
        %v1235 = vld [vmem:[%s1127 + $0xb0] sm:$0x1]
        %v1236 = vsel %vm1136, %v1061, %v1235
        %1237 = vst [vmem:[%s1127 + $0xb0] sm:$0x1] %v1236
        %v1238 = vld [vmem:[%s1127 + $0xb4] sm:$0xf]
        %v1239 = vsel %vm1130, %v1068, %v1238
        %1240 = vst [vmem:[%s1127 + $0xb4] sm:$0xf] %v1239
        %1241 = vst [vmem:[%s1127 + $0xb8] sm:$0xf] %v1077
        %v1242 = vld [vmem:[%s1127 + $0xbc] sm:$0x1]
        %v1243 = vsel %vm1136, %v1078, %v1242
        %1244 = vst [vmem:[%s1127 + $0xbc] sm:$0x1] %v1243
        %v1245 = vld [vmem:[#allocation2] sm:$0xf]
        %v1246 = vld [vmem:[#allocation2 + $0x4] sm:$0xf]
        %v1247 = vld [vmem:[#allocation2 + $0xc] sm:$0xf]
        %v1248 = vld [vmem:[#allocation2 + $0x10] sm:$0xf]
        %v1249 = vld [vmem:[#allocation2 + $0x18] sm:$0xf]
        %v1250 = vld [vmem:[#allocation2 + $0x1c] sm:$0xf]
        %v1251 = vld [vmem:[#allocation2 + $0x24] sm:$0xf]
        %v1252 = vld [vmem:[#allocation2 + $0x28] sm:$0xf]
        %v1253 = vld [vmem:[#allocation2 + $0x30] sm:$0xf]
        %v1254 = vld [vmem:[#allocation2 + $0x34] sm:$0xf]
        %v1255 = vld [vmem:[#allocation2 + $0x3c] sm:$0xf]
        %v1256 = vld [vmem:[#allocation2 + $0x40] sm:$0xf]
        %v1257 = vld [vmem:[#allocation2 + $0x48] sm:$0xf]
        %v1258 = vld [vmem:[#allocation2 + $0x4c] sm:$0xf]
        %v1259 = vld [vmem:[#allocation2 + $0x54] sm:$0xf]
        %v1260 = vld [vmem:[#allocation2 + $0x58] sm:$0xf]
        %v1261 = vld [vmem:[#allocation2 + $0x60] sm:$0xf]
        %v1262 = vld [vmem:[#allocation2 + $0x64] sm:$0xf]
        %v1263 = vld [vmem:[#allocation2 + $0x6c] sm:$0xf]
        %v1264 = vld [vmem:[#allocation2 + $0x70] sm:$0xf]
        %v1265 = vld [vmem:[#allocation2 + $0x78] sm:$0xf]
        %v1266 = vld [vmem:[#allocation2 + $0x7c] sm:$0xf]
        %v1267 = vld [vmem:[#allocation2 + $0x84] sm:$0xf]
        %v1268 = vld [vmem:[#allocation2 + $0x88] sm:$0xf]
        %v1269 = vld [vmem:[#allocation2 + $0x90] sm:$0xf]
        %v1270 = vld [vmem:[#allocation2 + $0x94] sm:$0xf]
        %v1271 = vld [vmem:[#allocation2 + $0x9c] sm:$0xf]
        %v1272 = vld [vmem:[#allocation2 + $0xa0] sm:$0xf]
        %v1273 = vld [vmem:[#allocation2 + $0xa8] sm:$0xf]
        %v1274 = vld [vmem:[#allocation2 + $0xac] sm:$0xf]
        %v1275 = vld [vmem:[#allocation2 + $0xb4] sm:$0xf]
        %v1276 = vld [vmem:[#allocation2 + $0xb8] sm:$0xf]
        %v1277 = vld [vmem:[#allocation2 + $0x8] sm:$0x1]
        %v1278 = vld [vmem:[#allocation2 + $0x14] sm:$0x1]
        %v1279 = vld [vmem:[#allocation2 + $0x20] sm:$0x1]
        %v1280 = vld [vmem:[#allocation2 + $0x2c] sm:$0x1]
        %v1281 = vld [vmem:[#allocation2 + $0x38] sm:$0x1]
        %v1282 = vld [vmem:[#allocation2 + $0x44] sm:$0x1]
        %v1283 = vld [vmem:[#allocation2 + $0x50] sm:$0x1]
        %v1284 = vld [vmem:[#allocation2 + $0x5c] sm:$0x1]
        %v1285 = vld [vmem:[#allocation2 + $0x68] sm:$0x1]
        %v1286 = vld [vmem:[#allocation2 + $0x74] sm:$0x1]
        %v1287 = vld [vmem:[#allocation2 + $0x80] sm:$0x1]
        %v1288 = vld [vmem:[#allocation2 + $0x8c] sm:$0x1]
        %v1289 = vld [vmem:[#allocation2 + $0x98] sm:$0x1]
        %v1290 = vld [vmem:[#allocation2 + $0xa4] sm:$0x1]
        %v1291 = vld [vmem:[#allocation2 + $0xb0] sm:$0x1]
        %v1292 = vld [vmem:[#allocation2 + $0xbc] sm:$0x1]
        %vm1293 = vsmask.f32 3328
        %vm1294 = vsmask.f32 7440
        %vm1295 = vmor %vm1293, %vm1294
        %v1297 = vshrl.u32 %v1245, 16
        %v1299 = vrot.slane %v1297, 4
        %v1300 = vshll.u32 %v1245, 16
        %v1302 = vrot.slane %v1300, 5
        %v1303 = vor.u32 %v1299, %v1302
        %v1304 = vrot.slane %v1303, 4
        %v1306 = vshll.u32 %v1246, 16
        %v1308 = vrot.slane %v1306, 5
        %v1309 = vsel %vm1295, %v1304, %v1308
        %v1310 = vshrl.u32 %v1246, 16
        %v1312 = vrot.slane %v1310, 4
        %v1313 = vor.u32 %v1312, %v1308
        %v1314 = vrot.slane %v1313, 4
        %v1316 = vshll.u32 %v1277, 16
        %v1318 = vrot.slane %v1316, 5
        %v1319 = vsel %vm1295, %v1314, %v1318
        %v1321 = vshrl.u32 %v1247, 16
        %v1323 = vrot.slane %v1321, 4
        %v1324 = vshll.u32 %v1247, 16
        %v1326 = vrot.slane %v1324, 5
        %v1327 = vor.u32 %v1323, %v1326
        %v1328 = vrot.slane %v1327, 4
        %v1330 = vshll.u32 %v1248, 16
        %v1332 = vrot.slane %v1330, 5
        %v1333 = vsel %vm1295, %v1328, %v1332
        %v1334 = vshrl.u32 %v1248, 16
        %v1336 = vrot.slane %v1334, 4
        %v1337 = vor.u32 %v1336, %v1332
        %v1338 = vrot.slane %v1337, 4
        %v1340 = vshll.u32 %v1278, 16
        %v1342 = vrot.slane %v1340, 5
        %v1343 = vsel %vm1295, %v1338, %v1342
        %v1345 = vshrl.u32 %v1249, 16
        %v1347 = vrot.slane %v1345, 4
        %v1348 = vshll.u32 %v1249, 16
        %v1350 = vrot.slane %v1348, 5
        %v1351 = vor.u32 %v1347, %v1350
        %v1352 = vrot.slane %v1351, 4
        %v1354 = vshll.u32 %v1250, 16
        %v1356 = vrot.slane %v1354, 5
        %v1357 = vsel %vm1295, %v1352, %v1356
        %v1358 = vshrl.u32 %v1250, 16
        %v1360 = vrot.slane %v1358, 4
        %v1361 = vor.u32 %v1360, %v1356
        %v1362 = vrot.slane %v1361, 4
        %v1364 = vshll.u32 %v1279, 16
        %v1366 = vrot.slane %v1364, 5
        %v1367 = vsel %vm1295, %v1362, %v1366
        %v1369 = vshrl.u32 %v1251, 16
        %v1371 = vrot.slane %v1369, 4
        %v1372 = vshll.u32 %v1251, 16
        %v1374 = vrot.slane %v1372, 5
        %v1375 = vor.u32 %v1371, %v1374
        %v1376 = vrot.slane %v1375, 4
        %v1378 = vshll.u32 %v1252, 16
        %v1380 = vrot.slane %v1378, 5
        %v1381 = vsel %vm1295, %v1376, %v1380
        %v1382 = vshrl.u32 %v1252, 16
        %v1384 = vrot.slane %v1382, 4
        %v1385 = vor.u32 %v1384, %v1380
        %v1386 = vrot.slane %v1385, 4
        %v1388 = vshll.u32 %v1280, 16
        %v1390 = vrot.slane %v1388, 5
        %v1391 = vsel %vm1295, %v1386, %v1390
        %v1393 = vshrl.u32 %v1253, 16
        %v1395 = vrot.slane %v1393, 4
        %v1396 = vshll.u32 %v1253, 16
        %v1398 = vrot.slane %v1396, 5
        %v1399 = vor.u32 %v1395, %v1398
        %v1400 = vrot.slane %v1399, 4
        %v1402 = vshll.u32 %v1254, 16
        %v1404 = vrot.slane %v1402, 5
        %v1405 = vsel %vm1295, %v1400, %v1404
        %v1406 = vshrl.u32 %v1254, 16
        %v1408 = vrot.slane %v1406, 4
        %v1409 = vor.u32 %v1408, %v1404
        %v1410 = vrot.slane %v1409, 4
        %v1412 = vshll.u32 %v1281, 16
        %v1414 = vrot.slane %v1412, 5
        %v1415 = vsel %vm1295, %v1410, %v1414
        %v1417 = vshrl.u32 %v1255, 16
        %v1419 = vrot.slane %v1417, 4
        %v1420 = vshll.u32 %v1255, 16
        %v1422 = vrot.slane %v1420, 5
        %v1423 = vor.u32 %v1419, %v1422
        %v1424 = vrot.slane %v1423, 4
        %v1426 = vshll.u32 %v1256, 16
        %v1428 = vrot.slane %v1426, 5
        %v1429 = vsel %vm1295, %v1424, %v1428
        %v1430 = vshrl.u32 %v1256, 16
        %v1432 = vrot.slane %v1430, 4
        %v1433 = vor.u32 %v1432, %v1428
        %v1434 = vrot.slane %v1433, 4
        %v1436 = vshll.u32 %v1282, 16
        %v1438 = vrot.slane %v1436, 5
        %v1439 = vsel %vm1295, %v1434, %v1438
        %v1441 = vshrl.u32 %v1257, 16
        %v1443 = vrot.slane %v1441, 4
        %v1444 = vshll.u32 %v1257, 16
        %v1446 = vrot.slane %v1444, 5
        %v1447 = vor.u32 %v1443, %v1446
        %v1448 = vrot.slane %v1447, 4
        %v1450 = vshll.u32 %v1258, 16
        %v1452 = vrot.slane %v1450, 5
        %v1453 = vsel %vm1295, %v1448, %v1452
        %v1454 = vshrl.u32 %v1258, 16
        %v1456 = vrot.slane %v1454, 4
        %v1457 = vor.u32 %v1456, %v1452
        %v1458 = vrot.slane %v1457, 4
        %v1460 = vshll.u32 %v1283, 16
        %v1462 = vrot.slane %v1460, 5
        %v1463 = vsel %vm1295, %v1458, %v1462
        %v1465 = vshrl.u32 %v1259, 16
        %v1467 = vrot.slane %v1465, 4
        %v1468 = vshll.u32 %v1259, 16
        %v1470 = vrot.slane %v1468, 5
        %v1471 = vor.u32 %v1467, %v1470
        %v1472 = vrot.slane %v1471, 4
        %v1474 = vshll.u32 %v1260, 16
        %v1476 = vrot.slane %v1474, 5
        %v1477 = vsel %vm1295, %v1472, %v1476
        %v1478 = vshrl.u32 %v1260, 16
        %v1480 = vrot.slane %v1478, 4
        %v1481 = vor.u32 %v1480, %v1476
        %v1482 = vrot.slane %v1481, 4
        %v1484 = vshll.u32 %v1284, 16
        %v1486 = vrot.slane %v1484, 5
        %v1487 = vsel %vm1295, %v1482, %v1486
        %v1489 = vshrl.u32 %v1261, 16
        %v1491 = vrot.slane %v1489, 4
        %v1492 = vshll.u32 %v1261, 16
        %v1494 = vrot.slane %v1492, 5
        %v1495 = vor.u32 %v1491, %v1494
        %v1496 = vrot.slane %v1495, 4
        %v1498 = vshll.u32 %v1262, 16
        %v1500 = vrot.slane %v1498, 5
        %v1501 = vsel %vm1295, %v1496, %v1500
        %v1502 = vshrl.u32 %v1262, 16
        %v1504 = vrot.slane %v1502, 4
        %v1505 = vor.u32 %v1504, %v1500
        %v1506 = vrot.slane %v1505, 4
        %v1508 = vshll.u32 %v1285, 16
        %v1510 = vrot.slane %v1508, 5
        %v1511 = vsel %vm1295, %v1506, %v1510
        %v1513 = vshrl.u32 %v1263, 16
        %v1515 = vrot.slane %v1513, 4
        %v1516 = vshll.u32 %v1263, 16
        %v1518 = vrot.slane %v1516, 5
        %v1519 = vor.u32 %v1515, %v1518
        %v1520 = vrot.slane %v1519, 4
        %v1522 = vshll.u32 %v1264, 16
        %v1524 = vrot.slane %v1522, 5
        %v1525 = vsel %vm1295, %v1520, %v1524
        %v1526 = vshrl.u32 %v1264, 16
        %v1528 = vrot.slane %v1526, 4
        %v1529 = vor.u32 %v1528, %v1524
        %v1530 = vrot.slane %v1529, 4
        %v1532 = vshll.u32 %v1286, 16
        %v1534 = vrot.slane %v1532, 5
        %v1535 = vsel %vm1295, %v1530, %v1534
        %v1537 = vshrl.u32 %v1265, 16
        %v1539 = vrot.slane %v1537, 4
        %v1540 = vshll.u32 %v1265, 16
        %v1542 = vrot.slane %v1540, 5
        %v1543 = vor.u32 %v1539, %v1542
        %v1544 = vrot.slane %v1543, 4
        %v1546 = vshll.u32 %v1266, 16
        %v1548 = vrot.slane %v1546, 5
        %v1549 = vsel %vm1295, %v1544, %v1548
        %v1550 = vshrl.u32 %v1266, 16
        %v1552 = vrot.slane %v1550, 4
        %v1553 = vor.u32 %v1552, %v1548
        %v1554 = vrot.slane %v1553, 4
        %v1556 = vshll.u32 %v1287, 16
        %v1558 = vrot.slane %v1556, 5
        %v1559 = vsel %vm1295, %v1554, %v1558
        %v1561 = vshrl.u32 %v1267, 16
        %v1563 = vrot.slane %v1561, 4
        %v1564 = vshll.u32 %v1267, 16
        %v1566 = vrot.slane %v1564, 5
        %v1567 = vor.u32 %v1563, %v1566
        %v1568 = vrot.slane %v1567, 4
        %v1570 = vshll.u32 %v1268, 16
        %v1572 = vrot.slane %v1570, 5
        %v1573 = vsel %vm1295, %v1568, %v1572
        %v1574 = vshrl.u32 %v1268, 16
        %v1576 = vrot.slane %v1574, 4
        %v1577 = vor.u32 %v1576, %v1572
        %v1578 = vrot.slane %v1577, 4
        %v1580 = vshll.u32 %v1288, 16
        %v1582 = vrot.slane %v1580, 5
        %v1583 = vsel %vm1295, %v1578, %v1582
        %v1585 = vshrl.u32 %v1269, 16
        %v1587 = vrot.slane %v1585, 4
        %v1588 = vshll.u32 %v1269, 16
        %v1590 = vrot.slane %v1588, 5
        %v1591 = vor.u32 %v1587, %v1590
        %v1592 = vrot.slane %v1591, 4
        %v1594 = vshll.u32 %v1270, 16
        %v1596 = vrot.slane %v1594, 5
        %v1597 = vsel %vm1295, %v1592, %v1596
        %v1598 = vshrl.u32 %v1270, 16
        %v1600 = vrot.slane %v1598, 4
        %v1601 = vor.u32 %v1600, %v1596
        %v1602 = vrot.slane %v1601, 4
        %v1604 = vshll.u32 %v1289, 16
        %v1606 = vrot.slane %v1604, 5
        %v1607 = vsel %vm1295, %v1602, %v1606
        %v1609 = vshrl.u32 %v1271, 16
        %v1611 = vrot.slane %v1609, 4
        %v1612 = vshll.u32 %v1271, 16
        %v1614 = vrot.slane %v1612, 5
        %v1615 = vor.u32 %v1611, %v1614
        %v1616 = vrot.slane %v1615, 4
        %v1618 = vshll.u32 %v1272, 16
        %v1620 = vrot.slane %v1618, 5
        %v1621 = vsel %vm1295, %v1616, %v1620
        %v1622 = vshrl.u32 %v1272, 16
        %v1624 = vrot.slane %v1622, 4
        %v1625 = vor.u32 %v1624, %v1620
        %v1626 = vrot.slane %v1625, 4
        %v1628 = vshll.u32 %v1290, 16
        %v1630 = vrot.slane %v1628, 5
        %v1631 = vsel %vm1295, %v1626, %v1630
        %v1633 = vshrl.u32 %v1273, 16
        %v1635 = vrot.slane %v1633, 4
        %v1636 = vshll.u32 %v1273, 16
        %v1638 = vrot.slane %v1636, 5
        %v1639 = vor.u32 %v1635, %v1638
        %v1640 = vrot.slane %v1639, 4
        %v1642 = vshll.u32 %v1274, 16
        %v1644 = vrot.slane %v1642, 5
        %v1645 = vsel %vm1295, %v1640, %v1644
        %v1646 = vshrl.u32 %v1274, 16
        %v1648 = vrot.slane %v1646, 4
        %v1649 = vor.u32 %v1648, %v1644
        %v1650 = vrot.slane %v1649, 4
        %v1652 = vshll.u32 %v1291, 16
        %v1654 = vrot.slane %v1652, 5
        %v1655 = vsel %vm1295, %v1650, %v1654
        %v1657 = vshrl.u32 %v1275, 16
        %v1659 = vrot.slane %v1657, 4
        %v1660 = vshll.u32 %v1275, 16
        %v1662 = vrot.slane %v1660, 5
        %v1663 = vor.u32 %v1659, %v1662
        %v1664 = vrot.slane %v1663, 4
        %v1666 = vshll.u32 %v1276, 16
        %v1668 = vrot.slane %v1666, 5
        %v1669 = vsel %vm1295, %v1664, %v1668
        %v1670 = vshrl.u32 %v1276, 16
        %v1672 = vrot.slane %v1670, 4
        %v1673 = vor.u32 %v1672, %v1668
        %v1674 = vrot.slane %v1673, 4
        %v1676 = vshll.u32 %v1292, 16
        %v1678 = vrot.slane %v1676, 5
        %v1679 = vsel %vm1295, %v1674, %v1678
        %v1680 = vld [vmem:[#allocation2] sm:$0xe]
        %v1681 = vld [vmem:[#allocation2 + $0xc] sm:$0xe]
        %v1682 = vld [vmem:[#allocation2 + $0x18] sm:$0xe]
        %v1683 = vld [vmem:[#allocation2 + $0x24] sm:$0xe]
        %v1684 = vld [vmem:[#allocation2 + $0x30] sm:$0xe]
        %v1685 = vld [vmem:[#allocation2 + $0x3c] sm:$0xe]
        %v1686 = vld [vmem:[#allocation2 + $0x48] sm:$0xe]
        %v1687 = vld [vmem:[#allocation2 + $0x54] sm:$0xe]
        %v1688 = vld [vmem:[#allocation2 + $0x60] sm:$0xe]
        %v1689 = vld [vmem:[#allocation2 + $0x6c] sm:$0xe]
        %v1690 = vld [vmem:[#allocation2 + $0x78] sm:$0xe]
        %v1691 = vld [vmem:[#allocation2 + $0x84] sm:$0xe]
        %v1692 = vld [vmem:[#allocation2 + $0x90] sm:$0xe]
        %v1693 = vld [vmem:[#allocation2 + $0x9c] sm:$0xe]
        %v1694 = vld [vmem:[#allocation2 + $0xa8] sm:$0xe]
        %v1695 = vld [vmem:[#allocation2 + $0xb4] sm:$0xe]
        %vm1744 = vcmask 1042432
        %vm1745 = vcmask 1046532
        %vm1746 = vmor %vm1744, %vm1745
        %v1747 = vrot.slane %v1680, 5
        %v1748 = vrot.slane %v1747, 4
        %v1749 = vrot.slane %v1246, 5
        %v1750 = vsel %vm1746, %v1748, %v1749
        %v1751 = vrot.slane %v1749, 4
        %v1752 = vrot.slane %v1277, 5
        %v1753 = vsel %vm1746, %v1751, %v1752
        %v1754 = vrot.slane %v1681, 5
        %v1755 = vrot.slane %v1754, 4
        %v1756 = vrot.slane %v1248, 5
        %v1757 = vsel %vm1746, %v1755, %v1756
        %v1758 = vrot.slane %v1756, 4
        %v1759 = vrot.slane %v1278, 5
        %v1760 = vsel %vm1746, %v1758, %v1759
        %v1761 = vrot.slane %v1682, 5
        %v1762 = vrot.slane %v1761, 4
        %v1763 = vrot.slane %v1250, 5
        %v1764 = vsel %vm1746, %v1762, %v1763
        %v1765 = vrot.slane %v1763, 4
        %v1766 = vrot.slane %v1279, 5
        %v1767 = vsel %vm1746, %v1765, %v1766
        %v1768 = vrot.slane %v1683, 5
        %v1769 = vrot.slane %v1768, 4
        %v1770 = vrot.slane %v1252, 5
        %v1771 = vsel %vm1746, %v1769, %v1770
        %v1772 = vrot.slane %v1770, 4
        %v1773 = vrot.slane %v1280, 5
        %v1774 = vsel %vm1746, %v1772, %v1773
        %v1775 = vrot.slane %v1684, 5
        %v1776 = vrot.slane %v1775, 4
        %v1777 = vrot.slane %v1254, 5
        %v1778 = vsel %vm1746, %v1776, %v1777
        %v1779 = vrot.slane %v1777, 4
        %v1780 = vrot.slane %v1281, 5
        %v1781 = vsel %vm1746, %v1779, %v1780
        %v1782 = vrot.slane %v1685, 5
        %v1783 = vrot.slane %v1782, 4
        %v1784 = vrot.slane %v1256, 5
        %v1785 = vsel %vm1746, %v1783, %v1784
        %v1786 = vrot.slane %v1784, 4
        %v1787 = vrot.slane %v1282, 5
        %v1788 = vsel %vm1746, %v1786, %v1787
        %v1789 = vrot.slane %v1686, 5
        %v1790 = vrot.slane %v1789, 4
        %v1791 = vrot.slane %v1258, 5
        %v1792 = vsel %vm1746, %v1790, %v1791
        %v1793 = vrot.slane %v1791, 4
        %v1794 = vrot.slane %v1283, 5
        %v1795 = vsel %vm1746, %v1793, %v1794
        %v1796 = vrot.slane %v1687, 5
        %v1797 = vrot.slane %v1796, 4
        %v1798 = vrot.slane %v1260, 5
        %v1799 = vsel %vm1746, %v1797, %v1798
        %v1800 = vrot.slane %v1798, 4
        %v1801 = vrot.slane %v1284, 5
        %v1802 = vsel %vm1746, %v1800, %v1801
        %v1803 = vrot.slane %v1688, 5
        %v1804 = vrot.slane %v1803, 4
        %v1805 = vrot.slane %v1262, 5
        %v1806 = vsel %vm1746, %v1804, %v1805
        %v1807 = vrot.slane %v1805, 4
        %v1808 = vrot.slane %v1285, 5
        %v1809 = vsel %vm1746, %v1807, %v1808
        %v1810 = vrot.slane %v1689, 5
        %v1811 = vrot.slane %v1810, 4
        %v1812 = vrot.slane %v1264, 5
        %v1813 = vsel %vm1746, %v1811, %v1812
        %v1814 = vrot.slane %v1812, 4
        %v1815 = vrot.slane %v1286, 5
        %v1816 = vsel %vm1746, %v1814, %v1815
        %v1817 = vrot.slane %v1690, 5
        %v1818 = vrot.slane %v1817, 4
        %v1819 = vrot.slane %v1266, 5
        %v1820 = vsel %vm1746, %v1818, %v1819
        %v1821 = vrot.slane %v1819, 4
        %v1822 = vrot.slane %v1287, 5
        %v1823 = vsel %vm1746, %v1821, %v1822
        %v1824 = vrot.slane %v1691, 5
        %v1825 = vrot.slane %v1824, 4
        %v1826 = vrot.slane %v1268, 5
        %v1827 = vsel %vm1746, %v1825, %v1826
        %v1828 = vrot.slane %v1826, 4
        %v1829 = vrot.slane %v1288, 5
        %v1830 = vsel %vm1746, %v1828, %v1829
        %v1831 = vrot.slane %v1692, 5
        %v1832 = vrot.slane %v1831, 4
        %v1833 = vrot.slane %v1270, 5
        %v1834 = vsel %vm1746, %v1832, %v1833
        %v1835 = vrot.slane %v1833, 4
        %v1836 = vrot.slane %v1289, 5
        %v1837 = vsel %vm1746, %v1835, %v1836
        %v1838 = vrot.slane %v1693, 5
        %v1839 = vrot.slane %v1838, 4
        %v1840 = vrot.slane %v1272, 5
        %v1841 = vsel %vm1746, %v1839, %v1840
        %v1842 = vrot.slane %v1840, 4
        %v1843 = vrot.slane %v1290, 5
        %v1844 = vsel %vm1746, %v1842, %v1843
        %v1845 = vrot.slane %v1694, 5
        %v1846 = vrot.slane %v1845, 4
        %v1847 = vrot.slane %v1274, 5
        %v1848 = vsel %vm1746, %v1846, %v1847
        %v1849 = vrot.slane %v1847, 4
        %v1850 = vrot.slane %v1291, 5
        %v1851 = vsel %vm1746, %v1849, %v1850
        %v1852 = vrot.slane %v1695, 5
        %v1853 = vrot.slane %v1852, 4
        %v1854 = vrot.slane %v1276, 5
        %v1855 = vsel %vm1746, %v1853, %v1854
        %v1856 = vrot.slane %v1854, 4
        %v1857 = vrot.slane %v1292, 5
        %v1858 = vsel %vm1746, %v1856, %v1857
        %v1859 = vld [vmem:[%s1127] sm:$0xf]
        %v1860 = vld [vmem:[%s1127 + $0x4] sm:$0xf]
        %v1861 = vld [vmem:[%s1127 + $0xc] sm:$0xf]
        %v1862 = vld [vmem:[%s1127 + $0x10] sm:$0xf]
        %v1863 = vld [vmem:[%s1127 + $0x18] sm:$0xf]
        %v1864 = vld [vmem:[%s1127 + $0x1c] sm:$0xf]
        %v1865 = vld [vmem:[%s1127 + $0x24] sm:$0xf]
        %v1866 = vld [vmem:[%s1127 + $0x28] sm:$0xf]
        %v1867 = vld [vmem:[%s1127 + $0x30] sm:$0xf]
        %v1868 = vld [vmem:[%s1127 + $0x34] sm:$0xf]
        %v1869 = vld [vmem:[%s1127 + $0x3c] sm:$0xf]
        %v1870 = vld [vmem:[%s1127 + $0x40] sm:$0xf]
        %v1871 = vld [vmem:[%s1127 + $0x48] sm:$0xf]
        %v1872 = vld [vmem:[%s1127 + $0x4c] sm:$0xf]
        %v1873 = vld [vmem:[%s1127 + $0x54] sm:$0xf]
        %v1874 = vld [vmem:[%s1127 + $0x58] sm:$0xf]
        %v1875 = vld [vmem:[%s1127 + $0x60] sm:$0xf]
        %v1876 = vld [vmem:[%s1127 + $0x64] sm:$0xf]
        %v1877 = vld [vmem:[%s1127 + $0x6c] sm:$0xf]
        %v1878 = vld [vmem:[%s1127 + $0x70] sm:$0xf]
        %v1879 = vld [vmem:[%s1127 + $0x78] sm:$0xf]
        %v1880 = vld [vmem:[%s1127 + $0x7c] sm:$0xf]
        %v1881 = vld [vmem:[%s1127 + $0x84] sm:$0xf]
        %v1882 = vld [vmem:[%s1127 + $0x88] sm:$0xf]
        %v1883 = vld [vmem:[%s1127 + $0x90] sm:$0xf]
        %v1884 = vld [vmem:[%s1127 + $0x94] sm:$0xf]
        %v1885 = vld [vmem:[%s1127 + $0x9c] sm:$0xf]
        %v1886 = vld [vmem:[%s1127 + $0xa0] sm:$0xf]
        %v1887 = vld [vmem:[%s1127 + $0xa8] sm:$0xf]
        %v1888 = vld [vmem:[%s1127 + $0xac] sm:$0xf]
        %v1889 = vld [vmem:[%s1127 + $0xb4] sm:$0xf]
        %v1890 = vld [vmem:[%s1127 + $0xb8] sm:$0xf]
        %v1891 = vld [vmem:[%s1127 + $0x8] sm:$0x1]
        %v1892 = vld [vmem:[%s1127 + $0x14] sm:$0x1]
        %v1893 = vld [vmem:[%s1127 + $0x20] sm:$0x1]
        %v1894 = vld [vmem:[%s1127 + $0x2c] sm:$0x1]
        %v1895 = vld [vmem:[%s1127 + $0x38] sm:$0x1]
        %v1896 = vld [vmem:[%s1127 + $0x44] sm:$0x1]
        %v1897 = vld [vmem:[%s1127 + $0x50] sm:$0x1]
        %v1898 = vld [vmem:[%s1127 + $0x5c] sm:$0x1]
        %v1899 = vld [vmem:[%s1127 + $0x68] sm:$0x1]
        %v1900 = vld [vmem:[%s1127 + $0x74] sm:$0x1]
        %v1901 = vld [vmem:[%s1127 + $0x80] sm:$0x1]
        %v1902 = vld [vmem:[%s1127 + $0x8c] sm:$0x1]
        %v1903 = vld [vmem:[%s1127 + $0x98] sm:$0x1]
        %v1904 = vld [vmem:[%s1127 + $0xa4] sm:$0x1]
        %v1905 = vld [vmem:[%s1127 + $0xb0] sm:$0x1]
        %v1906 = vld [vmem:[%s1127 + $0xbc] sm:$0x1]
        %v1908 = vshrl.u32 %v1859, 16
        %v1910 = vrot.slane %v1908, 4
        %v1911 = vshll.u32 %v1859, 16
        %v1913 = vrot.slane %v1911, 5
        %v1914 = vor.u32 %v1910, %v1913
        %v1915 = vrot.slane %v1914, 4
        %v1917 = vshll.u32 %v1860, 16
        %v1919 = vrot.slane %v1917, 5
        %v1920 = vsel %vm1295, %v1915, %v1919
        %v1921 = vshrl.u32 %v1860, 16
        %v1923 = vrot.slane %v1921, 4
        %v1924 = vor.u32 %v1923, %v1919
        %v1925 = vrot.slane %v1924, 4
        %v1927 = vshll.u32 %v1891, 16
        %v1929 = vrot.slane %v1927, 5
        %v1930 = vsel %vm1295, %v1925, %v1929
        %v1932 = vshrl.u32 %v1861, 16
        %v1934 = vrot.slane %v1932, 4
        %v1935 = vshll.u32 %v1861, 16
        %v1937 = vrot.slane %v1935, 5
        %v1938 = vor.u32 %v1934, %v1937
        %v1939 = vrot.slane %v1938, 4
        %v1941 = vshll.u32 %v1862, 16
        %v1943 = vrot.slane %v1941, 5
        %v1944 = vsel %vm1295, %v1939, %v1943
        %v1945 = vshrl.u32 %v1862, 16
        %v1947 = vrot.slane %v1945, 4
        %v1948 = vor.u32 %v1947, %v1943
        %v1949 = vrot.slane %v1948, 4
        %v1951 = vshll.u32 %v1892, 16
        %v1953 = vrot.slane %v1951, 5
        %v1954 = vsel %vm1295, %v1949, %v1953
        %v1956 = vshrl.u32 %v1863, 16
        %v1958 = vrot.slane %v1956, 4
        %v1959 = vshll.u32 %v1863, 16
        %v1961 = vrot.slane %v1959, 5
        %v1962 = vor.u32 %v1958, %v1961
        %v1963 = vrot.slane %v1962, 4
        %v1965 = vshll.u32 %v1864, 16
        %v1967 = vrot.slane %v1965, 5
        %v1968 = vsel %vm1295, %v1963, %v1967
        %v1969 = vshrl.u32 %v1864, 16
        %v1971 = vrot.slane %v1969, 4
        %v1972 = vor.u32 %v1971, %v1967
        %v1973 = vrot.slane %v1972, 4
        %v1975 = vshll.u32 %v1893, 16
        %v1977 = vrot.slane %v1975, 5
        %v1978 = vsel %vm1295, %v1973, %v1977
        %v1980 = vshrl.u32 %v1865, 16
        %v1982 = vrot.slane %v1980, 4
        %v1983 = vshll.u32 %v1865, 16
        %v1985 = vrot.slane %v1983, 5
        %v1986 = vor.u32 %v1982, %v1985
        %v1987 = vrot.slane %v1986, 4
        %v1989 = vshll.u32 %v1866, 16
        %v1991 = vrot.slane %v1989, 5
        %v1992 = vsel %vm1295, %v1987, %v1991
        %v1993 = vshrl.u32 %v1866, 16
        %v1995 = vrot.slane %v1993, 4
        %v1996 = vor.u32 %v1995, %v1991
        %v1997 = vrot.slane %v1996, 4
        %v1999 = vshll.u32 %v1894, 16
        %v2001 = vrot.slane %v1999, 5
        %v2002 = vsel %vm1295, %v1997, %v2001
        %v2004 = vshrl.u32 %v1867, 16
        %v2006 = vrot.slane %v2004, 4
        %v2007 = vshll.u32 %v1867, 16
        %v2009 = vrot.slane %v2007, 5
        %v2010 = vor.u32 %v2006, %v2009
        %v2011 = vrot.slane %v2010, 4
        %v2013 = vshll.u32 %v1868, 16
        %v2015 = vrot.slane %v2013, 5
        %v2016 = vsel %vm1295, %v2011, %v2015
        %v2017 = vshrl.u32 %v1868, 16
        %v2019 = vrot.slane %v2017, 4
        %v2020 = vor.u32 %v2019, %v2015
        %v2021 = vrot.slane %v2020, 4
        %v2023 = vshll.u32 %v1895, 16
        %v2025 = vrot.slane %v2023, 5
        %v2026 = vsel %vm1295, %v2021, %v2025
        %v2028 = vshrl.u32 %v1869, 16
        %v2030 = vrot.slane %v2028, 4
        %v2031 = vshll.u32 %v1869, 16
        %v2033 = vrot.slane %v2031, 5
        %v2034 = vor.u32 %v2030, %v2033
        %v2035 = vrot.slane %v2034, 4
        %v2037 = vshll.u32 %v1870, 16
        %v2039 = vrot.slane %v2037, 5
        %v2040 = vsel %vm1295, %v2035, %v2039
        %v2041 = vshrl.u32 %v1870, 16
        %v2043 = vrot.slane %v2041, 4
        %v2044 = vor.u32 %v2043, %v2039
        %v2045 = vrot.slane %v2044, 4
        %v2047 = vshll.u32 %v1896, 16
        %v2049 = vrot.slane %v2047, 5
        %v2050 = vsel %vm1295, %v2045, %v2049
        %v2052 = vshrl.u32 %v1871, 16
        %v2054 = vrot.slane %v2052, 4
        %v2055 = vshll.u32 %v1871, 16
        %v2057 = vrot.slane %v2055, 5
        %v2058 = vor.u32 %v2054, %v2057
        %v2059 = vrot.slane %v2058, 4
        %v2061 = vshll.u32 %v1872, 16
        %v2063 = vrot.slane %v2061, 5
        %v2064 = vsel %vm1295, %v2059, %v2063
        %v2065 = vshrl.u32 %v1872, 16
        %v2067 = vrot.slane %v2065, 4
        %v2068 = vor.u32 %v2067, %v2063
        %v2069 = vrot.slane %v2068, 4
        %v2071 = vshll.u32 %v1897, 16
        %v2073 = vrot.slane %v2071, 5
        %v2074 = vsel %vm1295, %v2069, %v2073
        %v2076 = vshrl.u32 %v1873, 16
        %v2078 = vrot.slane %v2076, 4
        %v2079 = vshll.u32 %v1873, 16
        %v2081 = vrot.slane %v2079, 5
        %v2082 = vor.u32 %v2078, %v2081
        %v2083 = vrot.slane %v2082, 4
        %v2085 = vshll.u32 %v1874, 16
        %v2087 = vrot.slane %v2085, 5
        %v2088 = vsel %vm1295, %v2083, %v2087
        %v2089 = vshrl.u32 %v1874, 16
        %v2091 = vrot.slane %v2089, 4
        %v2092 = vor.u32 %v2091, %v2087
        %v2093 = vrot.slane %v2092, 4
        %v2095 = vshll.u32 %v1898, 16
        %v2097 = vrot.slane %v2095, 5
        %v2098 = vsel %vm1295, %v2093, %v2097
        %v2100 = vshrl.u32 %v1875, 16
        %v2102 = vrot.slane %v2100, 4
        %v2103 = vshll.u32 %v1875, 16
        %v2105 = vrot.slane %v2103, 5
        %v2106 = vor.u32 %v2102, %v2105
        %v2107 = vrot.slane %v2106, 4
        %v2109 = vshll.u32 %v1876, 16
        %v2111 = vrot.slane %v2109, 5
        %v2112 = vsel %vm1295, %v2107, %v2111
        %v2113 = vshrl.u32 %v1876, 16
        %v2115 = vrot.slane %v2113, 4
        %v2116 = vor.u32 %v2115, %v2111
        %v2117 = vrot.slane %v2116, 4
        %v2119 = vshll.u32 %v1899, 16
        %v2121 = vrot.slane %v2119, 5
        %v2122 = vsel %vm1295, %v2117, %v2121
        %v2124 = vshrl.u32 %v1877, 16
        %v2126 = vrot.slane %v2124, 4
        %v2127 = vshll.u32 %v1877, 16
        %v2129 = vrot.slane %v2127, 5
        %v2130 = vor.u32 %v2126, %v2129
        %v2131 = vrot.slane %v2130, 4
        %v2133 = vshll.u32 %v1878, 16
        %v2135 = vrot.slane %v2133, 5
        %v2136 = vsel %vm1295, %v2131, %v2135
        %v2137 = vshrl.u32 %v1878, 16
        %v2139 = vrot.slane %v2137, 4
        %v2140 = vor.u32 %v2139, %v2135
        %v2141 = vrot.slane %v2140, 4
        %v2143 = vshll.u32 %v1900, 16
        %v2145 = vrot.slane %v2143, 5
        %v2146 = vsel %vm1295, %v2141, %v2145
        %v2148 = vshrl.u32 %v1879, 16
        %v2150 = vrot.slane %v2148, 4
        %v2151 = vshll.u32 %v1879, 16
        %v2153 = vrot.slane %v2151, 5
        %v2154 = vor.u32 %v2150, %v2153
        %v2155 = vrot.slane %v2154, 4
        %v2157 = vshll.u32 %v1880, 16
        %v2159 = vrot.slane %v2157, 5
        %v2160 = vsel %vm1295, %v2155, %v2159
        %v2161 = vshrl.u32 %v1880, 16
        %v2163 = vrot.slane %v2161, 4
        %v2164 = vor.u32 %v2163, %v2159
        %v2165 = vrot.slane %v2164, 4
        %v2167 = vshll.u32 %v1901, 16
        %v2169 = vrot.slane %v2167, 5
        %v2170 = vsel %vm1295, %v2165, %v2169
        %v2172 = vshrl.u32 %v1881, 16
        %v2174 = vrot.slane %v2172, 4
        %v2175 = vshll.u32 %v1881, 16
        %v2177 = vrot.slane %v2175, 5
        %v2178 = vor.u32 %v2174, %v2177
        %v2179 = vrot.slane %v2178, 4
        %v2181 = vshll.u32 %v1882, 16
        %v2183 = vrot.slane %v2181, 5
        %v2184 = vsel %vm1295, %v2179, %v2183
        %v2185 = vshrl.u32 %v1882, 16
        %v2187 = vrot.slane %v2185, 4
        %v2188 = vor.u32 %v2187, %v2183
        %v2189 = vrot.slane %v2188, 4
        %v2191 = vshll.u32 %v1902, 16
        %v2193 = vrot.slane %v2191, 5
        %v2194 = vsel %vm1295, %v2189, %v2193
        %v2196 = vshrl.u32 %v1883, 16
        %v2198 = vrot.slane %v2196, 4
        %v2199 = vshll.u32 %v1883, 16
        %v2201 = vrot.slane %v2199, 5
        %v2202 = vor.u32 %v2198, %v2201
        %v2203 = vrot.slane %v2202, 4
        %v2205 = vshll.u32 %v1884, 16
        %v2207 = vrot.slane %v2205, 5
        %v2208 = vsel %vm1295, %v2203, %v2207
        %v2209 = vshrl.u32 %v1884, 16
        %v2211 = vrot.slane %v2209, 4
        %v2212 = vor.u32 %v2211, %v2207
        %v2213 = vrot.slane %v2212, 4
        %v2215 = vshll.u32 %v1903, 16
        %v2217 = vrot.slane %v2215, 5
        %v2218 = vsel %vm1295, %v2213, %v2217
        %v2220 = vshrl.u32 %v1885, 16
        %v2222 = vrot.slane %v2220, 4
        %v2223 = vshll.u32 %v1885, 16
        %v2225 = vrot.slane %v2223, 5
        %v2226 = vor.u32 %v2222, %v2225
        %v2227 = vrot.slane %v2226, 4
        %v2229 = vshll.u32 %v1886, 16
        %v2231 = vrot.slane %v2229, 5
        %v2232 = vsel %vm1295, %v2227, %v2231
        %v2233 = vshrl.u32 %v1886, 16
        %v2235 = vrot.slane %v2233, 4
        %v2236 = vor.u32 %v2235, %v2231
        %v2237 = vrot.slane %v2236, 4
        %v2239 = vshll.u32 %v1904, 16
        %v2241 = vrot.slane %v2239, 5
        %v2242 = vsel %vm1295, %v2237, %v2241
        %v2244 = vshrl.u32 %v1887, 16
        %v2246 = vrot.slane %v2244, 4
        %v2247 = vshll.u32 %v1887, 16
        %v2249 = vrot.slane %v2247, 5
        %v2250 = vor.u32 %v2246, %v2249
        %v2251 = vrot.slane %v2250, 4
        %v2253 = vshll.u32 %v1888, 16
        %v2255 = vrot.slane %v2253, 5
        %v2256 = vsel %vm1295, %v2251, %v2255
        %v2257 = vshrl.u32 %v1888, 16
        %v2259 = vrot.slane %v2257, 4
        %v2260 = vor.u32 %v2259, %v2255
        %v2261 = vrot.slane %v2260, 4
        %v2263 = vshll.u32 %v1905, 16
        %v2265 = vrot.slane %v2263, 5
        %v2266 = vsel %vm1295, %v2261, %v2265
        %v2268 = vshrl.u32 %v1889, 16
        %v2270 = vrot.slane %v2268, 4
        %v2271 = vshll.u32 %v1889, 16
        %v2273 = vrot.slane %v2271, 5
        %v2274 = vor.u32 %v2270, %v2273
        %v2275 = vrot.slane %v2274, 4
        %v2277 = vshll.u32 %v1890, 16
        %v2279 = vrot.slane %v2277, 5
        %v2280 = vsel %vm1295, %v2275, %v2279
        %v2281 = vshrl.u32 %v1890, 16
        %v2283 = vrot.slane %v2281, 4
        %v2284 = vor.u32 %v2283, %v2279
        %v2285 = vrot.slane %v2284, 4
        %v2287 = vshll.u32 %v1906, 16
        %v2289 = vrot.slane %v2287, 5
        %v2290 = vsel %vm1295, %v2285, %v2289
        %v2291 = vld [vmem:[%s1127] sm:$0xe]
        %v2292 = vld [vmem:[%s1127 + $0xc] sm:$0xe]
        %v2293 = vld [vmem:[%s1127 + $0x18] sm:$0xe]
        %v2294 = vld [vmem:[%s1127 + $0x24] sm:$0xe]
        %v2295 = vld [vmem:[%s1127 + $0x30] sm:$0xe]
        %v2296 = vld [vmem:[%s1127 + $0x3c] sm:$0xe]
        %v2297 = vld [vmem:[%s1127 + $0x48] sm:$0xe]
        %v2298 = vld [vmem:[%s1127 + $0x54] sm:$0xe]
        %v2299 = vld [vmem:[%s1127 + $0x60] sm:$0xe]
        %v2300 = vld [vmem:[%s1127 + $0x6c] sm:$0xe]
        %v2301 = vld [vmem:[%s1127 + $0x78] sm:$0xe]
        %v2302 = vld [vmem:[%s1127 + $0x84] sm:$0xe]
        %v2303 = vld [vmem:[%s1127 + $0x90] sm:$0xe]
        %v2304 = vld [vmem:[%s1127 + $0x9c] sm:$0xe]
        %v2305 = vld [vmem:[%s1127 + $0xa8] sm:$0xe]
        %v2306 = vld [vmem:[%s1127 + $0xb4] sm:$0xe]
        %v2355 = vrot.slane %v2291, 5
        %v2356 = vrot.slane %v2355, 4
        %v2357 = vrot.slane %v1860, 5
        %v2358 = vsel %vm1746, %v2356, %v2357
        %v2359 = vrot.slane %v2357, 4
        %v2360 = vrot.slane %v1891, 5
        %v2361 = vsel %vm1746, %v2359, %v2360
        %v2362 = vrot.slane %v2292, 5
        %v2363 = vrot.slane %v2362, 4
        %v2364 = vrot.slane %v1862, 5
        %v2365 = vsel %vm1746, %v2363, %v2364
        %v2366 = vrot.slane %v2364, 4
        %v2367 = vrot.slane %v1892, 5
        %v2368 = vsel %vm1746, %v2366, %v2367
        %v2369 = vrot.slane %v2293, 5
        %v2370 = vrot.slane %v2369, 4
        %v2371 = vrot.slane %v1864, 5
        %v2372 = vsel %vm1746, %v2370, %v2371
        %v2373 = vrot.slane %v2371, 4
        %v2374 = vrot.slane %v1893, 5
        %v2375 = vsel %vm1746, %v2373, %v2374
        %v2376 = vrot.slane %v2294, 5
        %v2377 = vrot.slane %v2376, 4
        %v2378 = vrot.slane %v1866, 5
        %v2379 = vsel %vm1746, %v2377, %v2378
        %v2380 = vrot.slane %v2378, 4
        %v2381 = vrot.slane %v1894, 5
        %v2382 = vsel %vm1746, %v2380, %v2381
        %v2383 = vrot.slane %v2295, 5
        %v2384 = vrot.slane %v2383, 4
        %v2385 = vrot.slane %v1868, 5
        %v2386 = vsel %vm1746, %v2384, %v2385
        %v2387 = vrot.slane %v2385, 4
        %v2388 = vrot.slane %v1895, 5
        %v2389 = vsel %vm1746, %v2387, %v2388
        %v2390 = vrot.slane %v2296, 5
        %v2391 = vrot.slane %v2390, 4
        %v2392 = vrot.slane %v1870, 5
        %v2393 = vsel %vm1746, %v2391, %v2392
        %v2394 = vrot.slane %v2392, 4
        %v2395 = vrot.slane %v1896, 5
        %v2396 = vsel %vm1746, %v2394, %v2395
        %v2397 = vrot.slane %v2297, 5
        %v2398 = vrot.slane %v2397, 4
        %v2399 = vrot.slane %v1872, 5
        %v2400 = vsel %vm1746, %v2398, %v2399
        %v2401 = vrot.slane %v2399, 4
        %v2402 = vrot.slane %v1897, 5
        %v2403 = vsel %vm1746, %v2401, %v2402
        %v2404 = vrot.slane %v2298, 5
        %v2405 = vrot.slane %v2404, 4
        %v2406 = vrot.slane %v1874, 5
        %v2407 = vsel %vm1746, %v2405, %v2406
        %v2408 = vrot.slane %v2406, 4
        %v2409 = vrot.slane %v1898, 5
        %v2410 = vsel %vm1746, %v2408, %v2409
        %v2411 = vrot.slane %v2299, 5
        %v2412 = vrot.slane %v2411, 4
        %v2413 = vrot.slane %v1876, 5
        %v2414 = vsel %vm1746, %v2412, %v2413
        %v2415 = vrot.slane %v2413, 4
        %v2416 = vrot.slane %v1899, 5
        %v2417 = vsel %vm1746, %v2415, %v2416
        %v2418 = vrot.slane %v2300, 5
        %v2419 = vrot.slane %v2418, 4
        %v2420 = vrot.slane %v1878, 5
        %v2421 = vsel %vm1746, %v2419, %v2420
        %v2422 = vrot.slane %v2420, 4
        %v2423 = vrot.slane %v1900, 5
        %v2424 = vsel %vm1746, %v2422, %v2423
        %v2425 = vrot.slane %v2301, 5
        %v2426 = vrot.slane %v2425, 4
        %v2427 = vrot.slane %v1880, 5
        %v2428 = vsel %vm1746, %v2426, %v2427
        %v2429 = vrot.slane %v2427, 4
        %v2430 = vrot.slane %v1901, 5
        %v2431 = vsel %vm1746, %v2429, %v2430
        %v2432 = vrot.slane %v2302, 5
        %v2433 = vrot.slane %v2432, 4
        %v2434 = vrot.slane %v1882, 5
        %v2435 = vsel %vm1746, %v2433, %v2434
        %v2436 = vrot.slane %v2434, 4
        %v2437 = vrot.slane %v1902, 5
        %v2438 = vsel %vm1746, %v2436, %v2437
        %v2439 = vrot.slane %v2303, 5
        %v2440 = vrot.slane %v2439, 4
        %v2441 = vrot.slane %v1884, 5
        %v2442 = vsel %vm1746, %v2440, %v2441
        %v2443 = vrot.slane %v2441, 4
        %v2444 = vrot.slane %v1903, 5
        %v2445 = vsel %vm1746, %v2443, %v2444
        %v2446 = vrot.slane %v2304, 5
        %v2447 = vrot.slane %v2446, 4
        %v2448 = vrot.slane %v1886, 5
        %v2449 = vsel %vm1746, %v2447, %v2448
        %v2450 = vrot.slane %v2448, 4
        %v2451 = vrot.slane %v1904, 5
        %v2452 = vsel %vm1746, %v2450, %v2451
        %v2453 = vrot.slane %v2305, 5
        %v2454 = vrot.slane %v2453, 4
        %v2455 = vrot.slane %v1888, 5
        %v2456 = vsel %vm1746, %v2454, %v2455
        %v2457 = vrot.slane %v2455, 4
        %v2458 = vrot.slane %v1905, 5
        %v2459 = vsel %vm1746, %v2457, %v2458
        %v2460 = vrot.slane %v2306, 5
        %v2461 = vrot.slane %v2460, 4
        %v2462 = vrot.slane %v1890, 5
        %v2463 = vsel %vm1746, %v2461, %v2462
        %v2464 = vrot.slane %v2462, 4
        %v2465 = vrot.slane %v1906, 5
        %v2466 = vsel %vm1746, %v2464, %v2465
        %s2467 = scalar_lea.vmem [#allocation2], 24
        %v2468 = vld [vmem:[%s2467] sm:$0xf]
        %v2469 = vld [vmem:[%s2467 + $0x4] sm:$0xf]
        %v2470 = vld [vmem:[%s2467 + $0xc] sm:$0xf]
        %v2471 = vld [vmem:[%s2467 + $0x10] sm:$0xf]
        %v2472 = vld [vmem:[%s2467 + $0x18] sm:$0xf]
        %v2473 = vld [vmem:[%s2467 + $0x1c] sm:$0xf]
        %v2474 = vld [vmem:[%s2467 + $0x24] sm:$0xf]
        %v2475 = vld [vmem:[%s2467 + $0x28] sm:$0xf]
        %v2476 = vld [vmem:[%s2467 + $0x30] sm:$0xf]
        %v2477 = vld [vmem:[%s2467 + $0x34] sm:$0xf]
        %v2478 = vld [vmem:[%s2467 + $0x3c] sm:$0xf]
        %v2479 = vld [vmem:[%s2467 + $0x40] sm:$0xf]
        %v2480 = vld [vmem:[%s2467 + $0x48] sm:$0xf]
        %v2481 = vld [vmem:[%s2467 + $0x4c] sm:$0xf]
        %v2482 = vld [vmem:[%s2467 + $0x54] sm:$0xf]
        %v2483 = vld [vmem:[%s2467 + $0x58] sm:$0xf]
        %v2484 = vld [vmem:[%s2467 + $0x60] sm:$0xf]
        %v2485 = vld [vmem:[%s2467 + $0x64] sm:$0xf]
        %v2486 = vld [vmem:[%s2467 + $0x6c] sm:$0xf]
        %v2487 = vld [vmem:[%s2467 + $0x70] sm:$0xf]
        %v2488 = vld [vmem:[%s2467 + $0x78] sm:$0xf]
        %v2489 = vld [vmem:[%s2467 + $0x7c] sm:$0xf]
        %v2490 = vld [vmem:[%s2467 + $0x84] sm:$0xf]
        %v2491 = vld [vmem:[%s2467 + $0x88] sm:$0xf]
        %v2492 = vld [vmem:[%s2467 + $0x90] sm:$0xf]
        %v2493 = vld [vmem:[%s2467 + $0x94] sm:$0xf]
        %v2494 = vld [vmem:[%s2467 + $0x9c] sm:$0xf]
        %v2495 = vld [vmem:[%s2467 + $0xa0] sm:$0xf]
        %v2496 = vld [vmem:[%s2467 + $0xa8] sm:$0xf]
        %v2497 = vld [vmem:[%s2467 + $0xac] sm:$0xf]
        %v2498 = vld [vmem:[%s2467 + $0xb4] sm:$0xf]
        %v2499 = vld [vmem:[%s2467 + $0xb8] sm:$0xf]
        %v2500 = vld [vmem:[%s2467 + $0x8] sm:$0x1]
        %v2501 = vld [vmem:[%s2467 + $0x14] sm:$0x1]
        %v2502 = vld [vmem:[%s2467 + $0x20] sm:$0x1]
        %v2503 = vld [vmem:[%s2467 + $0x2c] sm:$0x1]
        %v2504 = vld [vmem:[%s2467 + $0x38] sm:$0x1]
        %v2505 = vld [vmem:[%s2467 + $0x44] sm:$0x1]
        %v2506 = vld [vmem:[%s2467 + $0x50] sm:$0x1]
        %v2507 = vld [vmem:[%s2467 + $0x5c] sm:$0x1]
        %v2508 = vld [vmem:[%s2467 + $0x68] sm:$0x1]
        %v2509 = vld [vmem:[%s2467 + $0x74] sm:$0x1]
        %v2510 = vld [vmem:[%s2467 + $0x80] sm:$0x1]
        %v2511 = vld [vmem:[%s2467 + $0x8c] sm:$0x1]
        %v2512 = vld [vmem:[%s2467 + $0x98] sm:$0x1]
        %v2513 = vld [vmem:[%s2467 + $0xa4] sm:$0x1]
        %v2514 = vld [vmem:[%s2467 + $0xb0] sm:$0x1]
        %v2515 = vld [vmem:[%s2467 + $0xbc] sm:$0x1]
        %v2517 = vshrl.u32 %v2468, 16
        %v2519 = vrot.slane %v2517, 4
        %v2520 = vshll.u32 %v2468, 16
        %v2522 = vrot.slane %v2520, 5
        %v2523 = vor.u32 %v2519, %v2522
        %v2524 = vrot.slane %v2523, 4
        %v2526 = vshll.u32 %v2469, 16
        %v2528 = vrot.slane %v2526, 5
        %v2529 = vsel %vm1295, %v2524, %v2528
        %v2530 = vshrl.u32 %v2469, 16
        %v2532 = vrot.slane %v2530, 4
        %v2533 = vor.u32 %v2532, %v2528
        %v2534 = vrot.slane %v2533, 4
        %v2536 = vshll.u32 %v2500, 16
        %v2538 = vrot.slane %v2536, 5
        %v2539 = vsel %vm1295, %v2534, %v2538
        %v2541 = vshrl.u32 %v2470, 16
        %v2543 = vrot.slane %v2541, 4
        %v2544 = vshll.u32 %v2470, 16
        %v2546 = vrot.slane %v2544, 5
        %v2547 = vor.u32 %v2543, %v2546
        %v2548 = vrot.slane %v2547, 4
        %v2550 = vshll.u32 %v2471, 16
        %v2552 = vrot.slane %v2550, 5
        %v2553 = vsel %vm1295, %v2548, %v2552
        %v2554 = vshrl.u32 %v2471, 16
        %v2556 = vrot.slane %v2554, 4
        %v2557 = vor.u32 %v2556, %v2552
        %v2558 = vrot.slane %v2557, 4
        %v2560 = vshll.u32 %v2501, 16
        %v2562 = vrot.slane %v2560, 5
        %v2563 = vsel %vm1295, %v2558, %v2562
        %v2565 = vshrl.u32 %v2472, 16
        %v2567 = vrot.slane %v2565, 4
        %v2568 = vshll.u32 %v2472, 16
        %v2570 = vrot.slane %v2568, 5
        %v2571 = vor.u32 %v2567, %v2570
        %v2572 = vrot.slane %v2571, 4
        %v2574 = vshll.u32 %v2473, 16
        %v2576 = vrot.slane %v2574, 5
        %v2577 = vsel %vm1295, %v2572, %v2576
        %v2578 = vshrl.u32 %v2473, 16
        %v2580 = vrot.slane %v2578, 4
        %v2581 = vor.u32 %v2580, %v2576
        %v2582 = vrot.slane %v2581, 4
        %v2584 = vshll.u32 %v2502, 16
        %v2586 = vrot.slane %v2584, 5
        %v2587 = vsel %vm1295, %v2582, %v2586
        %v2589 = vshrl.u32 %v2474, 16
        %v2591 = vrot.slane %v2589, 4
        %v2592 = vshll.u32 %v2474, 16
        %v2594 = vrot.slane %v2592, 5
        %v2595 = vor.u32 %v2591, %v2594
        %v2596 = vrot.slane %v2595, 4
        %v2598 = vshll.u32 %v2475, 16
        %v2600 = vrot.slane %v2598, 5
        %v2601 = vsel %vm1295, %v2596, %v2600
        %v2602 = vshrl.u32 %v2475, 16
        %v2604 = vrot.slane %v2602, 4
        %v2605 = vor.u32 %v2604, %v2600
        %v2606 = vrot.slane %v2605, 4
        %v2608 = vshll.u32 %v2503, 16
        %v2610 = vrot.slane %v2608, 5
        %v2611 = vsel %vm1295, %v2606, %v2610
        %v2613 = vshrl.u32 %v2476, 16
        %v2615 = vrot.slane %v2613, 4
        %v2616 = vshll.u32 %v2476, 16
        %v2618 = vrot.slane %v2616, 5
        %v2619 = vor.u32 %v2615, %v2618
        %v2620 = vrot.slane %v2619, 4
        %v2622 = vshll.u32 %v2477, 16
        %v2624 = vrot.slane %v2622, 5
        %v2625 = vsel %vm1295, %v2620, %v2624
        %v2626 = vshrl.u32 %v2477, 16
        %v2628 = vrot.slane %v2626, 4
        %v2629 = vor.u32 %v2628, %v2624
        %v2630 = vrot.slane %v2629, 4
        %v2632 = vshll.u32 %v2504, 16
        %v2634 = vrot.slane %v2632, 5
        %v2635 = vsel %vm1295, %v2630, %v2634
        %v2637 = vshrl.u32 %v2478, 16
        %v2639 = vrot.slane %v2637, 4
        %v2640 = vshll.u32 %v2478, 16
        %v2642 = vrot.slane %v2640, 5
        %v2643 = vor.u32 %v2639, %v2642
        %v2644 = vrot.slane %v2643, 4
        %v2646 = vshll.u32 %v2479, 16
        %v2648 = vrot.slane %v2646, 5
        %v2649 = vsel %vm1295, %v2644, %v2648
        %v2650 = vshrl.u32 %v2479, 16
        %v2652 = vrot.slane %v2650, 4
        %v2653 = vor.u32 %v2652, %v2648
        %v2654 = vrot.slane %v2653, 4
        %v2656 = vshll.u32 %v2505, 16
        %v2658 = vrot.slane %v2656, 5
        %v2659 = vsel %vm1295, %v2654, %v2658
        %v2661 = vshrl.u32 %v2480, 16
        %v2663 = vrot.slane %v2661, 4
        %v2664 = vshll.u32 %v2480, 16
        %v2666 = vrot.slane %v2664, 5
        %v2667 = vor.u32 %v2663, %v2666
        %v2668 = vrot.slane %v2667, 4
        %v2670 = vshll.u32 %v2481, 16
        %v2672 = vrot.slane %v2670, 5
        %v2673 = vsel %vm1295, %v2668, %v2672
        %v2674 = vshrl.u32 %v2481, 16
        %v2676 = vrot.slane %v2674, 4
        %v2677 = vor.u32 %v2676, %v2672
        %v2678 = vrot.slane %v2677, 4
        %v2680 = vshll.u32 %v2506, 16
        %v2682 = vrot.slane %v2680, 5
        %v2683 = vsel %vm1295, %v2678, %v2682
        %v2685 = vshrl.u32 %v2482, 16
        %v2687 = vrot.slane %v2685, 4
        %v2688 = vshll.u32 %v2482, 16
        %v2690 = vrot.slane %v2688, 5
        %v2691 = vor.u32 %v2687, %v2690
        %v2692 = vrot.slane %v2691, 4
        %v2694 = vshll.u32 %v2483, 16
        %v2696 = vrot.slane %v2694, 5
        %v2697 = vsel %vm1295, %v2692, %v2696
        %v2698 = vshrl.u32 %v2483, 16
        %v2700 = vrot.slane %v2698, 4
        %v2701 = vor.u32 %v2700, %v2696
        %v2702 = vrot.slane %v2701, 4
        %v2704 = vshll.u32 %v2507, 16
        %v2706 = vrot.slane %v2704, 5
        %v2707 = vsel %vm1295, %v2702, %v2706
        %v2709 = vshrl.u32 %v2484, 16
        %v2711 = vrot.slane %v2709, 4
        %v2712 = vshll.u32 %v2484, 16
        %v2714 = vrot.slane %v2712, 5
        %v2715 = vor.u32 %v2711, %v2714
        %v2716 = vrot.slane %v2715, 4
        %v2718 = vshll.u32 %v2485, 16
        %v2720 = vrot.slane %v2718, 5
        %v2721 = vsel %vm1295, %v2716, %v2720
        %v2722 = vshrl.u32 %v2485, 16
        %v2724 = vrot.slane %v2722, 4
        %v2725 = vor.u32 %v2724, %v2720
        %v2726 = vrot.slane %v2725, 4
        %v2728 = vshll.u32 %v2508, 16
        %v2730 = vrot.slane %v2728, 5
        %v2731 = vsel %vm1295, %v2726, %v2730
        %v2733 = vshrl.u32 %v2486, 16
        %v2735 = vrot.slane %v2733, 4
        %v2736 = vshll.u32 %v2486, 16
        %v2738 = vrot.slane %v2736, 5
        %v2739 = vor.u32 %v2735, %v2738
        %v2740 = vrot.slane %v2739, 4
        %v2742 = vshll.u32 %v2487, 16
        %v2744 = vrot.slane %v2742, 5
        %v2745 = vsel %vm1295, %v2740, %v2744
        %v2746 = vshrl.u32 %v2487, 16
        %v2748 = vrot.slane %v2746, 4
        %v2749 = vor.u32 %v2748, %v2744
        %v2750 = vrot.slane %v2749, 4
        %v2752 = vshll.u32 %v2509, 16
        %v2754 = vrot.slane %v2752, 5
        %v2755 = vsel %vm1295, %v2750, %v2754
        %v2757 = vshrl.u32 %v2488, 16
        %v2759 = vrot.slane %v2757, 4
        %v2760 = vshll.u32 %v2488, 16
        %v2762 = vrot.slane %v2760, 5
        %v2763 = vor.u32 %v2759, %v2762
        %v2764 = vrot.slane %v2763, 4
        %v2766 = vshll.u32 %v2489, 16
        %v2768 = vrot.slane %v2766, 5
        %v2769 = vsel %vm1295, %v2764, %v2768
        %v2770 = vshrl.u32 %v2489, 16
        %v2772 = vrot.slane %v2770, 4
        %v2773 = vor.u32 %v2772, %v2768
        %v2774 = vrot.slane %v2773, 4
        %v2776 = vshll.u32 %v2510, 16
        %v2778 = vrot.slane %v2776, 5
        %v2779 = vsel %vm1295, %v2774, %v2778
        %v2781 = vshrl.u32 %v2490, 16
        %v2783 = vrot.slane %v2781, 4
        %v2784 = vshll.u32 %v2490, 16
        %v2786 = vrot.slane %v2784, 5
        %v2787 = vor.u32 %v2783, %v2786
        %v2788 = vrot.slane %v2787, 4
        %v2790 = vshll.u32 %v2491, 16
        %v2792 = vrot.slane %v2790, 5
        %v2793 = vsel %vm1295, %v2788, %v2792
        %v2794 = vshrl.u32 %v2491, 16
        %v2796 = vrot.slane %v2794, 4
        %v2797 = vor.u32 %v2796, %v2792
        %v2798 = vrot.slane %v2797, 4
        %v2800 = vshll.u32 %v2511, 16
        %v2802 = vrot.slane %v2800, 5
        %v2803 = vsel %vm1295, %v2798, %v2802
        %v2805 = vshrl.u32 %v2492, 16
        %v2807 = vrot.slane %v2805, 4
        %v2808 = vshll.u32 %v2492, 16
        %v2810 = vrot.slane %v2808, 5
        %v2811 = vor.u32 %v2807, %v2810
        %v2812 = vrot.slane %v2811, 4
        %v2814 = vshll.u32 %v2493, 16
        %v2816 = vrot.slane %v2814, 5
        %v2817 = vsel %vm1295, %v2812, %v2816
        %v2818 = vshrl.u32 %v2493, 16
        %v2820 = vrot.slane %v2818, 4
        %v2821 = vor.u32 %v2820, %v2816
        %v2822 = vrot.slane %v2821, 4
        %v2824 = vshll.u32 %v2512, 16
        %v2826 = vrot.slane %v2824, 5
        %v2827 = vsel %vm1295, %v2822, %v2826
        %v2829 = vshrl.u32 %v2494, 16
        %v2831 = vrot.slane %v2829, 4
        %v2832 = vshll.u32 %v2494, 16
        %v2834 = vrot.slane %v2832, 5
        %v2835 = vor.u32 %v2831, %v2834
        %v2836 = vrot.slane %v2835, 4
        %v2838 = vshll.u32 %v2495, 16
        %v2840 = vrot.slane %v2838, 5
        %v2841 = vsel %vm1295, %v2836, %v2840
        %v2842 = vshrl.u32 %v2495, 16
        %v2844 = vrot.slane %v2842, 4
        %v2845 = vor.u32 %v2844, %v2840
        %v2846 = vrot.slane %v2845, 4
        %v2848 = vshll.u32 %v2513, 16
        %v2850 = vrot.slane %v2848, 5
        %v2851 = vsel %vm1295, %v2846, %v2850
        %v2853 = vshrl.u32 %v2496, 16
        %v2855 = vrot.slane %v2853, 4
        %v2856 = vshll.u32 %v2496, 16
        %v2858 = vrot.slane %v2856, 5
        %v2859 = vor.u32 %v2855, %v2858
        %v2860 = vrot.slane %v2859, 4
        %v2862 = vshll.u32 %v2497, 16
        %v2864 = vrot.slane %v2862, 5
        %v2865 = vsel %vm1295, %v2860, %v2864
        %v2866 = vshrl.u32 %v2497, 16
        %v2868 = vrot.slane %v2866, 4
        %v2869 = vor.u32 %v2868, %v2864
        %v2870 = vrot.slane %v2869, 4
        %v2872 = vshll.u32 %v2514, 16
        %v2874 = vrot.slane %v2872, 5
        %v2875 = vsel %vm1295, %v2870, %v2874
        %v2877 = vshrl.u32 %v2498, 16
        %v2879 = vrot.slane %v2877, 4
        %v2880 = vshll.u32 %v2498, 16
        %v2882 = vrot.slane %v2880, 5
        %v2883 = vor.u32 %v2879, %v2882
        %v2884 = vrot.slane %v2883, 4
        %v2886 = vshll.u32 %v2499, 16
        %v2888 = vrot.slane %v2886, 5
        %v2889 = vsel %vm1295, %v2884, %v2888
        %v2890 = vshrl.u32 %v2499, 16
        %v2892 = vrot.slane %v2890, 4
        %v2893 = vor.u32 %v2892, %v2888
        %v2894 = vrot.slane %v2893, 4
        %v2896 = vshll.u32 %v2515, 16
        %v2898 = vrot.slane %v2896, 5
        %v2899 = vsel %vm1295, %v2894, %v2898
        %v2900 = vld [vmem:[%s2467] sm:$0xe]
        %v2901 = vld [vmem:[%s2467 + $0xc] sm:$0xe]
        %v2902 = vld [vmem:[%s2467 + $0x18] sm:$0xe]
        %v2903 = vld [vmem:[%s2467 + $0x24] sm:$0xe]
        %v2904 = vld [vmem:[%s2467 + $0x30] sm:$0xe]
        %v2905 = vld [vmem:[%s2467 + $0x3c] sm:$0xe]
        %v2906 = vld [vmem:[%s2467 + $0x48] sm:$0xe]
        %v2907 = vld [vmem:[%s2467 + $0x54] sm:$0xe]
        %v2908 = vld [vmem:[%s2467 + $0x60] sm:$0xe]
        %v2909 = vld [vmem:[%s2467 + $0x6c] sm:$0xe]
        %v2910 = vld [vmem:[%s2467 + $0x78] sm:$0xe]
        %v2911 = vld [vmem:[%s2467 + $0x84] sm:$0xe]
        %v2912 = vld [vmem:[%s2467 + $0x90] sm:$0xe]
        %v2913 = vld [vmem:[%s2467 + $0x9c] sm:$0xe]
        %v2914 = vld [vmem:[%s2467 + $0xa8] sm:$0xe]
        %v2915 = vld [vmem:[%s2467 + $0xb4] sm:$0xe]
        %v2964 = vrot.slane %v2900, 5
        %v2965 = vrot.slane %v2964, 4
        %v2966 = vrot.slane %v2469, 5
        %v2967 = vsel %vm1746, %v2965, %v2966
        %v2968 = vrot.slane %v2966, 4
        %v2969 = vrot.slane %v2500, 5
        %v2970 = vsel %vm1746, %v2968, %v2969
        %v2971 = vrot.slane %v2901, 5
        %v2972 = vrot.slane %v2971, 4
        %v2973 = vrot.slane %v2471, 5
        %v2974 = vsel %vm1746, %v2972, %v2973
        %v2975 = vrot.slane %v2973, 4
        %v2976 = vrot.slane %v2501, 5
        %v2977 = vsel %vm1746, %v2975, %v2976
        %v2978 = vrot.slane %v2902, 5
        %v2979 = vrot.slane %v2978, 4
        %v2980 = vrot.slane %v2473, 5
        %v2981 = vsel %vm1746, %v2979, %v2980
        %v2982 = vrot.slane %v2980, 4
        %v2983 = vrot.slane %v2502, 5
        %v2984 = vsel %vm1746, %v2982, %v2983
        %v2985 = vrot.slane %v2903, 5
        %v2986 = vrot.slane %v2985, 4
        %v2987 = vrot.slane %v2475, 5
        %v2988 = vsel %vm1746, %v2986, %v2987
        %v2989 = vrot.slane %v2987, 4
        %v2990 = vrot.slane %v2503, 5
        %v2991 = vsel %vm1746, %v2989, %v2990
        %v2992 = vrot.slane %v2904, 5
        %v2993 = vrot.slane %v2992, 4
        %v2994 = vrot.slane %v2477, 5
        %v2995 = vsel %vm1746, %v2993, %v2994
        %v2996 = vrot.slane %v2994, 4
        %v2997 = vrot.slane %v2504, 5
        %v2998 = vsel %vm1746, %v2996, %v2997
        %v2999 = vrot.slane %v2905, 5
        %v3000 = vrot.slane %v2999, 4
        %v3001 = vrot.slane %v2479, 5
        %v3002 = vsel %vm1746, %v3000, %v3001
        %v3003 = vrot.slane %v3001, 4
        %v3004 = vrot.slane %v2505, 5
        %v3005 = vsel %vm1746, %v3003, %v3004
        %v3006 = vrot.slane %v2906, 5
        %v3007 = vrot.slane %v3006, 4
        %v3008 = vrot.slane %v2481, 5
        %v3009 = vsel %vm1746, %v3007, %v3008
        %v3010 = vrot.slane %v3008, 4
        %v3011 = vrot.slane %v2506, 5
        %v3012 = vsel %vm1746, %v3010, %v3011
        %v3013 = vrot.slane %v2907, 5
        %v3014 = vrot.slane %v3013, 4
        %v3015 = vrot.slane %v2483, 5
        %v3016 = vsel %vm1746, %v3014, %v3015
        %v3017 = vrot.slane %v3015, 4
        %v3018 = vrot.slane %v2507, 5
        %v3019 = vsel %vm1746, %v3017, %v3018
        %v3020 = vrot.slane %v2908, 5
        %v3021 = vrot.slane %v3020, 4
        %v3022 = vrot.slane %v2485, 5
        %v3023 = vsel %vm1746, %v3021, %v3022
        %v3024 = vrot.slane %v3022, 4
        %v3025 = vrot.slane %v2508, 5
        %v3026 = vsel %vm1746, %v3024, %v3025
        %v3027 = vrot.slane %v2909, 5
        %v3028 = vrot.slane %v3027, 4
        %v3029 = vrot.slane %v2487, 5
        %v3030 = vsel %vm1746, %v3028, %v3029
        %v3031 = vrot.slane %v3029, 4
        %v3032 = vrot.slane %v2509, 5
        %v3033 = vsel %vm1746, %v3031, %v3032
        %v3034 = vrot.slane %v2910, 5
        %v3035 = vrot.slane %v3034, 4
        %v3036 = vrot.slane %v2489, 5
        %v3037 = vsel %vm1746, %v3035, %v3036
        %v3038 = vrot.slane %v3036, 4
        %v3039 = vrot.slane %v2510, 5
        %v3040 = vsel %vm1746, %v3038, %v3039
        %v3041 = vrot.slane %v2911, 5
        %v3042 = vrot.slane %v3041, 4
        %v3043 = vrot.slane %v2491, 5
        %v3044 = vsel %vm1746, %v3042, %v3043
        %v3045 = vrot.slane %v3043, 4
        %v3046 = vrot.slane %v2511, 5
        %v3047 = vsel %vm1746, %v3045, %v3046
        %v3048 = vrot.slane %v2912, 5
        %v3049 = vrot.slane %v3048, 4
        %v3050 = vrot.slane %v2493, 5
        %v3051 = vsel %vm1746, %v3049, %v3050
        %v3052 = vrot.slane %v3050, 4
        %v3053 = vrot.slane %v2512, 5
        %v3054 = vsel %vm1746, %v3052, %v3053
        %v3055 = vrot.slane %v2913, 5
        %v3056 = vrot.slane %v3055, 4
        %v3057 = vrot.slane %v2495, 5
        %v3058 = vsel %vm1746, %v3056, %v3057
        %v3059 = vrot.slane %v3057, 4
        %v3060 = vrot.slane %v2513, 5
        %v3061 = vsel %vm1746, %v3059, %v3060
        %v3062 = vrot.slane %v2914, 5
        %v3063 = vrot.slane %v3062, 4
        %v3064 = vrot.slane %v2497, 5
        %v3065 = vsel %vm1746, %v3063, %v3064
        %v3066 = vrot.slane %v3064, 4
        %v3067 = vrot.slane %v2514, 5
        %v3068 = vsel %vm1746, %v3066, %v3067
        %v3069 = vrot.slane %v2915, 5
        %v3070 = vrot.slane %v3069, 4
        %v3071 = vrot.slane %v2499, 5
        %v3072 = vsel %vm1746, %v3070, %v3071
        %v3073 = vrot.slane %v3071, 4
        %v3074 = vrot.slane %v2515, 5
        %v3075 = vsel %vm1746, %v3073, %v3074
        %v3092 = vunpack.c.l.b16 %v1245
        %v3093 = vunpack.c.l.b16 %v1246
        %v3094 = vunpack.c.l.b16 %v1247
        %v3095 = vunpack.c.l.b16 %v1248
        %v3096 = vunpack.c.l.b16 %v1249
        %v3097 = vunpack.c.l.b16 %v1250
        %v3098 = vunpack.c.l.b16 %v1251
        %v3099 = vunpack.c.l.b16 %v1252
        %v3100 = vunpack.c.l.b16 %v1253
        %v3101 = vunpack.c.l.b16 %v1254
        %v3102 = vunpack.c.l.b16 %v1255
        %v3103 = vunpack.c.l.b16 %v1256
        %v3104 = vunpack.c.l.b16 %v1257
        %v3105 = vunpack.c.l.b16 %v1258
        %v3106 = vunpack.c.l.b16 %v1259
        %v3107 = vunpack.c.l.b16 %v1260
        %v3108 = vunpack.c.l.b16 %v1261
        %v3109 = vunpack.c.l.b16 %v1262
        %v3110 = vunpack.c.l.b16 %v1263
        %v3111 = vunpack.c.l.b16 %v1264
        %v3112 = vunpack.c.l.b16 %v1265
        %v3113 = vunpack.c.l.b16 %v1266
        %v3114 = vunpack.c.l.b16 %v1267
        %v3115 = vunpack.c.l.b16 %v1268
        %v3116 = vunpack.c.l.b16 %v1269
        %v3117 = vunpack.c.l.b16 %v1270
        %v3118 = vunpack.c.l.b16 %v1271
        %v3119 = vunpack.c.l.b16 %v1272
        %v3120 = vunpack.c.l.b16 %v1273
        %v3121 = vunpack.c.l.b16 %v1274
        %v3122 = vunpack.c.l.b16 %v1275
        %v3123 = vunpack.c.l.b16 %v1276
        %v3124 = vpack.c.b16 %v3093, %v3092
        %v3125 = vpack.c.b16 %v3095, %v3094
        %v3126 = vpack.c.b16 %v3097, %v3096
        %v3127 = vpack.c.b16 %v3099, %v3098
        %v3128 = vpack.c.b16 %v3101, %v3100
        %v3129 = vpack.c.b16 %v3103, %v3102
        %v3130 = vpack.c.b16 %v3105, %v3104
        %v3131 = vpack.c.b16 %v3107, %v3106
        %v3132 = vpack.c.b16 %v3109, %v3108
        %v3133 = vpack.c.b16 %v3111, %v3110
        %v3134 = vpack.c.b16 %v3113, %v3112
        %v3135 = vpack.c.b16 %v3115, %v3114
        %v3136 = vpack.c.b16 %v3117, %v3116
        %v3137 = vpack.c.b16 %v3119, %v3118
        %v3138 = vpack.c.b16 %v3121, %v3120
        %v3139 = vpack.c.b16 %v3123, %v3122
        %v3156 = vunpack.c.l.b16 %v1309
        %v3157 = vunpack.c.l.b16 %v1319
        %v3158 = vunpack.c.l.b16 %v1333
        %v3159 = vunpack.c.l.b16 %v1343
        %v3160 = vunpack.c.l.b16 %v1357
        %v3161 = vunpack.c.l.b16 %v1367
        %v3162 = vunpack.c.l.b16 %v1381
        %v3163 = vunpack.c.l.b16 %v1391
        %v3164 = vunpack.c.l.b16 %v1405
        %v3165 = vunpack.c.l.b16 %v1415
        %v3166 = vunpack.c.l.b16 %v1429
        %v3167 = vunpack.c.l.b16 %v1439
        %v3168 = vunpack.c.l.b16 %v1453
        %v3169 = vunpack.c.l.b16 %v1463
        %v3170 = vunpack.c.l.b16 %v1477
        %v3171 = vunpack.c.l.b16 %v1487
        %v3172 = vunpack.c.l.b16 %v1501
        %v3173 = vunpack.c.l.b16 %v1511
        %v3174 = vunpack.c.l.b16 %v1525
        %v3175 = vunpack.c.l.b16 %v1535
        %v3176 = vunpack.c.l.b16 %v1549
        %v3177 = vunpack.c.l.b16 %v1559
        %v3178 = vunpack.c.l.b16 %v1573
        %v3179 = vunpack.c.l.b16 %v1583
        %v3180 = vunpack.c.l.b16 %v1597
        %v3181 = vunpack.c.l.b16 %v1607
        %v3182 = vunpack.c.l.b16 %v1621
        %v3183 = vunpack.c.l.b16 %v1631
        %v3184 = vunpack.c.l.b16 %v1645
        %v3185 = vunpack.c.l.b16 %v1655
        %v3186 = vunpack.c.l.b16 %v1669
        %v3187 = vunpack.c.l.b16 %v1679
        %v3188 = vpack.c.b16 %v3157, %v3156
        %v3189 = vpack.c.b16 %v3159, %v3158
        %v3190 = vpack.c.b16 %v3161, %v3160
        %v3191 = vpack.c.b16 %v3163, %v3162
        %v3192 = vpack.c.b16 %v3165, %v3164
        %v3193 = vpack.c.b16 %v3167, %v3166
        %v3194 = vpack.c.b16 %v3169, %v3168
        %v3195 = vpack.c.b16 %v3171, %v3170
        %v3196 = vpack.c.b16 %v3173, %v3172
        %v3197 = vpack.c.b16 %v3175, %v3174
        %v3198 = vpack.c.b16 %v3177, %v3176
        %v3199 = vpack.c.b16 %v3179, %v3178
        %v3200 = vpack.c.b16 %v3181, %v3180
        %v3201 = vpack.c.b16 %v3183, %v3182
        %v3202 = vpack.c.b16 %v3185, %v3184
        %v3203 = vpack.c.b16 %v3187, %v3186
        %v3220 = vunpack.c.l.b16 %v1750
        %v3221 = vunpack.c.l.b16 %v1753
        %v3222 = vunpack.c.l.b16 %v1757
        %v3223 = vunpack.c.l.b16 %v1760
        %v3224 = vunpack.c.l.b16 %v1764
        %v3225 = vunpack.c.l.b16 %v1767
        %v3226 = vunpack.c.l.b16 %v1771
        %v3227 = vunpack.c.l.b16 %v1774
        %v3228 = vunpack.c.l.b16 %v1778
        %v3229 = vunpack.c.l.b16 %v1781
        %v3230 = vunpack.c.l.b16 %v1785
        %v3231 = vunpack.c.l.b16 %v1788
        %v3232 = vunpack.c.l.b16 %v1792
        %v3233 = vunpack.c.l.b16 %v1795
        %v3234 = vunpack.c.l.b16 %v1799
        %v3235 = vunpack.c.l.b16 %v1802
        %v3236 = vunpack.c.l.b16 %v1806
        %v3237 = vunpack.c.l.b16 %v1809
        %v3238 = vunpack.c.l.b16 %v1813
        %v3239 = vunpack.c.l.b16 %v1816
        %v3240 = vunpack.c.l.b16 %v1820
        %v3241 = vunpack.c.l.b16 %v1823
        %v3242 = vunpack.c.l.b16 %v1827
        %v3243 = vunpack.c.l.b16 %v1830
        %v3244 = vunpack.c.l.b16 %v1834
        %v3245 = vunpack.c.l.b16 %v1837
        %v3246 = vunpack.c.l.b16 %v1841
        %v3247 = vunpack.c.l.b16 %v1844
        %v3248 = vunpack.c.l.b16 %v1848
        %v3249 = vunpack.c.l.b16 %v1851
        %v3250 = vunpack.c.l.b16 %v1855
        %v3251 = vunpack.c.l.b16 %v1858
        %v3252 = vpack.c.b16 %v3221, %v3220
        %v3253 = vpack.c.b16 %v3223, %v3222
        %v3254 = vpack.c.b16 %v3225, %v3224
        %v3255 = vpack.c.b16 %v3227, %v3226
        %v3256 = vpack.c.b16 %v3229, %v3228
        %v3257 = vpack.c.b16 %v3231, %v3230
        %v3258 = vpack.c.b16 %v3233, %v3232
        %v3259 = vpack.c.b16 %v3235, %v3234
        %v3260 = vpack.c.b16 %v3237, %v3236
        %v3261 = vpack.c.b16 %v3239, %v3238
        %v3262 = vpack.c.b16 %v3241, %v3240
        %v3263 = vpack.c.b16 %v3243, %v3242
        %v3264 = vpack.c.b16 %v3245, %v3244
        %v3265 = vpack.c.b16 %v3247, %v3246
        %v3266 = vpack.c.b16 %v3249, %v3248
        %v3267 = vpack.c.b16 %v3251, %v3250
        %v3300 = vunpack.c.l.b16 %v1859
        %v3301 = vunpack.c.l.b16 %v1860
        %v3302 = vunpack.c.l.b16 %v1861
        %v3303 = vunpack.c.l.b16 %v1862
        %v3304 = vunpack.c.l.b16 %v1863
        %v3305 = vunpack.c.l.b16 %v1864
        %v3306 = vunpack.c.l.b16 %v1865
        %v3307 = vunpack.c.l.b16 %v1866
        %v3308 = vunpack.c.l.b16 %v1867
        %v3309 = vunpack.c.l.b16 %v1868
        %v3310 = vunpack.c.l.b16 %v1869
        %v3311 = vunpack.c.l.b16 %v1870
        %v3312 = vunpack.c.l.b16 %v1871
        %v3313 = vunpack.c.l.b16 %v1872
        %v3314 = vunpack.c.l.b16 %v1873
        %v3315 = vunpack.c.l.b16 %v1874
        %v3316 = vunpack.c.l.b16 %v1875
        %v3317 = vunpack.c.l.b16 %v1876
        %v3318 = vunpack.c.l.b16 %v1877
        %v3319 = vunpack.c.l.b16 %v1878
        %v3320 = vunpack.c.l.b16 %v1879
        %v3321 = vunpack.c.l.b16 %v1880
        %v3322 = vunpack.c.l.b16 %v1881
        %v3323 = vunpack.c.l.b16 %v1882
        %v3324 = vunpack.c.l.b16 %v1883
        %v3325 = vunpack.c.l.b16 %v1884
        %v3326 = vunpack.c.l.b16 %v1885
        %v3327 = vunpack.c.l.b16 %v1886
        %v3328 = vunpack.c.l.b16 %v1887
        %v3329 = vunpack.c.l.b16 %v1888
        %v3330 = vunpack.c.l.b16 %v1889
        %v3331 = vunpack.c.l.b16 %v1890
        %v3332 = vpack.c.b16 %v3301, %v3300
        %v3333 = vpack.c.b16 %v3303, %v3302
        %v3334 = vpack.c.b16 %v3305, %v3304
        %v3335 = vpack.c.b16 %v3307, %v3306
        %v3336 = vpack.c.b16 %v3309, %v3308
        %v3337 = vpack.c.b16 %v3311, %v3310
        %v3338 = vpack.c.b16 %v3313, %v3312
        %v3339 = vpack.c.b16 %v3315, %v3314
        %v3340 = vpack.c.b16 %v3317, %v3316
        %v3341 = vpack.c.b16 %v3319, %v3318
        %v3342 = vpack.c.b16 %v3321, %v3320
        %v3343 = vpack.c.b16 %v3323, %v3322
        %v3344 = vpack.c.b16 %v3325, %v3324
        %v3345 = vpack.c.b16 %v3327, %v3326
        %v3346 = vpack.c.b16 %v3329, %v3328
        %v3347 = vpack.c.b16 %v3331, %v3330
        %v3364 = vunpack.c.l.b16 %v1920
        %v3365 = vunpack.c.l.b16 %v1930
        %v3366 = vunpack.c.l.b16 %v1944
        %v3367 = vunpack.c.l.b16 %v1954
        %v3368 = vunpack.c.l.b16 %v1968
        %v3369 = vunpack.c.l.b16 %v1978
        %v3370 = vunpack.c.l.b16 %v1992
        %v3371 = vunpack.c.l.b16 %v2002
        %v3372 = vunpack.c.l.b16 %v2016
        %v3373 = vunpack.c.l.b16 %v2026
        %v3374 = vunpack.c.l.b16 %v2040
        %v3375 = vunpack.c.l.b16 %v2050
        %v3376 = vunpack.c.l.b16 %v2064
        %v3377 = vunpack.c.l.b16 %v2074
        %v3378 = vunpack.c.l.b16 %v2088
        %v3379 = vunpack.c.l.b16 %v2098
        %v3380 = vunpack.c.l.b16 %v2112
        %v3381 = vunpack.c.l.b16 %v2122
        %v3382 = vunpack.c.l.b16 %v2136
        %v3383 = vunpack.c.l.b16 %v2146
        %v3384 = vunpack.c.l.b16 %v2160
        %v3385 = vunpack.c.l.b16 %v2170
        %v3386 = vunpack.c.l.b16 %v2184
        %v3387 = vunpack.c.l.b16 %v2194
        %v3388 = vunpack.c.l.b16 %v2208
        %v3389 = vunpack.c.l.b16 %v2218
        %v3390 = vunpack.c.l.b16 %v2232
        %v3391 = vunpack.c.l.b16 %v2242
        %v3392 = vunpack.c.l.b16 %v2256
        %v3393 = vunpack.c.l.b16 %v2266
        %v3394 = vunpack.c.l.b16 %v2280
        %v3395 = vunpack.c.l.b16 %v2290
        %v3396 = vpack.c.b16 %v3365, %v3364
        %v3397 = vpack.c.b16 %v3367, %v3366
        %v3398 = vpack.c.b16 %v3369, %v3368
        %v3399 = vpack.c.b16 %v3371, %v3370
        %v3400 = vpack.c.b16 %v3373, %v3372
        %v3401 = vpack.c.b16 %v3375, %v3374
        %v3402 = vpack.c.b16 %v3377, %v3376
        %v3403 = vpack.c.b16 %v3379, %v3378
        %v3404 = vpack.c.b16 %v3381, %v3380
        %v3405 = vpack.c.b16 %v3383, %v3382
        %v3406 = vpack.c.b16 %v3385, %v3384
        %v3407 = vpack.c.b16 %v3387, %v3386
        %v3408 = vpack.c.b16 %v3389, %v3388
        %v3409 = vpack.c.b16 %v3391, %v3390
        %v3410 = vpack.c.b16 %v3393, %v3392
        %v3411 = vpack.c.b16 %v3395, %v3394
        %v3428 = vunpack.c.l.b16 %v2358
        %v3429 = vunpack.c.l.b16 %v2361
        %v3430 = vunpack.c.l.b16 %v2365
        %v3431 = vunpack.c.l.b16 %v2368
        %v3432 = vunpack.c.l.b16 %v2372
        %v3433 = vunpack.c.l.b16 %v2375
        %v3434 = vunpack.c.l.b16 %v2379
        %v3435 = vunpack.c.l.b16 %v2382
        %v3436 = vunpack.c.l.b16 %v2386
        %v3437 = vunpack.c.l.b16 %v2389
        %v3438 = vunpack.c.l.b16 %v2393
        %v3439 = vunpack.c.l.b16 %v2396
        %v3440 = vunpack.c.l.b16 %v2400
        %v3441 = vunpack.c.l.b16 %v2403
        %v3442 = vunpack.c.l.b16 %v2407
        %v3443 = vunpack.c.l.b16 %v2410
        %v3444 = vunpack.c.l.b16 %v2414
        %v3445 = vunpack.c.l.b16 %v2417
        %v3446 = vunpack.c.l.b16 %v2421
        %v3447 = vunpack.c.l.b16 %v2424
        %v3448 = vunpack.c.l.b16 %v2428
        %v3449 = vunpack.c.l.b16 %v2431
        %v3450 = vunpack.c.l.b16 %v2435
        %v3451 = vunpack.c.l.b16 %v2438
        %v3452 = vunpack.c.l.b16 %v2442
        %v3453 = vunpack.c.l.b16 %v2445
        %v3454 = vunpack.c.l.b16 %v2449
        %v3455 = vunpack.c.l.b16 %v2452
        %v3456 = vunpack.c.l.b16 %v2456
        %v3457 = vunpack.c.l.b16 %v2459
        %v3458 = vunpack.c.l.b16 %v2463
        %v3459 = vunpack.c.l.b16 %v2466
        %v3460 = vpack.c.b16 %v3429, %v3428
        %v3461 = vpack.c.b16 %v3431, %v3430
        %v3462 = vpack.c.b16 %v3433, %v3432
        %v3463 = vpack.c.b16 %v3435, %v3434
        %v3464 = vpack.c.b16 %v3437, %v3436
        %v3465 = vpack.c.b16 %v3439, %v3438
        %v3466 = vpack.c.b16 %v3441, %v3440
        %v3467 = vpack.c.b16 %v3443, %v3442
        %v3468 = vpack.c.b16 %v3445, %v3444
        %v3469 = vpack.c.b16 %v3447, %v3446
        %v3470 = vpack.c.b16 %v3449, %v3448
        %v3471 = vpack.c.b16 %v3451, %v3450
        %v3472 = vpack.c.b16 %v3453, %v3452
        %v3473 = vpack.c.b16 %v3455, %v3454
        %v3474 = vpack.c.b16 %v3457, %v3456
        %v3475 = vpack.c.b16 %v3459, %v3458
        %v3508 = vunpack.c.l.b16 %v2468
        %v3509 = vunpack.c.l.b16 %v2469
        %v3510 = vunpack.c.l.b16 %v2470
        %v3511 = vunpack.c.l.b16 %v2471
        %v3512 = vunpack.c.l.b16 %v2472
        %v3513 = vunpack.c.l.b16 %v2473
        %v3514 = vunpack.c.l.b16 %v2474
        %v3515 = vunpack.c.l.b16 %v2475
        %v3516 = vunpack.c.l.b16 %v2476
        %v3517 = vunpack.c.l.b16 %v2477
        %v3518 = vunpack.c.l.b16 %v2478
        %v3519 = vunpack.c.l.b16 %v2479
        %v3520 = vunpack.c.l.b16 %v2480
        %v3521 = vunpack.c.l.b16 %v2481
        %v3522 = vunpack.c.l.b16 %v2482
        %v3523 = vunpack.c.l.b16 %v2483
        %v3524 = vunpack.c.l.b16 %v2484
        %v3525 = vunpack.c.l.b16 %v2485
        %v3526 = vunpack.c.l.b16 %v2486
        %v3527 = vunpack.c.l.b16 %v2487
        %v3528 = vunpack.c.l.b16 %v2488
        %v3529 = vunpack.c.l.b16 %v2489
        %v3530 = vunpack.c.l.b16 %v2490
        %v3531 = vunpack.c.l.b16 %v2491
        %v3532 = vunpack.c.l.b16 %v2492
        %v3533 = vunpack.c.l.b16 %v2493
        %v3534 = vunpack.c.l.b16 %v2494
        %v3535 = vunpack.c.l.b16 %v2495
        %v3536 = vunpack.c.l.b16 %v2496
        %v3537 = vunpack.c.l.b16 %v2497
        %v3538 = vunpack.c.l.b16 %v2498
        %v3539 = vunpack.c.l.b16 %v2499
        %v3540 = vpack.c.b16 %v3509, %v3508
        %v3541 = vpack.c.b16 %v3511, %v3510
        %v3542 = vpack.c.b16 %v3513, %v3512
        %v3543 = vpack.c.b16 %v3515, %v3514
        %v3544 = vpack.c.b16 %v3517, %v3516
        %v3545 = vpack.c.b16 %v3519, %v3518
        %v3546 = vpack.c.b16 %v3521, %v3520
        %v3547 = vpack.c.b16 %v3523, %v3522
        %v3548 = vpack.c.b16 %v3525, %v3524
        %v3549 = vpack.c.b16 %v3527, %v3526
        %v3550 = vpack.c.b16 %v3529, %v3528
        %v3551 = vpack.c.b16 %v3531, %v3530
        %v3552 = vpack.c.b16 %v3533, %v3532
        %v3553 = vpack.c.b16 %v3535, %v3534
        %v3554 = vpack.c.b16 %v3537, %v3536
        %v3555 = vpack.c.b16 %v3539, %v3538
        %v3572 = vunpack.c.l.b16 %v2529
        %v3573 = vunpack.c.l.b16 %v2539
        %v3574 = vunpack.c.l.b16 %v2553
        %v3575 = vunpack.c.l.b16 %v2563
        %v3576 = vunpack.c.l.b16 %v2577
        %v3577 = vunpack.c.l.b16 %v2587
        %v3578 = vunpack.c.l.b16 %v2601
        %v3579 = vunpack.c.l.b16 %v2611
        %v3580 = vunpack.c.l.b16 %v2625
        %v3581 = vunpack.c.l.b16 %v2635
        %v3582 = vunpack.c.l.b16 %v2649
        %v3583 = vunpack.c.l.b16 %v2659
        %v3584 = vunpack.c.l.b16 %v2673
        %v3585 = vunpack.c.l.b16 %v2683
        %v3586 = vunpack.c.l.b16 %v2697
        %v3587 = vunpack.c.l.b16 %v2707
        %v3588 = vunpack.c.l.b16 %v2721
        %v3589 = vunpack.c.l.b16 %v2731
        %v3590 = vunpack.c.l.b16 %v2745
        %v3591 = vunpack.c.l.b16 %v2755
        %v3592 = vunpack.c.l.b16 %v2769
        %v3593 = vunpack.c.l.b16 %v2779
        %v3594 = vunpack.c.l.b16 %v2793
        %v3595 = vunpack.c.l.b16 %v2803
        %v3596 = vunpack.c.l.b16 %v2817
        %v3597 = vunpack.c.l.b16 %v2827
        %v3598 = vunpack.c.l.b16 %v2841
        %v3599 = vunpack.c.l.b16 %v2851
        %v3600 = vunpack.c.l.b16 %v2865
        %v3601 = vunpack.c.l.b16 %v2875
        %v3602 = vunpack.c.l.b16 %v2889
        %v3603 = vunpack.c.l.b16 %v2899
        %v3604 = vpack.c.b16 %v3573, %v3572
        %v3605 = vpack.c.b16 %v3575, %v3574
        %v3606 = vpack.c.b16 %v3577, %v3576
        %v3607 = vpack.c.b16 %v3579, %v3578
        %v3608 = vpack.c.b16 %v3581, %v3580
        %v3609 = vpack.c.b16 %v3583, %v3582
        %v3610 = vpack.c.b16 %v3585, %v3584
        %v3611 = vpack.c.b16 %v3587, %v3586
        %v3612 = vpack.c.b16 %v3589, %v3588
        %v3613 = vpack.c.b16 %v3591, %v3590
        %v3614 = vpack.c.b16 %v3593, %v3592
        %v3615 = vpack.c.b16 %v3595, %v3594
        %v3616 = vpack.c.b16 %v3597, %v3596
        %v3617 = vpack.c.b16 %v3599, %v3598
        %v3618 = vpack.c.b16 %v3601, %v3600
        %v3619 = vpack.c.b16 %v3603, %v3602
        %v3636 = vunpack.c.l.b16 %v2967
        %v3637 = vunpack.c.l.b16 %v2970
        %v3638 = vunpack.c.l.b16 %v2974
        %v3639 = vunpack.c.l.b16 %v2977
        %v3640 = vunpack.c.l.b16 %v2981
        %v3641 = vunpack.c.l.b16 %v2984
        %v3642 = vunpack.c.l.b16 %v2988
        %v3643 = vunpack.c.l.b16 %v2991
        %v3644 = vunpack.c.l.b16 %v2995
        %v3645 = vunpack.c.l.b16 %v2998
        %v3646 = vunpack.c.l.b16 %v3002
        %v3647 = vunpack.c.l.b16 %v3005
        %v3648 = vunpack.c.l.b16 %v3009
        %v3649 = vunpack.c.l.b16 %v3012
        %v3650 = vunpack.c.l.b16 %v3016
        %v3651 = vunpack.c.l.b16 %v3019
        %v3652 = vunpack.c.l.b16 %v3023
        %v3653 = vunpack.c.l.b16 %v3026
        %v3654 = vunpack.c.l.b16 %v3030
        %v3655 = vunpack.c.l.b16 %v3033
        %v3656 = vunpack.c.l.b16 %v3037
        %v3657 = vunpack.c.l.b16 %v3040
        %v3658 = vunpack.c.l.b16 %v3044
        %v3659 = vunpack.c.l.b16 %v3047
        %v3660 = vunpack.c.l.b16 %v3051
        %v3661 = vunpack.c.l.b16 %v3054
        %v3662 = vunpack.c.l.b16 %v3058
        %v3663 = vunpack.c.l.b16 %v3061
        %v3664 = vunpack.c.l.b16 %v3065
        %v3665 = vunpack.c.l.b16 %v3068
        %v3666 = vunpack.c.l.b16 %v3072
        %v3667 = vunpack.c.l.b16 %v3075
        %v3668 = vpack.c.b16 %v3637, %v3636
        %v3669 = vpack.c.b16 %v3639, %v3638
        %v3670 = vpack.c.b16 %v3641, %v3640
        %v3671 = vpack.c.b16 %v3643, %v3642
        %v3672 = vpack.c.b16 %v3645, %v3644
        %v3673 = vpack.c.b16 %v3647, %v3646
        %v3674 = vpack.c.b16 %v3649, %v3648
        %v3675 = vpack.c.b16 %v3651, %v3650
        %v3676 = vpack.c.b16 %v3653, %v3652
        %v3677 = vpack.c.b16 %v3655, %v3654
        %v3678 = vpack.c.b16 %v3657, %v3656
        %v3679 = vpack.c.b16 %v3659, %v3658
        %v3680 = vpack.c.b16 %v3661, %v3660
        %v3681 = vpack.c.b16 %v3663, %v3662
        %v3682 = vpack.c.b16 %v3665, %v3664
        %v3683 = vpack.c.b16 %v3667, %v3666
        %v3700 = vld [vmem:[#allocation8] sm:$0xf]
        %v3701 = vld [vmem:[#allocation8 + $0x4] sm:$0xf]
        %v3702 = vld [vmem:[#allocation8 + $0x8] sm:$0xf]
        %v3703 = vld [vmem:[#allocation8 + $0xc] sm:$0xf]
        %v3704 = vld [vmem:[#allocation8 + $0x10] sm:$0xf]
        %v3705 = vld [vmem:[#allocation8 + $0x14] sm:$0xf]
        %v3706 = vld [vmem:[#allocation8 + $0x18] sm:$0xf]
        %v3707 = vld [vmem:[#allocation8 + $0x1c] sm:$0xf]
        %v3708 = vld [vmem:[#allocation8 + $0x20] sm:$0xf]
        %v3709 = vld [vmem:[#allocation8 + $0x24] sm:$0xf]
        %v3710 = vld [vmem:[#allocation8 + $0x28] sm:$0xf]
        %v3711 = vld [vmem:[#allocation8 + $0x2c] sm:$0xf]
        %v3712 = vld [vmem:[#allocation8 + $0x30] sm:$0xf]
        %v3713 = vld [vmem:[#allocation8 + $0x34] sm:$0xf]
        %v3714 = vld [vmem:[#allocation8 + $0x38] sm:$0xf]
        %v3715 = vld [vmem:[#allocation8 + $0x3c] sm:$0xf]
        %v3716 = vld [vmem:[#allocation8 + $0x40] sm:$0xf]
        %v3717 = vld [vmem:[#allocation8 + $0x44] sm:$0xf]
        %v3718 = vld [vmem:[#allocation8 + $0x48] sm:$0xf]
        %v3719 = vld [vmem:[#allocation8 + $0x4c] sm:$0xf]
        %v3720 = vld [vmem:[#allocation8 + $0x50] sm:$0xf]
        %v3721 = vld [vmem:[#allocation8 + $0x54] sm:$0xf]
        %v3722 = vld [vmem:[#allocation8 + $0x58] sm:$0xf]
        %v3723 = vld [vmem:[#allocation8 + $0x5c] sm:$0xf]
        %v3724 = vld [vmem:[#allocation8 + $0x60] sm:$0xf]
        %v3725 = vld [vmem:[#allocation8 + $0x64] sm:$0xf]
        %v3726 = vld [vmem:[#allocation8 + $0x68] sm:$0xf]
        %v3727 = vld [vmem:[#allocation8 + $0x6c] sm:$0xf]
        %v3728 = vld [vmem:[#allocation8 + $0x70] sm:$0xf]
        %v3729 = vld [vmem:[#allocation8 + $0x74] sm:$0xf]
        %v3730 = vld [vmem:[#allocation8 + $0x78] sm:$0xf]
        %v3731 = vld [vmem:[#allocation8 + $0x7c] sm:$0xf]
        %v3732 = vld [vmem:[#allocation8 + $0x80] sm:$0xf]
        %v3733 = vld [vmem:[#allocation8 + $0x84] sm:$0xf]
        %v3734 = vld [vmem:[#allocation8 + $0x88] sm:$0xf]
        %v3735 = vld [vmem:[#allocation8 + $0x8c] sm:$0xf]
        %v3736 = vld [vmem:[#allocation8 + $0x90] sm:$0xf]
        %v3737 = vld [vmem:[#allocation8 + $0x94] sm:$0xf]
        %v3738 = vld [vmem:[#allocation8 + $0x98] sm:$0xf]
        %v3739 = vld [vmem:[#allocation8 + $0x9c] sm:$0xf]
        %v3740 = vld [vmem:[#allocation8 + $0xa0] sm:$0xf]
        %v3741 = vld [vmem:[#allocation8 + $0xa4] sm:$0xf]
        %v3742 = vld [vmem:[#allocation8 + $0xa8] sm:$0xf]
        %v3743 = vld [vmem:[#allocation8 + $0xac] sm:$0xf]
        %v3744 = vld [vmem:[#allocation8 + $0xb0] sm:$0xf]
        %v3745 = vld [vmem:[#allocation8 + $0xb4] sm:$0xf]
        %v3746 = vld [vmem:[#allocation8 + $0xb8] sm:$0xf]
        %v3747 = vld [vmem:[#allocation8 + $0xbc] sm:$0xf]
        %v3748 = vld [vmem:[#allocation8 + $0xc0] sm:$0xf]
        %v3749 = vld [vmem:[#allocation8 + $0xc4] sm:$0xf]
        %v3750 = vld [vmem:[#allocation8 + $0xc8] sm:$0xf]
        %v3751 = vld [vmem:[#allocation8 + $0xcc] sm:$0xf]
        %v3752 = vld [vmem:[#allocation8 + $0xd0] sm:$0xf]
        %v3753 = vld [vmem:[#allocation8 + $0xd4] sm:$0xf]
        %v3754 = vld [vmem:[#allocation8 + $0xd8] sm:$0xf]
        %v3755 = vld [vmem:[#allocation8 + $0xdc] sm:$0xf]
        %v3756 = vld [vmem:[#allocation8 + $0xe0] sm:$0xf]
        %v3757 = vld [vmem:[#allocation8 + $0xe4] sm:$0xf]
        %v3758 = vld [vmem:[#allocation8 + $0xe8] sm:$0xf]
        %v3759 = vld [vmem:[#allocation8 + $0xec] sm:$0xf]
        %v3760 = vld [vmem:[#allocation8 + $0xf0] sm:$0xf]
        %v3761 = vld [vmem:[#allocation8 + $0xf4] sm:$0xf]
        %v3762 = vld [vmem:[#allocation8 + $0xf8] sm:$0xf]
        %v3763 = vld [vmem:[#allocation8 + $0xfc] sm:$0xf]
        %v3764 = vld [vmem:[#allocation8 + $0x100] sm:$0xf]
        %v3765 = vld [vmem:[#allocation8 + $0x104] sm:$0xf]
        %v3766 = vld [vmem:[#allocation8 + $0x108] sm:$0xf]
        %v3767 = vld [vmem:[#allocation8 + $0x10c] sm:$0xf]
        %v3768 = vld [vmem:[#allocation8 + $0x110] sm:$0xf]
        %v3769 = vld [vmem:[#allocation8 + $0x114] sm:$0xf]
        %v3770 = vld [vmem:[#allocation8 + $0x118] sm:$0xf]
        %v3771 = vld [vmem:[#allocation8 + $0x11c] sm:$0xf]
        %v3772 = vld [vmem:[#allocation8 + $0x120] sm:$0xf]
        %v3773 = vld [vmem:[#allocation8 + $0x124] sm:$0xf]
        %v3774 = vld [vmem:[#allocation8 + $0x128] sm:$0xf]
        %v3775 = vld [vmem:[#allocation8 + $0x12c] sm:$0xf]
        %v3776 = vld [vmem:[#allocation8 + $0x130] sm:$0xf]
        %v3777 = vld [vmem:[#allocation8 + $0x134] sm:$0xf]
        %v3778 = vld [vmem:[#allocation8 + $0x138] sm:$0xf]
        %v3779 = vld [vmem:[#allocation8 + $0x13c] sm:$0xf]
        %v3780 = vld [vmem:[#allocation8 + $0x140] sm:$0xf]
        %v3781 = vld [vmem:[#allocation8 + $0x144] sm:$0xf]
        %v3782 = vld [vmem:[#allocation8 + $0x148] sm:$0xf]
        %v3783 = vld [vmem:[#allocation8 + $0x14c] sm:$0xf]
        %v3784 = vld [vmem:[#allocation8 + $0x150] sm:$0xf]
        %v3785 = vld [vmem:[#allocation8 + $0x154] sm:$0xf]
        %v3786 = vld [vmem:[#allocation8 + $0x158] sm:$0xf]
        %v3787 = vld [vmem:[#allocation8 + $0x15c] sm:$0xf]
        %v3788 = vld [vmem:[#allocation8 + $0x160] sm:$0xf]
        %v3789 = vld [vmem:[#allocation8 + $0x164] sm:$0xf]
        %v3790 = vld [vmem:[#allocation8 + $0x168] sm:$0xf]
        %v3791 = vld [vmem:[#allocation8 + $0x16c] sm:$0xf]
        %v3792 = vld [vmem:[#allocation8 + $0x170] sm:$0xf]
        %v3793 = vld [vmem:[#allocation8 + $0x174] sm:$0xf]
        %v3794 = vld [vmem:[#allocation8 + $0x178] sm:$0xf]
        %v3795 = vld [vmem:[#allocation8 + $0x17c] sm:$0xf]
        %v3796 = vld [vmem:[#allocation8 + $0x180] sm:$0xf]
        %v3797 = vld [vmem:[#allocation8 + $0x184] sm:$0xf]
        %v3798 = vld [vmem:[#allocation8 + $0x188] sm:$0xf]
        %v3799 = vld [vmem:[#allocation8 + $0x18c] sm:$0xf]
        %v3800 = vld [vmem:[#allocation8 + $0x190] sm:$0xf]
        %v3801 = vld [vmem:[#allocation8 + $0x194] sm:$0xf]
        %v3802 = vld [vmem:[#allocation8 + $0x198] sm:$0xf]
        %v3803 = vld [vmem:[#allocation8 + $0x19c] sm:$0xf]
        %v3804 = vld [vmem:[#allocation8 + $0x1a0] sm:$0xf]
        %v3805 = vld [vmem:[#allocation8 + $0x1a4] sm:$0xf]
        %v3806 = vld [vmem:[#allocation8 + $0x1a8] sm:$0xf]
        %v3807 = vld [vmem:[#allocation8 + $0x1ac] sm:$0xf]
        %v3808 = vld [vmem:[#allocation8 + $0x1b0] sm:$0xf]
        %v3809 = vld [vmem:[#allocation8 + $0x1b4] sm:$0xf]
        %v3810 = vld [vmem:[#allocation8 + $0x1b8] sm:$0xf]
        %v3811 = vld [vmem:[#allocation8 + $0x1bc] sm:$0xf]
        %v3812 = vld [vmem:[#allocation8 + $0x1c0] sm:$0xf]
        %v3813 = vld [vmem:[#allocation8 + $0x1c4] sm:$0xf]
        %v3814 = vld [vmem:[#allocation8 + $0x1c8] sm:$0xf]
        %v3815 = vld [vmem:[#allocation8 + $0x1cc] sm:$0xf]
        %v3816 = vld [vmem:[#allocation8 + $0x1d0] sm:$0xf]
        %v3817 = vld [vmem:[#allocation8 + $0x1d4] sm:$0xf]
        %v3818 = vld [vmem:[#allocation8 + $0x1d8] sm:$0xf]
        %v3819 = vld [vmem:[#allocation8 + $0x1dc] sm:$0xf]
        %v3820 = vld [vmem:[#allocation8 + $0x1e0] sm:$0xf]
        %v3821 = vld [vmem:[#allocation8 + $0x1e4] sm:$0xf]
        %v3822 = vld [vmem:[#allocation8 + $0x1e8] sm:$0xf]
        %v3823 = vld [vmem:[#allocation8 + $0x1ec] sm:$0xf]
        %v3824 = vld [vmem:[#allocation8 + $0x1f0] sm:$0xf]
        %v3825 = vld [vmem:[#allocation8 + $0x1f4] sm:$0xf]
        %v3826 = vld [vmem:[#allocation8 + $0x1f8] sm:$0xf]
        %v3827 = vld [vmem:[#allocation8 + $0x1fc] sm:$0xf]
        %v3828 = vld [vmem:[#allocation8 + $0x200] sm:$0xf]
        %v3829 = vld [vmem:[#allocation8 + $0x204] sm:$0xf]
        %v3830 = vld [vmem:[#allocation8 + $0x208] sm:$0xf]
        %v3831 = vld [vmem:[#allocation8 + $0x20c] sm:$0xf]
        %v3832 = vld [vmem:[#allocation8 + $0x210] sm:$0xf]
        %v3833 = vld [vmem:[#allocation8 + $0x214] sm:$0xf]
        %v3834 = vld [vmem:[#allocation8 + $0x218] sm:$0xf]
        %v3835 = vld [vmem:[#allocation8 + $0x21c] sm:$0xf]
        %v3836 = vld [vmem:[#allocation8 + $0x220] sm:$0xf]
        %v3837 = vld [vmem:[#allocation8 + $0x224] sm:$0xf]
        %v3838 = vld [vmem:[#allocation8 + $0x228] sm:$0xf]
        %v3839 = vld [vmem:[#allocation8 + $0x22c] sm:$0xf]
        %v3840 = vld [vmem:[#allocation8 + $0x230] sm:$0xf]
        %v3841 = vld [vmem:[#allocation8 + $0x234] sm:$0xf]
        %v3842 = vld [vmem:[#allocation8 + $0x238] sm:$0xf]
        %v3843 = vld [vmem:[#allocation8 + $0x23c] sm:$0xf]
        %v3844 = vld [vmem:[%s4] sm:$0x1]
        %v3846 = vlaneseq
        %v3847 = vshrl.u32 %v3846, 7
        %v3848 = vsub.s32 0, %v3847
        %v3849 = vrot.slane %v3844, %v3848
        %v3995 = vunpack.c.l.b16 %v3700
        %v3996 = vunpack.c.l.b16 %v3701
        %v3997 = vunpack.c.l.b16 %v3702
        %v3998 = vunpack.c.l.b16 %v3703
        %v3999 = vunpack.c.l.b16 %v3704
        %v4000 = vunpack.c.l.b16 %v3705
        %v4001 = vunpack.c.l.b16 %v3706
        %v4002 = vunpack.c.l.b16 %v3707
        %v4003 = vunpack.c.l.b16 %v3708
        %v4004 = vunpack.c.l.b16 %v3709
        %v4005 = vunpack.c.l.b16 %v3710
        %v4006 = vunpack.c.l.b16 %v3711
        %v4007 = vunpack.c.l.b16 %v3712
        %v4008 = vunpack.c.l.b16 %v3713
        %v4009 = vunpack.c.l.b16 %v3714
        %v4010 = vunpack.c.l.b16 %v3715
        %v4011 = vunpack.c.l.b16 %v3716
        %v4012 = vunpack.c.l.b16 %v3717
        %v4013 = vunpack.c.l.b16 %v3718
        %v4014 = vunpack.c.l.b16 %v3719
        %v4015 = vunpack.c.l.b16 %v3720
        %v4016 = vunpack.c.l.b16 %v3721
        %v4017 = vunpack.c.l.b16 %v3722
        %v4018 = vunpack.c.l.b16 %v3723
        %v4019 = vunpack.c.l.b16 %v3724
        %v4020 = vunpack.c.l.b16 %v3725
        %v4021 = vunpack.c.l.b16 %v3726
        %v4022 = vunpack.c.l.b16 %v3727
        %v4023 = vunpack.c.l.b16 %v3728
        %v4024 = vunpack.c.l.b16 %v3729
        %v4025 = vunpack.c.l.b16 %v3730
        %v4026 = vunpack.c.l.b16 %v3731
        %v4027 = vunpack.c.l.b16 %v3732
        %v4028 = vunpack.c.l.b16 %v3733
        %v4029 = vunpack.c.l.b16 %v3734
        %v4030 = vunpack.c.l.b16 %v3735
        %v4031 = vunpack.c.l.b16 %v3736
        %v4032 = vunpack.c.l.b16 %v3737
        %v4033 = vunpack.c.l.b16 %v3738
        %v4034 = vunpack.c.l.b16 %v3739
        %v4035 = vunpack.c.l.b16 %v3740
        %v4036 = vunpack.c.l.b16 %v3741
        %v4037 = vunpack.c.l.b16 %v3742
        %v4038 = vunpack.c.l.b16 %v3743
        %v4039 = vunpack.c.l.b16 %v3744
        %v4040 = vunpack.c.l.b16 %v3745
        %v4041 = vunpack.c.l.b16 %v3746
        %v4042 = vunpack.c.l.b16 %v3747
        %v4043 = vunpack.c.l.b16 %v3748
        %v4044 = vunpack.c.l.b16 %v3749
        %v4045 = vunpack.c.l.b16 %v3750
        %v4046 = vunpack.c.l.b16 %v3751
        %v4047 = vunpack.c.l.b16 %v3752
        %v4048 = vunpack.c.l.b16 %v3753
        %v4049 = vunpack.c.l.b16 %v3754
        %v4050 = vunpack.c.l.b16 %v3755
        %v4051 = vunpack.c.l.b16 %v3756
        %v4052 = vunpack.c.l.b16 %v3757
        %v4053 = vunpack.c.l.b16 %v3758
        %v4054 = vunpack.c.l.b16 %v3759
        %v4055 = vunpack.c.l.b16 %v3760
        %v4056 = vunpack.c.l.b16 %v3761
        %v4057 = vunpack.c.l.b16 %v3762
        %v4058 = vunpack.c.l.b16 %v3763
        %v4059 = vunpack.c.l.b16 %v3764
        %v4060 = vunpack.c.l.b16 %v3765
        %v4061 = vunpack.c.l.b16 %v3766
        %v4062 = vunpack.c.l.b16 %v3767
        %v4063 = vunpack.c.l.b16 %v3768
        %v4064 = vunpack.c.l.b16 %v3769
        %v4065 = vunpack.c.l.b16 %v3770
        %v4066 = vunpack.c.l.b16 %v3771
        %v4067 = vunpack.c.l.b16 %v3772
        %v4068 = vunpack.c.l.b16 %v3773
        %v4069 = vunpack.c.l.b16 %v3774
        %v4070 = vunpack.c.l.b16 %v3775
        %v4071 = vunpack.c.l.b16 %v3776
        %v4072 = vunpack.c.l.b16 %v3777
        %v4073 = vunpack.c.l.b16 %v3778
        %v4074 = vunpack.c.l.b16 %v3779
        %v4075 = vunpack.c.l.b16 %v3780
        %v4076 = vunpack.c.l.b16 %v3781
        %v4077 = vunpack.c.l.b16 %v3782
        %v4078 = vunpack.c.l.b16 %v3783
        %v4079 = vunpack.c.l.b16 %v3784
        %v4080 = vunpack.c.l.b16 %v3785
        %v4081 = vunpack.c.l.b16 %v3786
        %v4082 = vunpack.c.l.b16 %v3787
        %v4083 = vunpack.c.l.b16 %v3788
        %v4084 = vunpack.c.l.b16 %v3789
        %v4085 = vunpack.c.l.b16 %v3790
        %v4086 = vunpack.c.l.b16 %v3791
        %v4087 = vunpack.c.l.b16 %v3792
        %v4088 = vunpack.c.l.b16 %v3793
        %v4089 = vunpack.c.l.b16 %v3794
        %v4090 = vunpack.c.l.b16 %v3795
        %v4091 = vunpack.c.l.b16 %v3796
        %v4092 = vunpack.c.l.b16 %v3797
        %v4093 = vunpack.c.l.b16 %v3798
        %v4094 = vunpack.c.l.b16 %v3799
        %v4095 = vunpack.c.l.b16 %v3800
        %v4096 = vunpack.c.l.b16 %v3801
        %v4097 = vunpack.c.l.b16 %v3802
        %v4098 = vunpack.c.l.b16 %v3803
        %v4099 = vunpack.c.l.b16 %v3804
        %v4100 = vunpack.c.l.b16 %v3805
        %v4101 = vunpack.c.l.b16 %v3806
        %v4102 = vunpack.c.l.b16 %v3807
        %v4103 = vunpack.c.l.b16 %v3808
        %v4104 = vunpack.c.l.b16 %v3809
        %v4105 = vunpack.c.l.b16 %v3810
        %v4106 = vunpack.c.l.b16 %v3811
        %v4107 = vunpack.c.l.b16 %v3812
        %v4108 = vunpack.c.l.b16 %v3813
        %v4109 = vunpack.c.l.b16 %v3814
        %v4110 = vunpack.c.l.b16 %v3815
        %v4111 = vunpack.c.l.b16 %v3816
        %v4112 = vunpack.c.l.b16 %v3817
        %v4113 = vunpack.c.l.b16 %v3818
        %v4114 = vunpack.c.l.b16 %v3819
        %v4115 = vunpack.c.l.b16 %v3820
        %v4116 = vunpack.c.l.b16 %v3821
        %v4117 = vunpack.c.l.b16 %v3822
        %v4118 = vunpack.c.l.b16 %v3823
        %v4119 = vunpack.c.l.b16 %v3824
        %v4120 = vunpack.c.l.b16 %v3825
        %v4121 = vunpack.c.l.b16 %v3826
        %v4122 = vunpack.c.l.b16 %v3827
        %v4123 = vunpack.c.l.b16 %v3828
        %v4124 = vunpack.c.l.b16 %v3829
        %v4125 = vunpack.c.l.b16 %v3830
        %v4126 = vunpack.c.l.b16 %v3831
        %v4127 = vunpack.c.l.b16 %v3832
        %v4128 = vunpack.c.l.b16 %v3833
        %v4129 = vunpack.c.l.b16 %v3834
        %v4130 = vunpack.c.l.b16 %v3835
        %v4131 = vunpack.c.l.b16 %v3836
        %v4132 = vunpack.c.l.b16 %v3837
        %v4133 = vunpack.c.l.b16 %v3838
        %v4134 = vunpack.c.l.b16 %v3839
        %v4135 = vunpack.c.l.b16 %v3840
        %v4136 = vunpack.c.l.b16 %v3841
        %v4137 = vunpack.c.l.b16 %v3842
        %v4138 = vunpack.c.l.b16 %v3843
        %v4139 = vpack.c.b16 %v3996, %v3995
        %v4140 = vpack.c.b16 %v3998, %v3997
        %v4141 = vpack.c.b16 %v4000, %v3999
        %v4142 = vpack.c.b16 %v4002, %v4001
        %v4143 = vpack.c.b16 %v4004, %v4003
        %v4144 = vpack.c.b16 %v4006, %v4005
        %v4145 = vpack.c.b16 %v4008, %v4007
        %v4146 = vpack.c.b16 %v4010, %v4009
        %v4147 = vpack.c.b16 %v4012, %v4011
        %v4148 = vpack.c.b16 %v4014, %v4013
        %v4149 = vpack.c.b16 %v4016, %v4015
        %v4150 = vpack.c.b16 %v4018, %v4017
        %v4151 = vpack.c.b16 %v4020, %v4019
        %v4152 = vpack.c.b16 %v4022, %v4021
        %v4153 = vpack.c.b16 %v4024, %v4023
        %v4154 = vpack.c.b16 %v4026, %v4025
        %v4155 = vpack.c.b16 %v4028, %v4027
        %v4156 = vpack.c.b16 %v4030, %v4029
        %v4157 = vpack.c.b16 %v4032, %v4031
        %v4158 = vpack.c.b16 %v4034, %v4033
        %v4159 = vpack.c.b16 %v4036, %v4035
        %v4160 = vpack.c.b16 %v4038, %v4037
        %v4161 = vpack.c.b16 %v4040, %v4039
        %v4162 = vpack.c.b16 %v4042, %v4041
        %v4163 = vpack.c.b16 %v4044, %v4043
        %v4164 = vpack.c.b16 %v4046, %v4045
        %v4165 = vpack.c.b16 %v4048, %v4047
        %v4166 = vpack.c.b16 %v4050, %v4049
        %v4167 = vpack.c.b16 %v4052, %v4051
        %v4168 = vpack.c.b16 %v4054, %v4053
        %v4169 = vpack.c.b16 %v4056, %v4055
        %v4170 = vpack.c.b16 %v4058, %v4057
        %v4171 = vpack.c.b16 %v4060, %v4059
        %v4172 = vpack.c.b16 %v4062, %v4061
        %v4173 = vpack.c.b16 %v4064, %v4063
        %v4174 = vpack.c.b16 %v4066, %v4065
        %v4175 = vpack.c.b16 %v4068, %v4067
        %v4176 = vpack.c.b16 %v4070, %v4069
        %v4177 = vpack.c.b16 %v4072, %v4071
        %v4178 = vpack.c.b16 %v4074, %v4073
        %v4179 = vpack.c.b16 %v4076, %v4075
        %v4180 = vpack.c.b16 %v4078, %v4077
        %v4181 = vpack.c.b16 %v4080, %v4079
        %v4182 = vpack.c.b16 %v4082, %v4081
        %v4183 = vpack.c.b16 %v4084, %v4083
        %v4184 = vpack.c.b16 %v4086, %v4085
        %v4185 = vpack.c.b16 %v4088, %v4087
        %v4186 = vpack.c.b16 %v4090, %v4089
        %v4187 = vpack.c.b16 %v4092, %v4091
        %v4188 = vpack.c.b16 %v4094, %v4093
        %v4189 = vpack.c.b16 %v4096, %v4095
        %v4190 = vpack.c.b16 %v4098, %v4097
        %v4191 = vpack.c.b16 %v4100, %v4099
        %v4192 = vpack.c.b16 %v4102, %v4101
        %v4193 = vpack.c.b16 %v4104, %v4103
        %v4194 = vpack.c.b16 %v4106, %v4105
        %v4195 = vpack.c.b16 %v4108, %v4107
        %v4196 = vpack.c.b16 %v4110, %v4109
        %v4197 = vpack.c.b16 %v4112, %v4111
        %v4198 = vpack.c.b16 %v4114, %v4113
        %v4199 = vpack.c.b16 %v4116, %v4115
        %v4200 = vpack.c.b16 %v4118, %v4117
        %v4201 = vpack.c.b16 %v4120, %v4119
        %v4202 = vpack.c.b16 %v4122, %v4121
        %v4203 = vpack.c.b16 %v4124, %v4123
        %v4204 = vpack.c.b16 %v4126, %v4125
        %v4205 = vpack.c.b16 %v4128, %v4127
        %v4206 = vpack.c.b16 %v4130, %v4129
        %v4207 = vpack.c.b16 %v4132, %v4131
        %v4208 = vpack.c.b16 %v4134, %v4133
        %v4209 = vpack.c.b16 %v4136, %v4135
        %v4210 = vpack.c.b16 %v4138, %v4137
        %4283 = vmatprep.subr.bf16.mxu0 0
        %4284 = vmatpush1.bf16.msra.mxu0 %v4139
        %4285 = vmatprep.subr.bf16.mxu0 0
        %4286 = vmatpush1.bf16.msra.mxu0 %v4140
        %4287 = vmatprep.subr.bf16.mxu0 0
        %4288 = vmatpush1.bf16.msra.mxu0 %v4141
        %4289 = vmatprep.subr.bf16.mxu0 0
        %4290 = vmatpush1.bf16.msra.mxu0 %v4142
        %4291 = vmatprep.subr.bf16.mxu0 0
        %4292 = vmatpush1.bf16.msra.mxu0 %v4143
        %4293 = vmatprep.subr.bf16.mxu0 0
        %4294 = vmatpush1.bf16.msra.mxu0 %v4144
        %4295 = vmatprep.subr.bf16.mxu0 0
        %4296 = vmatpush1.bf16.msra.mxu0 %v4145
        %4297 = vmatprep.subr.bf16.mxu0 0
        %4298 = vmatpush1.bf16.msra.mxu0 %v4146
        %4299 = vmatprep.subr.bf16.mxu0 0
        %4300 = vmatpush1.bf16.msra.mxu0 %v4147
        %4301 = vmatprep.subr.bf16.mxu0 0
        %4302 = vmatpush1.bf16.msra.mxu0 %v4148
        %4303 = vmatprep.subr.bf16.mxu0 0
        %4304 = vmatpush1.bf16.msra.mxu0 %v4149
        %4305 = vmatprep.subr.bf16.mxu0 0
        %4306 = vmatpush1.bf16.msra.mxu0 %v4150
        %4307 = vmatprep.subr.bf16.mxu0 0
        %4308 = vmatpush1.bf16.msra.mxu0 %v4151
        %4309 = vmatprep.subr.bf16.mxu0 0
        %4310 = vmatpush1.bf16.msra.mxu0 %v4152
        %4311 = vmatprep.subr.bf16.mxu0 0
        %4312 = vmatpush1.bf16.msra.mxu0 %v4153
        %4313 = vmatprep.subr.bf16.mxu0 0
        %4314 = vmatpush1.bf16.msra.mxu0 %v4154
        %4315 = vmatprep.mubr.bf16.mxu0 %v3188
        %4316 = vmatmul.mubr.bf16.gmra.mrb[0].mxu0 %v3124
        %v4317 = vpop.f32.mrb[0].mxu0
        %v4318 = vadd.f32 %v3849, %v4317
        %v4319 = vpop.f32.mrb[0].mxu0
        %v4320 = vpop.f32.mrb[0].mxu0
        %v4321 = vadd.f32 %v3849, %v4320
        %v4322 = vpop.f32.mrb[0].mxu0
        %4323 = vmatprep.mubr.bf16.mxu0 %v3189
        %4324 = vmatmul.mubr.bf16.gmra.mrb[0].mxu0 %v3125
        %v4325 = vpop.f32.mrb[0].mxu0
        %v4326 = vadd.f32 %v3849, %v4325
        %v4327 = vpop.f32.mrb[0].mxu0
        %v4328 = vpop.f32.mrb[0].mxu0
        %v4329 = vadd.f32 %v3849, %v4328
        %v4330 = vpop.f32.mrb[0].mxu0
        %4331 = vmatprep.mubr.bf16.mxu0 %v3190
        %4332 = vmatmul.mubr.bf16.gmra.mrb[0].mxu0 %v3126
        %v4333 = vpop.f32.mrb[0].mxu0
        %v4334 = vadd.f32 %v3849, %v4333
        %v4335 = vpop.f32.mrb[0].mxu0
        %v4336 = vpop.f32.mrb[0].mxu0
        %v4337 = vadd.f32 %v3849, %v4336
        %v4338 = vpop.f32.mrb[0].mxu0
        %4339 = vmatprep.mubr.bf16.mxu0 %v3191
        %4340 = vmatmul.mubr.bf16.gmra.mrb[0].mxu0 %v3127
        %v4341 = vpop.f32.mrb[0].mxu0
        %v4342 = vadd.f32 %v3849, %v4341
        %v4343 = vpop.f32.mrb[0].mxu0
        %v4344 = vpop.f32.mrb[0].mxu0
        %v4345 = vadd.f32 %v3849, %v4344
        %v4346 = vpop.f32.mrb[0].mxu0
        %4347 = vmatprep.mubr.bf16.mxu0 %v3192
        %4348 = vmatmul.mubr.bf16.gmra.mrb[0].mxu0 %v3128
        %v4349 = vpop.f32.mrb[0].mxu0
        %v4350 = vadd.f32 %v3849, %v4349
        %v4351 = vpop.f32.mrb[0].mxu0
        %v4352 = vpop.f32.mrb[0].mxu0
        %v4353 = vadd.f32 %v3849, %v4352
        %v4354 = vpop.f32.mrb[0].mxu0
        %4355 = vmatprep.mubr.bf16.mxu0 %v3193
        %4356 = vmatmul.mubr.bf16.gmra.mrb[0].mxu0 %v3129
        %v4357 = vpop.f32.mrb[0].mxu0
        %v4358 = vadd.f32 %v3849, %v4357
        %v4359 = vpop.f32.mrb[0].mxu0
        %v4360 = vpop.f32.mrb[0].mxu0
        %v4361 = vadd.f32 %v3849, %v4360
        %v4362 = vpop.f32.mrb[0].mxu0
        %4363 = vmatprep.mubr.bf16.mxu0 %v3194
        %4364 = vmatmul.mubr.bf16.gmra.mrb[0].mxu0 %v3130
        %v4365 = vpop.f32.mrb[0].mxu0
        %v4366 = vadd.f32 %v3849, %v4365
        %v4367 = vpop.f32.mrb[0].mxu0
        %v4368 = vpop.f32.mrb[0].mxu0
        %v4369 = vadd.f32 %v3849, %v4368
        %v4370 = vpop.f32.mrb[0].mxu0
        %4371 = vmatprep.mubr.bf16.mxu0 %v3195
        %4372 = vmatmul.mubr.bf16.gmra.mrb[0].mxu0 %v3131
        %v4373 = vpop.f32.mrb[0].mxu0
        %v4374 = vadd.f32 %v3849, %v4373
        %v4375 = vpop.f32.mrb[0].mxu0
        %v4376 = vpop.f32.mrb[0].mxu0
        %v4377 = vadd.f32 %v3849, %v4376
        %v4378 = vpop.f32.mrb[0].mxu0
        %4379 = vmatprep.mubr.bf16.mxu0 %v3196
        %4380 = vmatmul.mubr.bf16.gmra.mrb[0].mxu0 %v3132
        %v4381 = vpop.f32.mrb[0].mxu0
        %v4382 = vadd.f32 %v3849, %v4381
        %v4383 = vpop.f32.mrb[0].mxu0
        %v4384 = vpop.f32.mrb[0].mxu0
        %v4385 = vadd.f32 %v3849, %v4384
        %v4386 = vpop.f32.mrb[0].mxu0
        %4387 = vmatprep.mubr.bf16.mxu0 %v3197
        %4388 = vmatmul.mubr.bf16.gmra.mrb[0].mxu0 %v3133
        %v4389 = vpop.f32.mrb[0].mxu0
        %v4390 = vadd.f32 %v3849, %v4389
        %v4391 = vpop.f32.mrb[0].mxu0
        %v4392 = vpop.f32.mrb[0].mxu0
        %v4393 = vadd.f32 %v3849, %v4392
        %v4394 = vpop.f32.mrb[0].mxu0
        %4395 = vmatprep.mubr.bf16.mxu0 %v3198
        %4396 = vmatmul.mubr.bf16.gmra.mrb[0].mxu0 %v3134
        %v4397 = vpop.f32.mrb[0].mxu0
        %v4398 = vadd.f32 %v3849, %v4397
        %v4399 = vpop.f32.mrb[0].mxu0
        %v4400 = vpop.f32.mrb[0].mxu0
        %v4401 = vadd.f32 %v3849, %v4400
        %v4402 = vpop.f32.mrb[0].mxu0
        %4403 = vmatprep.mubr.bf16.mxu0 %v3199
        %4404 = vmatmul.mubr.bf16.gmra.mrb[0].mxu0 %v3135
        %v4405 = vpop.f32.mrb[0].mxu0
        %v4406 = vadd.f32 %v3849, %v4405
        %v4407 = vpop.f32.mrb[0].mxu0
        %v4408 = vpop.f32.mrb[0].mxu0
        %v4409 = vadd.f32 %v3849, %v4408
        %v4410 = vpop.f32.mrb[0].mxu0
        %4411 = vmatprep.mubr.bf16.mxu0 %v3200
        %4412 = vmatmul.mubr.bf16.gmra.mrb[0].mxu0 %v3136
        %v4413 = vpop.f32.mrb[0].mxu0
        %v4414 = vadd.f32 %v3849, %v4413
        %v4415 = vpop.f32.mrb[0].mxu0
        %v4416 = vpop.f32.mrb[0].mxu0
        %v4417 = vadd.f32 %v3849, %v4416
        %v4418 = vpop.f32.mrb[0].mxu0
        %4419 = vmatprep.mubr.bf16.mxu0 %v3201
        %4420 = vmatmul.mubr.bf16.gmra.mrb[0].mxu0 %v3137
        %v4421 = vpop.f32.mrb[0].mxu0
        %v4422 = vadd.f32 %v3849, %v4421
        %v4423 = vpop.f32.mrb[0].mxu0
        %v4424 = vpop.f32.mrb[0].mxu0
        %v4425 = vadd.f32 %v3849, %v4424
        %v4426 = vpop.f32.mrb[0].mxu0
        %4427 = vmatprep.mubr.bf16.mxu0 %v3202
        %4428 = vmatmul.mubr.bf16.gmra.mrb[0].mxu0 %v3138
        %v4429 = vpop.f32.mrb[0].mxu0
        %v4430 = vadd.f32 %v3849, %v4429
        %v4431 = vpop.f32.mrb[0].mxu0
        %v4432 = vpop.f32.mrb[0].mxu0
        %v4433 = vadd.f32 %v3849, %v4432
        %v4434 = vpop.f32.mrb[0].mxu0
        %4435 = vmatprep.mubr.bf16.mxu0 %v3203
        %4436 = vmatmul.mubr.bf16.gmra.mrb[0].mxu0 %v3139
        %v4437 = vpop.f32.mrb[0].mxu0
        %v4438 = vadd.f32 %v3849, %v4437
        %v4439 = vpop.f32.mrb[0].mxu0
        %v4440 = vpop.f32.mrb[0].mxu0
        %v4441 = vadd.f32 %v3849, %v4440
        %v4442 = vpop.f32.mrb[0].mxu0
        %4443 = vdwg.mxu0
        %4444 = vmatprep.subr.bf16.mxu0 0
        %4445 = vmatpush1.bf16.msra.mxu0 %v4155
        %4446 = vmatprep.subr.bf16.mxu0 0
        %4447 = vmatpush1.bf16.msra.mxu0 %v4156
        %4448 = vmatprep.subr.bf16.mxu0 0
        %4449 = vmatpush1.bf16.msra.mxu0 %v4157
        %4450 = vmatprep.subr.bf16.mxu0 0
        %4451 = vmatpush1.bf16.msra.mxu0 %v4158
        %4452 = vmatprep.subr.bf16.mxu0 0
        %4453 = vmatpush1.bf16.msra.mxu0 %v4159
        %4454 = vmatprep.subr.bf16.mxu0 0
        %4455 = vmatpush1.bf16.msra.mxu0 %v4160
        %4456 = vmatprep.subr.bf16.mxu0 0
        %4457 = vmatpush1.bf16.msra.mxu0 %v4161
        %4458 = vmatprep.subr.bf16.mxu0 0
        %4459 = vmatpush1.bf16.msra.mxu0 %v4162
        %4460 = vmatprep.subr.bf16.mxu0 0
        %4461 = vmatpush1.bf16.msra.mxu0 %v4163
        %4462 = vmatprep.subr.bf16.mxu0 0
        %4463 = vmatpush1.bf16.msra.mxu0 %v4164
        %4464 = vmatprep.subr.bf16.mxu0 0
        %4465 = vmatpush1.bf16.msra.mxu0 %v4165
        %4466 = vmatprep.subr.bf16.mxu0 0
        %4467 = vmatpush1.bf16.msra.mxu0 %v4166
        %4468 = vmatprep.subr.bf16.mxu0 0
        %4469 = vmatpush1.bf16.msra.mxu0 %v4167
        %4470 = vmatprep.subr.bf16.mxu0 0
        %4471 = vmatpush1.bf16.msra.mxu0 %v4168
        %4472 = vmatprep.subr.bf16.mxu0 0
        %4473 = vmatpush1.bf16.msra.mxu0 %v4169
        %4474 = vmatprep.subr.bf16.mxu0 0
        %4475 = vmatpush1.bf16.msra.mxu0 %v4170
        %4476 = vmatprep.mubr.bf16.mxu0 %v3332
        %4477 = vmatmul.mubr.bf16.gmra.mrb[0].mxu0 %v3252
        %v4478 = vpop.f32.mrb[0].mxu0
        %v4479 = vadd.f32 %v4318, %v4478
        %v4480 = vpop.f32.mrb[0].mxu0
        %v4481 = vpop.f32.mrb[0].mxu0
        %v4482 = vadd.f32 %v4321, %v4481
        %v4483 = vpop.f32.mrb[0].mxu0
        %4484 = vmatprep.mubr.bf16.mxu0 %v3333
        %4485 = vmatmul.mubr.bf16.gmra.mrb[0].mxu0 %v3253
        %v4486 = vpop.f32.mrb[0].mxu0
        %v4487 = vadd.f32 %v4326, %v4486
        %v4488 = vpop.f32.mrb[0].mxu0
        %v4489 = vpop.f32.mrb[0].mxu0
        %v4490 = vadd.f32 %v4329, %v4489
        %v4491 = vpop.f32.mrb[0].mxu0
        %4492 = vmatprep.mubr.bf16.mxu0 %v3334
        %4493 = vmatmul.mubr.bf16.gmra.mrb[0].mxu0 %v3254
        %v4494 = vpop.f32.mrb[0].mxu0
        %v4495 = vadd.f32 %v4334, %v4494
        %v4496 = vpop.f32.mrb[0].mxu0
        %v4497 = vpop.f32.mrb[0].mxu0
        %v4498 = vadd.f32 %v4337, %v4497
        %v4499 = vpop.f32.mrb[0].mxu0
        %4500 = vmatprep.mubr.bf16.mxu0 %v3335
        %4501 = vmatmul.mubr.bf16.gmra.mrb[0].mxu0 %v3255
        %v4502 = vpop.f32.mrb[0].mxu0
        %v4503 = vadd.f32 %v4342, %v4502
        %v4504 = vpop.f32.mrb[0].mxu0
        %v4505 = vpop.f32.mrb[0].mxu0
        %v4506 = vadd.f32 %v4345, %v4505
        %v4507 = vpop.f32.mrb[0].mxu0
        %4508 = vmatprep.mubr.bf16.mxu0 %v3336
        %4509 = vmatmul.mubr.bf16.gmra.mrb[0].mxu0 %v3256
        %v4510 = vpop.f32.mrb[0].mxu0
        %v4511 = vadd.f32 %v4350, %v4510
        %v4512 = vpop.f32.mrb[0].mxu0
        %v4513 = vpop.f32.mrb[0].mxu0
        %v4514 = vadd.f32 %v4353, %v4513
        %v4515 = vpop.f32.mrb[0].mxu0
        %4516 = vmatprep.mubr.bf16.mxu0 %v3337
        %4517 = vmatmul.mubr.bf16.gmra.mrb[0].mxu0 %v3257
        %v4518 = vpop.f32.mrb[0].mxu0
        %v4519 = vadd.f32 %v4358, %v4518
        %v4520 = vpop.f32.mrb[0].mxu0
        %v4521 = vpop.f32.mrb[0].mxu0
        %v4522 = vadd.f32 %v4361, %v4521
        %v4523 = vpop.f32.mrb[0].mxu0
        %4524 = vmatprep.mubr.bf16.mxu0 %v3338
        %4525 = vmatmul.mubr.bf16.gmra.mrb[0].mxu0 %v3258
        %v4526 = vpop.f32.mrb[0].mxu0
        %v4527 = vadd.f32 %v4366, %v4526
        %v4528 = vpop.f32.mrb[0].mxu0
        %v4529 = vpop.f32.mrb[0].mxu0
        %v4530 = vadd.f32 %v4369, %v4529
        %v4531 = vpop.f32.mrb[0].mxu0
        %4532 = vmatprep.mubr.bf16.mxu0 %v3339
        %4533 = vmatmul.mubr.bf16.gmra.mrb[0].mxu0 %v3259
        %v4534 = vpop.f32.mrb[0].mxu0
        %v4535 = vadd.f32 %v4374, %v4534
        %v4536 = vpop.f32.mrb[0].mxu0
        %v4537 = vpop.f32.mrb[0].mxu0
        %v4538 = vadd.f32 %v4377, %v4537
        %v4539 = vpop.f32.mrb[0].mxu0
        %4540 = vmatprep.mubr.bf16.mxu0 %v3340
        %4541 = vmatmul.mubr.bf16.gmra.mrb[0].mxu0 %v3260
        %v4542 = vpop.f32.mrb[0].mxu0
        %v4543 = vadd.f32 %v4382, %v4542
        %v4544 = vpop.f32.mrb[0].mxu0
        %v4545 = vpop.f32.mrb[0].mxu0
        %v4546 = vadd.f32 %v4385, %v4545
        %v4547 = vpop.f32.mrb[0].mxu0
        %4548 = vmatprep.mubr.bf16.mxu0 %v3341
        %4549 = vmatmul.mubr.bf16.gmra.mrb[0].mxu0 %v3261
        %v4550 = vpop.f32.mrb[0].mxu0
        %v4551 = vadd.f32 %v4390, %v4550
        %v4552 = vpop.f32.mrb[0].mxu0
        %v4553 = vpop.f32.mrb[0].mxu0
        %v4554 = vadd.f32 %v4393, %v4553
        %v4555 = vpop.f32.mrb[0].mxu0
        %4556 = vmatprep.mubr.bf16.mxu0 %v3342
        %4557 = vmatmul.mubr.bf16.gmra.mrb[0].mxu0 %v3262
        %v4558 = vpop.f32.mrb[0].mxu0
        %v4559 = vadd.f32 %v4398, %v4558
        %v4560 = vpop.f32.mrb[0].mxu0
        %v4561 = vpop.f32.mrb[0].mxu0
        %v4562 = vadd.f32 %v4401, %v4561
        %v4563 = vpop.f32.mrb[0].mxu0
        %4564 = vmatprep.mubr.bf16.mxu0 %v3343
        %4565 = vmatmul.mubr.bf16.gmra.mrb[0].mxu0 %v3263
        %v4566 = vpop.f32.mrb[0].mxu0
        %v4567 = vadd.f32 %v4406, %v4566
        %v4568 = vpop.f32.mrb[0].mxu0
        %v4569 = vpop.f32.mrb[0].mxu0
        %v4570 = vadd.f32 %v4409, %v4569
        %v4571 = vpop.f32.mrb[0].mxu0
        %4572 = vmatprep.mubr.bf16.mxu0 %v3344
        %4573 = vmatmul.mubr.bf16.gmra.mrb[0].mxu0 %v3264
        %v4574 = vpop.f32.mrb[0].mxu0
        %v4575 = vadd.f32 %v4414, %v4574
        %v4576 = vpop.f32.mrb[0].mxu0
        %v4577 = vpop.f32.mrb[0].mxu0
        %v4578 = vadd.f32 %v4417, %v4577
        %v4579 = vpop.f32.mrb[0].mxu0
        %4580 = vmatprep.mubr.bf16.mxu0 %v3345
        %4581 = vmatmul.mubr.bf16.gmra.mrb[0].mxu0 %v3265
        %v4582 = vpop.f32.mrb[0].mxu0
        %v4583 = vadd.f32 %v4422, %v4582
        %v4584 = vpop.f32.mrb[0].mxu0
        %v4585 = vpop.f32.mrb[0].mxu0
        %v4586 = vadd.f32 %v4425, %v4585
        %v4587 = vpop.f32.mrb[0].mxu0
        %4588 = vmatprep.mubr.bf16.mxu0 %v3346
        %4589 = vmatmul.mubr.bf16.gmra.mrb[0].mxu0 %v3266
        %v4590 = vpop.f32.mrb[0].mxu0
        %v4591 = vadd.f32 %v4430, %v4590
        %v4592 = vpop.f32.mrb[0].mxu0
        %v4593 = vpop.f32.mrb[0].mxu0
        %v4594 = vadd.f32 %v4433, %v4593
        %v4595 = vpop.f32.mrb[0].mxu0
        %4596 = vmatprep.mubr.bf16.mxu0 %v3347
        %4597 = vmatmul.mubr.bf16.gmra.mrb[0].mxu0 %v3267
        %v4598 = vpop.f32.mrb[0].mxu0
        %v4599 = vadd.f32 %v4438, %v4598
        %v4600 = vpop.f32.mrb[0].mxu0
        %v4601 = vpop.f32.mrb[0].mxu0
        %v4602 = vadd.f32 %v4441, %v4601
        %v4603 = vpop.f32.mrb[0].mxu0
        %4604 = vdwg.mxu0
        %4605 = vmatprep.subr.bf16.mxu0 0
        %4606 = vmatpush1.bf16.msra.mxu0 %v4171
        %4607 = vmatprep.subr.bf16.mxu0 0
        %4608 = vmatpush1.bf16.msra.mxu0 %v4172
        %4609 = vmatprep.subr.bf16.mxu0 0
        %4610 = vmatpush1.bf16.msra.mxu0 %v4173
        %4611 = vmatprep.subr.bf16.mxu0 0
        %4612 = vmatpush1.bf16.msra.mxu0 %v4174
        %4613 = vmatprep.subr.bf16.mxu0 0
        %4614 = vmatpush1.bf16.msra.mxu0 %v4175
        %4615 = vmatprep.subr.bf16.mxu0 0
        %4616 = vmatpush1.bf16.msra.mxu0 %v4176
        %4617 = vmatprep.subr.bf16.mxu0 0
        %4618 = vmatpush1.bf16.msra.mxu0 %v4177
        %4619 = vmatprep.subr.bf16.mxu0 0
        %4620 = vmatpush1.bf16.msra.mxu0 %v4178
        %4621 = vmatprep.subr.bf16.mxu0 0
        %4622 = vmatpush1.bf16.msra.mxu0 %v4179
        %4623 = vmatprep.subr.bf16.mxu0 0
        %4624 = vmatpush1.bf16.msra.mxu0 %v4180
        %4625 = vmatprep.subr.bf16.mxu0 0
        %4626 = vmatpush1.bf16.msra.mxu0 %v4181
        %4627 = vmatprep.subr.bf16.mxu0 0
        %4628 = vmatpush1.bf16.msra.mxu0 %v4182
        %4629 = vmatprep.subr.bf16.mxu0 0
        %4630 = vmatpush1.bf16.msra.mxu0 %v4183
        %4631 = vmatprep.subr.bf16.mxu0 0
        %4632 = vmatpush1.bf16.msra.mxu0 %v4184
        %4633 = vmatprep.subr.bf16.mxu0 0
        %4634 = vmatpush1.bf16.msra.mxu0 %v4185
        %4635 = vmatprep.subr.bf16.mxu0 0
        %4636 = vmatpush1.bf16.msra.mxu0 %v4186
        %4637 = vmatprep.mubr.bf16.mxu0 %v3460
        %4638 = vmatmul.mubr.bf16.gmra.mrb[0].mxu0 %v3396
        %v4639 = vpop.f32.mrb[0].mxu0
        %v4640 = vadd.f32 %v4479, %v4639
        %v4641 = vpop.f32.mrb[0].mxu0
        %v4642 = vpop.f32.mrb[0].mxu0
        %v4643 = vadd.f32 %v4482, %v4642
        %v4644 = vpop.f32.mrb[0].mxu0
        %4645 = vmatprep.mubr.bf16.mxu0 %v3461
        %4646 = vmatmul.mubr.bf16.gmra.mrb[0].mxu0 %v3397
        %v4647 = vpop.f32.mrb[0].mxu0
        %v4648 = vadd.f32 %v4487, %v4647
        %v4649 = vpop.f32.mrb[0].mxu0
        %v4650 = vpop.f32.mrb[0].mxu0
        %v4651 = vadd.f32 %v4490, %v4650
        %v4652 = vpop.f32.mrb[0].mxu0
        %4653 = vmatprep.mubr.bf16.mxu0 %v3462
        %4654 = vmatmul.mubr.bf16.gmra.mrb[0].mxu0 %v3398
        %v4655 = vpop.f32.mrb[0].mxu0
        %v4656 = vadd.f32 %v4495, %v4655
        %v4657 = vpop.f32.mrb[0].mxu0
        %v4658 = vpop.f32.mrb[0].mxu0
        %v4659 = vadd.f32 %v4498, %v4658
        %v4660 = vpop.f32.mrb[0].mxu0
        %4661 = vmatprep.mubr.bf16.mxu0 %v3463
        %4662 = vmatmul.mubr.bf16.gmra.mrb[0].mxu0 %v3399
        %v4663 = vpop.f32.mrb[0].mxu0
        %v4664 = vadd.f32 %v4503, %v4663
        %v4665 = vpop.f32.mrb[0].mxu0
        %v4666 = vpop.f32.mrb[0].mxu0
        %v4667 = vadd.f32 %v4506, %v4666
        %v4668 = vpop.f32.mrb[0].mxu0
        %4669 = vmatprep.mubr.bf16.mxu0 %v3464
        %4670 = vmatmul.mubr.bf16.gmra.mrb[0].mxu0 %v3400
        %v4671 = vpop.f32.mrb[0].mxu0
        %v4672 = vadd.f32 %v4511, %v4671
        %v4673 = vpop.f32.mrb[0].mxu0
        %v4674 = vpop.f32.mrb[0].mxu0
        %v4675 = vadd.f32 %v4514, %v4674
        %v4676 = vpop.f32.mrb[0].mxu0
        %4677 = vmatprep.mubr.bf16.mxu0 %v3465
        %4678 = vmatmul.mubr.bf16.gmra.mrb[0].mxu0 %v3401
        %v4679 = vpop.f32.mrb[0].mxu0
        %v4680 = vadd.f32 %v4519, %v4679
        %v4681 = vpop.f32.mrb[0].mxu0
        %v4682 = vpop.f32.mrb[0].mxu0
        %v4683 = vadd.f32 %v4522, %v4682
        %v4684 = vpop.f32.mrb[0].mxu0
        %4685 = vmatprep.mubr.bf16.mxu0 %v3466
        %4686 = vmatmul.mubr.bf16.gmra.mrb[0].mxu0 %v3402
        %v4687 = vpop.f32.mrb[0].mxu0
        %v4688 = vadd.f32 %v4527, %v4687
        %v4689 = vpop.f32.mrb[0].mxu0
        %v4690 = vpop.f32.mrb[0].mxu0
        %v4691 = vadd.f32 %v4530, %v4690
        %v4692 = vpop.f32.mrb[0].mxu0
        %4693 = vmatprep.mubr.bf16.mxu0 %v3467
        %4694 = vmatmul.mubr.bf16.gmra.mrb[0].mxu0 %v3403
        %v4695 = vpop.f32.mrb[0].mxu0
        %v4696 = vadd.f32 %v4535, %v4695
        %v4697 = vpop.f32.mrb[0].mxu0
        %v4698 = vpop.f32.mrb[0].mxu0
        %v4699 = vadd.f32 %v4538, %v4698
        %v4700 = vpop.f32.mrb[0].mxu0
        %4701 = vmatprep.mubr.bf16.mxu0 %v3468
        %4702 = vmatmul.mubr.bf16.gmra.mrb[0].mxu0 %v3404
        %v4703 = vpop.f32.mrb[0].mxu0
        %v4704 = vadd.f32 %v4543, %v4703
        %v4705 = vpop.f32.mrb[0].mxu0
        %v4706 = vpop.f32.mrb[0].mxu0
        %v4707 = vadd.f32 %v4546, %v4706
        %v4708 = vpop.f32.mrb[0].mxu0
        %4709 = vmatprep.mubr.bf16.mxu0 %v3469
        %4710 = vmatmul.mubr.bf16.gmra.mrb[0].mxu0 %v3405
        %v4711 = vpop.f32.mrb[0].mxu0
        %v4712 = vadd.f32 %v4551, %v4711
        %v4713 = vpop.f32.mrb[0].mxu0
        %v4714 = vpop.f32.mrb[0].mxu0
        %v4715 = vadd.f32 %v4554, %v4714
        %v4716 = vpop.f32.mrb[0].mxu0
        %4717 = vmatprep.mubr.bf16.mxu0 %v3470
        %4718 = vmatmul.mubr.bf16.gmra.mrb[0].mxu0 %v3406
        %v4719 = vpop.f32.mrb[0].mxu0
        %v4720 = vadd.f32 %v4559, %v4719
        %v4721 = vpop.f32.mrb[0].mxu0
        %v4722 = vpop.f32.mrb[0].mxu0
        %v4723 = vadd.f32 %v4562, %v4722
        %v4724 = vpop.f32.mrb[0].mxu0
        %4725 = vmatprep.mubr.bf16.mxu0 %v3471
        %4726 = vmatmul.mubr.bf16.gmra.mrb[0].mxu0 %v3407
        %v4727 = vpop.f32.mrb[0].mxu0
        %v4728 = vadd.f32 %v4567, %v4727
        %v4729 = vpop.f32.mrb[0].mxu0
        %v4730 = vpop.f32.mrb[0].mxu0
        %v4731 = vadd.f32 %v4570, %v4730
        %v4732 = vpop.f32.mrb[0].mxu0
        %4733 = vmatprep.mubr.bf16.mxu0 %v3472
        %4734 = vmatmul.mubr.bf16.gmra.mrb[0].mxu0 %v3408
        %v4735 = vpop.f32.mrb[0].mxu0
        %v4736 = vadd.f32 %v4575, %v4735
        %v4737 = vpop.f32.mrb[0].mxu0
        %v4738 = vpop.f32.mrb[0].mxu0
        %v4739 = vadd.f32 %v4578, %v4738
        %v4740 = vpop.f32.mrb[0].mxu0
        %4741 = vmatprep.mubr.bf16.mxu0 %v3473
        %4742 = vmatmul.mubr.bf16.gmra.mrb[0].mxu0 %v3409
        %v4743 = vpop.f32.mrb[0].mxu0
        %v4744 = vadd.f32 %v4583, %v4743
        %v4745 = vpop.f32.mrb[0].mxu0
        %v4746 = vpop.f32.mrb[0].mxu0
        %v4747 = vadd.f32 %v4586, %v4746
        %v4748 = vpop.f32.mrb[0].mxu0
        %4749 = vmatprep.mubr.bf16.mxu0 %v3474
        %4750 = vmatmul.mubr.bf16.gmra.mrb[0].mxu0 %v3410
        %v4751 = vpop.f32.mrb[0].mxu0
        %v4752 = vadd.f32 %v4591, %v4751
        %v4753 = vpop.f32.mrb[0].mxu0
        %v4754 = vpop.f32.mrb[0].mxu0
        %v4755 = vadd.f32 %v4594, %v4754
        %v4756 = vpop.f32.mrb[0].mxu0
        %4757 = vmatprep.mubr.bf16.mxu0 %v3475
        %4758 = vmatmul.mubr.bf16.gmra.mrb[0].mxu0 %v3411
        %v4759 = vpop.f32.mrb[0].mxu0
        %v4760 = vadd.f32 %v4599, %v4759
        %v4761 = vpop.f32.mrb[0].mxu0
        %v4762 = vpop.f32.mrb[0].mxu0
        %v4763 = vadd.f32 %v4602, %v4762
        %v4764 = vpop.f32.mrb[0].mxu0
        %4765 = vdwg.mxu0
        %4766 = vmatprep.subr.bf16.mxu0 0
        %4767 = vmatpush1.bf16.msra.mxu0 %v4187
        %4768 = vmatprep.subr.bf16.mxu0 0
        %4769 = vmatpush1.bf16.msra.mxu0 %v4188
        %4770 = vmatprep.subr.bf16.mxu0 0
        %4771 = vmatpush1.bf16.msra.mxu0 %v4189
        %4772 = vmatprep.subr.bf16.mxu0 0
        %4773 = vmatpush1.bf16.msra.mxu0 %v4190
        %4774 = vmatprep.subr.bf16.mxu0 0
        %4775 = vmatpush1.bf16.msra.mxu0 %v4191
        %4776 = vmatprep.subr.bf16.mxu0 0
        %4777 = vmatpush1.bf16.msra.mxu0 %v4192
        %4778 = vmatprep.subr.bf16.mxu0 0
        %4779 = vmatpush1.bf16.msra.mxu0 %v4193
        %4780 = vmatprep.subr.bf16.mxu0 0
        %4781 = vmatpush1.bf16.msra.mxu0 %v4194
        %4782 = vmatprep.subr.bf16.mxu0 0
        %4783 = vmatpush1.bf16.msra.mxu0 %v4195
        %4784 = vmatprep.subr.bf16.mxu0 0
        %4785 = vmatpush1.bf16.msra.mxu0 %v4196
        %4786 = vmatprep.subr.bf16.mxu0 0
        %4787 = vmatpush1.bf16.msra.mxu0 %v4197
        %4788 = vmatprep.subr.bf16.mxu0 0
        %4789 = vmatpush1.bf16.msra.mxu0 %v4198
        %4790 = vmatprep.subr.bf16.mxu0 0
        %4791 = vmatpush1.bf16.msra.mxu0 %v4199
        %4792 = vmatprep.subr.bf16.mxu0 0
        %4793 = vmatpush1.bf16.msra.mxu0 %v4200
        %4794 = vmatprep.subr.bf16.mxu0 0
        %4795 = vmatpush1.bf16.msra.mxu0 %v4201
        %4796 = vmatprep.subr.bf16.mxu0 0
        %4797 = vmatpush1.bf16.msra.mxu0 %v4202
        %4798 = vmatprep.mubr.bf16.mxu0 %v3604
        %4799 = vmatmul.mubr.bf16.gmra.mrb[0].mxu0 %v3540
        %v4800 = vpop.f32.mrb[0].mxu0
        %v4801 = vadd.f32 %v4640, %v4800
        %v4802 = vpop.f32.mrb[0].mxu0
        %v4803 = vpop.f32.mrb[0].mxu0
        %v4804 = vadd.f32 %v4643, %v4803
        %v4805 = vpop.f32.mrb[0].mxu0
        %4806 = vmatprep.mubr.bf16.mxu0 %v3605
        %4807 = vmatmul.mubr.bf16.gmra.mrb[0].mxu0 %v3541
        %v4808 = vpop.f32.mrb[0].mxu0
        %v4809 = vadd.f32 %v4648, %v4808
        %v4810 = vpop.f32.mrb[0].mxu0
        %v4811 = vpop.f32.mrb[0].mxu0
        %v4812 = vadd.f32 %v4651, %v4811
        %v4813 = vpop.f32.mrb[0].mxu0
        %4814 = vmatprep.mubr.bf16.mxu0 %v3606
        %4815 = vmatmul.mubr.bf16.gmra.mrb[0].mxu0 %v3542
        %v4816 = vpop.f32.mrb[0].mxu0
        %v4817 = vadd.f32 %v4656, %v4816
        %v4818 = vpop.f32.mrb[0].mxu0
        %v4819 = vpop.f32.mrb[0].mxu0
        %v4820 = vadd.f32 %v4659, %v4819
        %v4821 = vpop.f32.mrb[0].mxu0
        %4822 = vmatprep.mubr.bf16.mxu0 %v3607
        %4823 = vmatmul.mubr.bf16.gmra.mrb[0].mxu0 %v3543
        %v4824 = vpop.f32.mrb[0].mxu0
        %v4825 = vadd.f32 %v4664, %v4824
        %v4826 = vpop.f32.mrb[0].mxu0
        %v4827 = vpop.f32.mrb[0].mxu0
        %v4828 = vadd.f32 %v4667, %v4827
        %v4829 = vpop.f32.mrb[0].mxu0
        %4830 = vmatprep.mubr.bf16.mxu0 %v3608
        %4831 = vmatmul.mubr.bf16.gmra.mrb[0].mxu0 %v3544
        %v4832 = vpop.f32.mrb[0].mxu0
        %v4833 = vadd.f32 %v4672, %v4832
        %v4834 = vpop.f32.mrb[0].mxu0
        %v4835 = vpop.f32.mrb[0].mxu0
        %v4836 = vadd.f32 %v4675, %v4835
        %v4837 = vpop.f32.mrb[0].mxu0
        %4838 = vmatprep.mubr.bf16.mxu0 %v3609
        %4839 = vmatmul.mubr.bf16.gmra.mrb[0].mxu0 %v3545
        %v4840 = vpop.f32.mrb[0].mxu0
        %v4841 = vadd.f32 %v4680, %v4840
        %v4842 = vpop.f32.mrb[0].mxu0
        %v4843 = vpop.f32.mrb[0].mxu0
        %v4844 = vadd.f32 %v4683, %v4843
        %v4845 = vpop.f32.mrb[0].mxu0
        %4846 = vmatprep.mubr.bf16.mxu0 %v3610
        %4847 = vmatmul.mubr.bf16.gmra.mrb[0].mxu0 %v3546
        %v4848 = vpop.f32.mrb[0].mxu0
        %v4849 = vadd.f32 %v4688, %v4848
        %v4850 = vpop.f32.mrb[0].mxu0
        %v4851 = vpop.f32.mrb[0].mxu0
        %v4852 = vadd.f32 %v4691, %v4851
        %v4853 = vpop.f32.mrb[0].mxu0
        %4854 = vmatprep.mubr.bf16.mxu0 %v3611
        %4855 = vmatmul.mubr.bf16.gmra.mrb[0].mxu0 %v3547
        %v4856 = vpop.f32.mrb[0].mxu0
        %v4857 = vadd.f32 %v4696, %v4856
        %v4858 = vpop.f32.mrb[0].mxu0
        %v4859 = vpop.f32.mrb[0].mxu0
        %v4860 = vadd.f32 %v4699, %v4859
        %v4861 = vpop.f32.mrb[0].mxu0
        %4862 = vmatprep.mubr.bf16.mxu0 %v3612
        %4863 = vmatmul.mubr.bf16.gmra.mrb[0].mxu0 %v3548
        %v4864 = vpop.f32.mrb[0].mxu0
        %v4865 = vadd.f32 %v4704, %v4864
        %v4866 = vpop.f32.mrb[0].mxu0
        %v4867 = vpop.f32.mrb[0].mxu0
        %v4868 = vadd.f32 %v4707, %v4867
        %v4869 = vpop.f32.mrb[0].mxu0
        %4870 = vmatprep.mubr.bf16.mxu0 %v3613
        %4871 = vmatmul.mubr.bf16.gmra.mrb[0].mxu0 %v3549
        %v4872 = vpop.f32.mrb[0].mxu0
        %v4873 = vadd.f32 %v4712, %v4872
        %v4874 = vpop.f32.mrb[0].mxu0
        %v4875 = vpop.f32.mrb[0].mxu0
        %v4876 = vadd.f32 %v4715, %v4875
        %v4877 = vpop.f32.mrb[0].mxu0
        %4878 = vmatprep.mubr.bf16.mxu0 %v3614
        %4879 = vmatmul.mubr.bf16.gmra.mrb[0].mxu0 %v3550
        %v4880 = vpop.f32.mrb[0].mxu0
        %v4881 = vadd.f32 %v4720, %v4880
        %v4882 = vpop.f32.mrb[0].mxu0
        %v4883 = vpop.f32.mrb[0].mxu0
        %v4884 = vadd.f32 %v4723, %v4883
        %v4885 = vpop.f32.mrb[0].mxu0
        %4886 = vmatprep.mubr.bf16.mxu0 %v3615
        %4887 = vmatmul.mubr.bf16.gmra.mrb[0].mxu0 %v3551
        %v4888 = vpop.f32.mrb[0].mxu0
        %v4889 = vadd.f32 %v4728, %v4888
        %v4890 = vpop.f32.mrb[0].mxu0
        %v4891 = vpop.f32.mrb[0].mxu0
        %v4892 = vadd.f32 %v4731, %v4891
        %v4893 = vpop.f32.mrb[0].mxu0
        %4894 = vmatprep.mubr.bf16.mxu0 %v3616
        %4895 = vmatmul.mubr.bf16.gmra.mrb[0].mxu0 %v3552
        %v4896 = vpop.f32.mrb[0].mxu0
        %v4897 = vadd.f32 %v4736, %v4896
        %v4898 = vpop.f32.mrb[0].mxu0
        %v4899 = vpop.f32.mrb[0].mxu0
        %v4900 = vadd.f32 %v4739, %v4899
        %v4901 = vpop.f32.mrb[0].mxu0
        %4902 = vmatprep.mubr.bf16.mxu0 %v3617
        %4903 = vmatmul.mubr.bf16.gmra.mrb[0].mxu0 %v3553
        %v4904 = vpop.f32.mrb[0].mxu0
        %v4905 = vadd.f32 %v4744, %v4904
        %v4906 = vpop.f32.mrb[0].mxu0
        %v4907 = vpop.f32.mrb[0].mxu0
        %v4908 = vadd.f32 %v4747, %v4907
        %v4909 = vpop.f32.mrb[0].mxu0
        %4910 = vmatprep.mubr.bf16.mxu0 %v3618
        %4911 = vmatmul.mubr.bf16.gmra.mrb[0].mxu0 %v3554
        %v4912 = vpop.f32.mrb[0].mxu0
        %v4913 = vadd.f32 %v4752, %v4912
        %v4914 = vpop.f32.mrb[0].mxu0
        %v4915 = vpop.f32.mrb[0].mxu0
        %v4916 = vadd.f32 %v4755, %v4915
        %v4917 = vpop.f32.mrb[0].mxu0
        %4918 = vmatprep.mubr.bf16.mxu0 %v3619
        %4919 = vmatmul.mubr.bf16.gmra.mrb[0].mxu0 %v3555
        %v4920 = vpop.f32.mrb[0].mxu0
        %v4921 = vadd.f32 %v4760, %v4920
        %v4922 = vpop.f32.mrb[0].mxu0
        %v4923 = vpop.f32.mrb[0].mxu0
        %v4924 = vadd.f32 %v4763, %v4923
        %v4925 = vpop.f32.mrb[0].mxu0
        %4926 = vdwg.mxu0
        %4927 = vmatprep.subr.bf16.mxu0 0
        %4928 = vmatpush1.bf16.msra.mxu0 %v4203
        %4929 = vmatprep.subr.bf16.mxu0 0
        %4930 = vmatpush1.bf16.msra.mxu0 %v4204
        %4931 = vmatprep.subr.bf16.mxu0 0
        %4932 = vmatpush1.bf16.msra.mxu0 %v4205
        %4933 = vmatprep.subr.bf16.mxu0 0
        %4934 = vmatpush1.bf16.msra.mxu0 %v4206
        %4935 = vmatprep.subr.bf16.mxu0 0
        %4936 = vmatpush1.bf16.msra.mxu0 %v4207
        %4937 = vmatprep.subr.bf16.mxu0 0
        %4938 = vmatpush1.bf16.msra.mxu0 %v4208
        %4939 = vmatprep.subr.bf16.mxu0 0
        %4940 = vmatpush1.bf16.msra.mxu0 %v4209
        %4941 = vmatprep.subr.bf16.mxu0 0
        %4942 = vmatpush1.bf16.msra.mxu0 %v4210
        %4943 = vmatprep.subr.bf16.mxu0 0
        %4944 = vmatpush1.bf16.msra.mxu0 0
        %4945 = vmatprep.subr.bf16.mxu0 0
        %4946 = vmatpush1.bf16.msra.mxu0 0
        %4947 = vmatprep.subr.bf16.mxu0 0
        %4948 = vmatpush1.bf16.msra.mxu0 0
        %4949 = vmatprep.subr.bf16.mxu0 0
        %4950 = vmatpush1.bf16.msra.mxu0 0
        %4951 = vmatprep.subr.bf16.mxu0 0
        %4952 = vmatpush1.bf16.msra.mxu0 0
        %4953 = vmatprep.subr.bf16.mxu0 0
        %4954 = vmatpush1.bf16.msra.mxu0 0
        %4955 = vmatprep.subr.bf16.mxu0 0
        %4956 = vmatpush1.bf16.msra.mxu0 0
        %4957 = vmatprep.subr.bf16.mxu0 0
        %4958 = vmatpush1.bf16.msra.mxu0 0
        %4959 = vmatprep.mubr.bf16.mxu0 0
        %4960 = vmatmul.mubr.bf16.gmra.mrb[0].mxu0 %v3668
        %v4961 = vpop.f32.mrb[0].mxu0
        %v4962 = vadd.f32 %v4801, %v4961
        %v4963 = vpop.f32.mrb[0].mxu0
        %v4964 = vpop.f32.mrb[0].mxu0
        %v4965 = vadd.f32 %v4804, %v4964
        %v4966 = vpop.f32.mrb[0].mxu0
        %4967 = vmatprep.mubr.bf16.mxu0 0
        %4968 = vmatmul.mubr.bf16.gmra.mrb[0].mxu0 %v3669
        %v4969 = vpop.f32.mrb[0].mxu0
        %v4970 = vadd.f32 %v4809, %v4969
        %v4971 = vpop.f32.mrb[0].mxu0
        %v4972 = vpop.f32.mrb[0].mxu0
        %v4973 = vadd.f32 %v4812, %v4972
        %v4974 = vpop.f32.mrb[0].mxu0
        %4975 = vmatprep.mubr.bf16.mxu0 0
        %4976 = vmatmul.mubr.bf16.gmra.mrb[0].mxu0 %v3670
        %v4977 = vpop.f32.mrb[0].mxu0
        %v4978 = vadd.f32 %v4817, %v4977
        %v4979 = vpop.f32.mrb[0].mxu0
        %v4980 = vpop.f32.mrb[0].mxu0
        %v4981 = vadd.f32 %v4820, %v4980
        %v4982 = vpop.f32.mrb[0].mxu0
        %4983 = vmatprep.mubr.bf16.mxu0 0
        %4984 = vmatmul.mubr.bf16.gmra.mrb[0].mxu0 %v3671
        %v4985 = vpop.f32.mrb[0].mxu0
        %v4986 = vadd.f32 %v4825, %v4985
        %v4987 = vpop.f32.mrb[0].mxu0
        %v4988 = vpop.f32.mrb[0].mxu0
        %v4989 = vadd.f32 %v4828, %v4988
        %v4990 = vpop.f32.mrb[0].mxu0
        %4991 = vmatprep.mubr.bf16.mxu0 0
        %4992 = vmatmul.mubr.bf16.gmra.mrb[0].mxu0 %v3672
        %v4993 = vpop.f32.mrb[0].mxu0
        %v4994 = vadd.f32 %v4833, %v4993
        %v4995 = vpop.f32.mrb[0].mxu0
        %v4996 = vpop.f32.mrb[0].mxu0
        %v4997 = vadd.f32 %v4836, %v4996
        %v4998 = vpop.f32.mrb[0].mxu0
        %4999 = vmatprep.mubr.bf16.mxu0 0
        %5000 = vmatmul.mubr.bf16.gmra.mrb[0].mxu0 %v3673
        %v5001 = vpop.f32.mrb[0].mxu0
        %v5002 = vadd.f32 %v4841, %v5001
        %v5003 = vpop.f32.mrb[0].mxu0
        %v5004 = vpop.f32.mrb[0].mxu0
        %v5005 = vadd.f32 %v4844, %v5004
        %v5006 = vpop.f32.mrb[0].mxu0
        %5007 = vmatprep.mubr.bf16.mxu0 0
        %5008 = vmatmul.mubr.bf16.gmra.mrb[0].mxu0 %v3674
        %v5009 = vpop.f32.mrb[0].mxu0
        %v5010 = vadd.f32 %v4849, %v5009
        %v5011 = vpop.f32.mrb[0].mxu0
        %v5012 = vpop.f32.mrb[0].mxu0
        %v5013 = vadd.f32 %v4852, %v5012
        %v5014 = vpop.f32.mrb[0].mxu0
        %5015 = vmatprep.mubr.bf16.mxu0 0
        %5016 = vmatmul.mubr.bf16.gmra.mrb[0].mxu0 %v3675
        %v5017 = vpop.f32.mrb[0].mxu0
        %v5018 = vadd.f32 %v4857, %v5017
        %v5019 = vpop.f32.mrb[0].mxu0
        %v5020 = vpop.f32.mrb[0].mxu0
        %v5021 = vadd.f32 %v4860, %v5020
        %v5022 = vpop.f32.mrb[0].mxu0
        %5023 = vmatprep.mubr.bf16.mxu0 0
        %5024 = vmatmul.mubr.bf16.gmra.mrb[0].mxu0 %v3676
        %v5025 = vpop.f32.mrb[0].mxu0
        %v5026 = vadd.f32 %v4865, %v5025
        %v5027 = vpop.f32.mrb[0].mxu0
        %v5028 = vpop.f32.mrb[0].mxu0
        %v5029 = vadd.f32 %v4868, %v5028
        %v5030 = vpop.f32.mrb[0].mxu0
        %5031 = vmatprep.mubr.bf16.mxu0 0
        %5032 = vmatmul.mubr.bf16.gmra.mrb[0].mxu0 %v3677
        %v5033 = vpop.f32.mrb[0].mxu0
        %v5034 = vadd.f32 %v4873, %v5033
        %v5035 = vpop.f32.mrb[0].mxu0
        %v5036 = vpop.f32.mrb[0].mxu0
        %v5037 = vadd.f32 %v4876, %v5036
        %v5038 = vpop.f32.mrb[0].mxu0
        %5039 = vmatprep.mubr.bf16.mxu0 0
        %5040 = vmatmul.mubr.bf16.gmra.mrb[0].mxu0 %v3678
        %v5041 = vpop.f32.mrb[0].mxu0
        %v5042 = vadd.f32 %v4881, %v5041
        %v5043 = vpop.f32.mrb[0].mxu0
        %v5044 = vpop.f32.mrb[0].mxu0
        %v5045 = vadd.f32 %v4884, %v5044
        %v5046 = vpop.f32.mrb[0].mxu0
        %5047 = vmatprep.mubr.bf16.mxu0 0
        %5048 = vmatmul.mubr.bf16.gmra.mrb[0].mxu0 %v3679
        %v5049 = vpop.f32.mrb[0].mxu0
        %v5050 = vadd.f32 %v4889, %v5049
        %v5051 = vpop.f32.mrb[0].mxu0
        %v5052 = vpop.f32.mrb[0].mxu0
        %v5053 = vadd.f32 %v4892, %v5052
        %v5054 = vpop.f32.mrb[0].mxu0
        %5055 = vmatprep.mubr.bf16.mxu0 0
        %5056 = vmatmul.mubr.bf16.gmra.mrb[0].mxu0 %v3680
        %v5057 = vpop.f32.mrb[0].mxu0
        %v5058 = vadd.f32 %v4897, %v5057
        %v5059 = vpop.f32.mrb[0].mxu0
        %v5060 = vpop.f32.mrb[0].mxu0
        %v5061 = vadd.f32 %v4900, %v5060
        %v5062 = vpop.f32.mrb[0].mxu0
        %5063 = vmatprep.mubr.bf16.mxu0 0
        %5064 = vmatmul.mubr.bf16.gmra.mrb[0].mxu0 %v3681
        %v5065 = vpop.f32.mrb[0].mxu0
        %v5066 = vadd.f32 %v4905, %v5065
        %v5067 = vpop.f32.mrb[0].mxu0
        %v5068 = vpop.f32.mrb[0].mxu0
        %v5069 = vadd.f32 %v4908, %v5068
        %v5070 = vpop.f32.mrb[0].mxu0
        %5071 = vmatprep.mubr.bf16.mxu0 0
        %5072 = vmatmul.mubr.bf16.gmra.mrb[0].mxu0 %v3682
        %v5073 = vpop.f32.mrb[0].mxu0
        %v5074 = vadd.f32 %v4913, %v5073
        %v5075 = vpop.f32.mrb[0].mxu0
        %v5076 = vpop.f32.mrb[0].mxu0
        %v5077 = vadd.f32 %v4916, %v5076
        %v5078 = vpop.f32.mrb[0].mxu0
        %5079 = vmatprep.mubr.bf16.mxu0 0
        %5080 = vmatmul.mubr.bf16.gmra.mrb[0].mxu0 %v3683
        %v5081 = vpop.f32.mrb[0].mxu0
        %v5082 = vadd.f32 %v4921, %v5081
        %v5083 = vpop.f32.mrb[0].mxu0
        %v5084 = vpop.f32.mrb[0].mxu0
        %v5085 = vadd.f32 %v4924, %v5084
        %v5086 = vpop.f32.mrb[0].mxu0
        %5087 = vdwg.mxu0
        %v5088 = vmax.f32 %v4962, 0.0
        %v5089 = vmax.f32 %v4965, 0.0
        %v5090 = vmax.f32 %v4970, 0.0
        %v5091 = vmax.f32 %v4973, 0.0
        %v5092 = vmax.f32 %v4978, 0.0
        %v5093 = vmax.f32 %v4981, 0.0
        %v5094 = vmax.f32 %v4986, 0.0
        %v5095 = vmax.f32 %v4989, 0.0
        %v5096 = vmax.f32 %v4994, 0.0
        %v5097 = vmax.f32 %v4997, 0.0
        %v5098 = vmax.f32 %v5002, 0.0
        %v5099 = vmax.f32 %v5005, 0.0
        %v5100 = vmax.f32 %v5010, 0.0
        %v5101 = vmax.f32 %v5013, 0.0
        %v5102 = vmax.f32 %v5018, 0.0
        %v5103 = vmax.f32 %v5021, 0.0
        %v5104 = vmax.f32 %v5026, 0.0
        %v5105 = vmax.f32 %v5029, 0.0
        %v5106 = vmax.f32 %v5034, 0.0
        %v5107 = vmax.f32 %v5037, 0.0
        %v5108 = vmax.f32 %v5042, 0.0
        %v5109 = vmax.f32 %v5045, 0.0
        %v5110 = vmax.f32 %v5050, 0.0
        %v5111 = vmax.f32 %v5053, 0.0
        %v5112 = vmax.f32 %v5058, 0.0
        %v5113 = vmax.f32 %v5061, 0.0
        %v5114 = vmax.f32 %v5066, 0.0
        %v5115 = vmax.f32 %v5069, 0.0
        %v5116 = vmax.f32 %v5074, 0.0
        %v5117 = vmax.f32 %v5077, 0.0
        %v5118 = vmax.f32 %v5082, 0.0
        %v5119 = vmax.f32 %v5085, 0.0
        %v5120 = vpack.c.bf16 %v5089, %v5088
        %v5121 = vpack.c.bf16 %v5091, %v5090
        %v5122 = vpack.c.bf16 %v5093, %v5092
        %v5123 = vpack.c.bf16 %v5095, %v5094
        %v5124 = vpack.c.bf16 %v5097, %v5096
        %v5125 = vpack.c.bf16 %v5099, %v5098
        %v5126 = vpack.c.bf16 %v5101, %v5100
        %v5127 = vpack.c.bf16 %v5103, %v5102
        %v5128 = vpack.c.bf16 %v5105, %v5104
        %v5129 = vpack.c.bf16 %v5107, %v5106
        %v5130 = vpack.c.bf16 %v5109, %v5108
        %v5131 = vpack.c.bf16 %v5111, %v5110
        %v5132 = vpack.c.bf16 %v5113, %v5112
        %v5133 = vpack.c.bf16 %v5115, %v5114
        %v5134 = vpack.c.bf16 %v5117, %v5116
        %v5135 = vpack.c.bf16 %v5119, %v5118
        %v5136 = vld [vmem:[#allocation9] sm:$0xf]
        %v5137 = vld [vmem:[#allocation9 + $0x4] sm:$0xf]
        %v5138 = vld [vmem:[#allocation9 + $0x8] sm:$0xf]
        %v5139 = vld [vmem:[#allocation9 + $0xc] sm:$0xf]
        %v5140 = vld [vmem:[#allocation9 + $0x10] sm:$0xf]
        %v5141 = vld [vmem:[#allocation9 + $0x14] sm:$0xf]
        %v5142 = vld [vmem:[#allocation9 + $0x18] sm:$0xf]
        %v5143 = vld [vmem:[#allocation9 + $0x1c] sm:$0xf]
        %v5144 = vld [vmem:[#allocation9 + $0x20] sm:$0xf]
        %v5145 = vld [vmem:[#allocation9 + $0x24] sm:$0xf]
        %v5146 = vld [vmem:[#allocation9 + $0x28] sm:$0xf]
        %v5147 = vld [vmem:[#allocation9 + $0x2c] sm:$0xf]
        %v5148 = vld [vmem:[#allocation9 + $0x30] sm:$0xf]
        %v5149 = vld [vmem:[#allocation9 + $0x34] sm:$0xf]
        %v5150 = vld [vmem:[#allocation9 + $0x38] sm:$0xf]
        %v5151 = vld [vmem:[#allocation9 + $0x3c] sm:$0xf]
        %v5152 = vld [vmem:[%s6] sm:$0x1]
        %v5154 = vlaneseq
        %v5155 = vshrl.u32 %v5154, 7
        %v5156 = vsub.s32 0, %v5155
        %v5157 = vrot.slane %v5152, %v5156
        %v5175 = vunpack.c.l.b16 %v5136
        %v5176 = vunpack.c.l.b16 %v5137
        %v5177 = vunpack.c.l.b16 %v5138
        %v5178 = vunpack.c.l.b16 %v5139
        %v5179 = vunpack.c.l.b16 %v5140
        %v5180 = vunpack.c.l.b16 %v5141
        %v5181 = vunpack.c.l.b16 %v5142
        %v5182 = vunpack.c.l.b16 %v5143
        %v5183 = vunpack.c.l.b16 %v5144
        %v5184 = vunpack.c.l.b16 %v5145
        %v5185 = vunpack.c.l.b16 %v5146
        %v5186 = vunpack.c.l.b16 %v5147
        %v5187 = vunpack.c.l.b16 %v5148
        %v5188 = vunpack.c.l.b16 %v5149
        %v5189 = vunpack.c.l.b16 %v5150
        %v5190 = vunpack.c.l.b16 %v5151
        %v5191 = vpack.c.b16 %v5176, %v5175
        %v5192 = vpack.c.b16 %v5178, %v5177
        %v5193 = vpack.c.b16 %v5180, %v5179
        %v5194 = vpack.c.b16 %v5182, %v5181
        %v5195 = vpack.c.b16 %v5184, %v5183
        %v5196 = vpack.c.b16 %v5186, %v5185
        %v5197 = vpack.c.b16 %v5188, %v5187
        %v5198 = vpack.c.b16 %v5190, %v5189
        %5207 = vmatprep.subr.bf16.mxu0 0
        %5208 = vmatpush1.bf16.msra.mxu0 %v5191
        %5209 = vmatprep.subr.bf16.mxu0 0
        %5210 = vmatpush1.bf16.msra.mxu0 %v5192
        %5211 = vmatprep.subr.bf16.mxu0 0
        %5212 = vmatpush1.bf16.msra.mxu0 %v5193
        %5213 = vmatprep.subr.bf16.mxu0 0
        %5214 = vmatpush1.bf16.msra.mxu0 %v5194
        %5215 = vmatprep.subr.bf16.mxu0 0
        %5216 = vmatpush1.bf16.msra.mxu0 %v5195
        %5217 = vmatprep.subr.bf16.mxu0 0
        %5218 = vmatpush1.bf16.msra.mxu0 %v5196
        %5219 = vmatprep.subr.bf16.mxu0 0
        %5220 = vmatpush1.bf16.msra.mxu0 %v5197
        %5221 = vmatprep.subr.bf16.mxu0 0
        %5222 = vmatpush1.bf16.msra.mxu0 %v5198
        %5223 = vmatprep.subr.bf16.mxu0 0
        %5224 = vmatpush1.bf16.msra.mxu0 0
        %5225 = vmatprep.subr.bf16.mxu0 0
        %5226 = vmatpush1.bf16.msra.mxu0 0
        %5227 = vmatprep.subr.bf16.mxu0 0
        %5228 = vmatpush1.bf16.msra.mxu0 0
        %5229 = vmatprep.subr.bf16.mxu0 0
        %5230 = vmatpush1.bf16.msra.mxu0 0
        %5231 = vmatprep.subr.bf16.mxu0 0
        %5232 = vmatpush1.bf16.msra.mxu0 0
        %5233 = vmatprep.subr.bf16.mxu0 0
        %5234 = vmatpush1.bf16.msra.mxu0 0
        %5235 = vmatprep.subr.bf16.mxu0 0
        %5236 = vmatpush1.bf16.msra.mxu0 0
        %5237 = vmatprep.subr.bf16.mxu0 0
        %5238 = vmatpush1.bf16.msra.mxu0 0
        %5239 = vmatprep.mubr.bf16.mxu0 0
        %5240 = vmatmul.mubr.bf16.gmra.mrb[0].mxu0 %v5120
        %v5241 = vpop.f32.mrb[0].mxu0
        %v5242 = vadd.f32 %v5157, %v5241
        %v5243 = vpop.f32.mrb[0].mxu0
        %v5244 = vpop.f32.mrb[0].mxu0
        %v5245 = vadd.f32 %v5157, %v5244
        %v5246 = vpop.f32.mrb[0].mxu0
        %5247 = vmatprep.mubr.bf16.mxu0 0
        %5248 = vmatmul.mubr.bf16.gmra.mrb[0].mxu0 %v5121
        %v5249 = vpop.f32.mrb[0].mxu0
        %v5250 = vadd.f32 %v5157, %v5249
        %v5251 = vpop.f32.mrb[0].mxu0
        %v5252 = vpop.f32.mrb[0].mxu0
        %v5253 = vadd.f32 %v5157, %v5252
        %v5254 = vpop.f32.mrb[0].mxu0
        %5255 = vmatprep.mubr.bf16.mxu0 0
        %5256 = vmatmul.mubr.bf16.gmra.mrb[0].mxu0 %v5122
        %v5257 = vpop.f32.mrb[0].mxu0
        %v5258 = vadd.f32 %v5157, %v5257
        %v5259 = vpop.f32.mrb[0].mxu0
        %v5260 = vpop.f32.mrb[0].mxu0
        %v5261 = vadd.f32 %v5157, %v5260
        %v5262 = vpop.f32.mrb[0].mxu0
        %5263 = vmatprep.mubr.bf16.mxu0 0
        %5264 = vmatmul.mubr.bf16.gmra.mrb[0].mxu0 %v5123
        %v5265 = vpop.f32.mrb[0].mxu0
        %v5266 = vadd.f32 %v5157, %v5265
        %v5267 = vpop.f32.mrb[0].mxu0
        %v5268 = vpop.f32.mrb[0].mxu0
        %v5269 = vadd.f32 %v5157, %v5268
        %v5270 = vpop.f32.mrb[0].mxu0
        %5271 = vmatprep.mubr.bf16.mxu0 0
        %5272 = vmatmul.mubr.bf16.gmra.mrb[0].mxu0 %v5124
        %v5273 = vpop.f32.mrb[0].mxu0
        %v5274 = vadd.f32 %v5157, %v5273
        %v5275 = vpop.f32.mrb[0].mxu0
        %v5276 = vpop.f32.mrb[0].mxu0
        %v5277 = vadd.f32 %v5157, %v5276
        %v5278 = vpop.f32.mrb[0].mxu0
        %5279 = vmatprep.mubr.bf16.mxu0 0
        %5280 = vmatmul.mubr.bf16.gmra.mrb[0].mxu0 %v5125
        %v5281 = vpop.f32.mrb[0].mxu0
        %v5282 = vadd.f32 %v5157, %v5281
        %v5283 = vpop.f32.mrb[0].mxu0
        %v5284 = vpop.f32.mrb[0].mxu0
        %v5285 = vadd.f32 %v5157, %v5284
        %v5286 = vpop.f32.mrb[0].mxu0
        %5287 = vmatprep.mubr.bf16.mxu0 0
        %5288 = vmatmul.mubr.bf16.gmra.mrb[0].mxu0 %v5126
        %v5289 = vpop.f32.mrb[0].mxu0
        %v5290 = vadd.f32 %v5157, %v5289
        %v5291 = vpop.f32.mrb[0].mxu0
        %v5292 = vpop.f32.mrb[0].mxu0
        %v5293 = vadd.f32 %v5157, %v5292
        %v5294 = vpop.f32.mrb[0].mxu0
        %5295 = vmatprep.mubr.bf16.mxu0 0
        %5296 = vmatmul.mubr.bf16.gmra.mrb[0].mxu0 %v5127
        %v5297 = vpop.f32.mrb[0].mxu0
        %v5298 = vadd.f32 %v5157, %v5297
        %v5299 = vpop.f32.mrb[0].mxu0
        %v5300 = vpop.f32.mrb[0].mxu0
        %v5301 = vadd.f32 %v5157, %v5300
        %v5302 = vpop.f32.mrb[0].mxu0
        %5303 = vmatprep.mubr.bf16.mxu0 0
        %5304 = vmatmul.mubr.bf16.gmra.mrb[0].mxu0 %v5128
        %v5305 = vpop.f32.mrb[0].mxu0
        %v5306 = vadd.f32 %v5157, %v5305
        %v5307 = vpop.f32.mrb[0].mxu0
        %v5308 = vpop.f32.mrb[0].mxu0
        %v5309 = vadd.f32 %v5157, %v5308
        %v5310 = vpop.f32.mrb[0].mxu0
        %5311 = vmatprep.mubr.bf16.mxu0 0
        %5312 = vmatmul.mubr.bf16.gmra.mrb[0].mxu0 %v5129
        %v5313 = vpop.f32.mrb[0].mxu0
        %v5314 = vadd.f32 %v5157, %v5313
        %v5315 = vpop.f32.mrb[0].mxu0
        %v5316 = vpop.f32.mrb[0].mxu0
        %v5317 = vadd.f32 %v5157, %v5316
        %v5318 = vpop.f32.mrb[0].mxu0
        %5319 = vmatprep.mubr.bf16.mxu0 0
        %5320 = vmatmul.mubr.bf16.gmra.mrb[0].mxu0 %v5130
        %v5321 = vpop.f32.mrb[0].mxu0
        %v5322 = vadd.f32 %v5157, %v5321
        %v5323 = vpop.f32.mrb[0].mxu0
        %v5324 = vpop.f32.mrb[0].mxu0
        %v5325 = vadd.f32 %v5157, %v5324
        %v5326 = vpop.f32.mrb[0].mxu0
        %5327 = vmatprep.mubr.bf16.mxu0 0
        %5328 = vmatmul.mubr.bf16.gmra.mrb[0].mxu0 %v5131
        %v5329 = vpop.f32.mrb[0].mxu0
        %v5330 = vadd.f32 %v5157, %v5329
        %v5331 = vpop.f32.mrb[0].mxu0
        %v5332 = vpop.f32.mrb[0].mxu0
        %v5333 = vadd.f32 %v5157, %v5332
        %v5334 = vpop.f32.mrb[0].mxu0
        %5335 = vmatprep.mubr.bf16.mxu0 0
        %5336 = vmatmul.mubr.bf16.gmra.mrb[0].mxu0 %v5132
        %v5337 = vpop.f32.mrb[0].mxu0
        %v5338 = vadd.f32 %v5157, %v5337
        %v5339 = vpop.f32.mrb[0].mxu0
        %v5340 = vpop.f32.mrb[0].mxu0
        %v5341 = vadd.f32 %v5157, %v5340
        %v5342 = vpop.f32.mrb[0].mxu0
        %5343 = vmatprep.mubr.bf16.mxu0 0
        %5344 = vmatmul.mubr.bf16.gmra.mrb[0].mxu0 %v5133
        %v5345 = vpop.f32.mrb[0].mxu0
        %v5346 = vadd.f32 %v5157, %v5345
        %v5347 = vpop.f32.mrb[0].mxu0
        %v5348 = vpop.f32.mrb[0].mxu0
        %v5349 = vadd.f32 %v5157, %v5348
        %v5350 = vpop.f32.mrb[0].mxu0
        %5351 = vmatprep.mubr.bf16.mxu0 0
        %5352 = vmatmul.mubr.bf16.gmra.mrb[0].mxu0 %v5134
        %v5353 = vpop.f32.mrb[0].mxu0
        %v5354 = vadd.f32 %v5157, %v5353
        %v5355 = vpop.f32.mrb[0].mxu0
        %v5356 = vpop.f32.mrb[0].mxu0
        %v5357 = vadd.f32 %v5157, %v5356
        %v5358 = vpop.f32.mrb[0].mxu0
        %5359 = vmatprep.mubr.bf16.mxu0 0
        %5360 = vmatmul.mubr.bf16.gmra.mrb[0].mxu0 %v5135
        %v5361 = vpop.f32.mrb[0].mxu0
        %v5362 = vadd.f32 %v5157, %v5361
        %v5363 = vpop.f32.mrb[0].mxu0
        %v5364 = vpop.f32.mrb[0].mxu0
        %v5365 = vadd.f32 %v5157, %v5364
        %v5366 = vpop.f32.mrb[0].mxu0
        %5367 = vdwg.mxu0
        %v5368 = vadd.f32 %v5242, %v342
        %v5369 = vadd.f32 %v5245, %v343
        %v5370 = vadd.f32 %v5250, %v344
        %v5371 = vadd.f32 %v5253, %v345
        %v5372 = vadd.f32 %v5258, %v346
        %v5373 = vadd.f32 %v5261, %v347
        %v5374 = vadd.f32 %v5266, %v348
        %v5375 = vadd.f32 %v5269, %v349
        %v5376 = vadd.f32 %v5274, %v350
        %v5377 = vadd.f32 %v5277, %v351
        %v5378 = vadd.f32 %v5282, %v352
        %v5379 = vadd.f32 %v5285, %v353
        %v5380 = vadd.f32 %v5290, %v354
        %v5381 = vadd.f32 %v5293, %v355
        %v5382 = vadd.f32 %v5298, %v356
        %v5383 = vadd.f32 %v5301, %v357
        %v5384 = vadd.f32 %v5306, %v358
        %v5385 = vadd.f32 %v5309, %v359
        %v5386 = vadd.f32 %v5314, %v360
        %v5387 = vadd.f32 %v5317, %v361
        %v5388 = vadd.f32 %v5322, %v362
        %v5389 = vadd.f32 %v5325, %v363
        %v5390 = vadd.f32 %v5330, %v364
        %v5391 = vadd.f32 %v5333, %v365
        %v5392 = vadd.f32 %v5338, %v366
        %v5393 = vadd.f32 %v5341, %v367
        %v5394 = vadd.f32 %v5346, %v368
        %v5395 = vadd.f32 %v5349, %v369
        %v5396 = vadd.f32 %v5354, %v370
        %v5397 = vadd.f32 %v5357, %v371
        %v5398 = vadd.f32 %v5362, %v372
        %v5399 = vadd.f32 %v5365, %v373
        %v5400 = vmax.f32 %v5368, 0.0
        %v5401 = vmax.f32 %v5369, 0.0
        %v5402 = vmax.f32 %v5370, 0.0
        %v5403 = vmax.f32 %v5371, 0.0
        %v5404 = vmax.f32 %v5372, 0.0
        %v5405 = vmax.f32 %v5373, 0.0
        %v5406 = vmax.f32 %v5374, 0.0
        %v5407 = vmax.f32 %v5375, 0.0
        %v5408 = vmax.f32 %v5376, 0.0
        %v5409 = vmax.f32 %v5377, 0.0
        %v5410 = vmax.f32 %v5378, 0.0
        %v5411 = vmax.f32 %v5379, 0.0
        %v5412 = vmax.f32 %v5380, 0.0
        %v5413 = vmax.f32 %v5381, 0.0
        %v5414 = vmax.f32 %v5382, 0.0
        %v5415 = vmax.f32 %v5383, 0.0
        %v5416 = vmax.f32 %v5384, 0.0
        %v5417 = vmax.f32 %v5385, 0.0
        %v5418 = vmax.f32 %v5386, 0.0
        %v5419 = vmax.f32 %v5387, 0.0
        %v5420 = vmax.f32 %v5388, 0.0
        %v5421 = vmax.f32 %v5389, 0.0
        %v5422 = vmax.f32 %v5390, 0.0
        %v5423 = vmax.f32 %v5391, 0.0
        %v5424 = vmax.f32 %v5392, 0.0
        %v5425 = vmax.f32 %v5393, 0.0
        %v5426 = vmax.f32 %v5394, 0.0
        %v5427 = vmax.f32 %v5395, 0.0
        %v5428 = vmax.f32 %v5396, 0.0
        %v5429 = vmax.f32 %v5397, 0.0
        %v5430 = vmax.f32 %v5398, 0.0
        %v5431 = vmax.f32 %v5399, 0.0
        %5432 = vst [vmem:[%s340] sm:$0xff] %v5400
        %5433 = vst [vmem:[%s340 + $0x8] sm:$0xff] %v5401
        %5434 = vst [vmem:[%s340 + $0x10] sm:$0xff] %v5402
        %5435 = vst [vmem:[%s340 + $0x18] sm:$0xff] %v5403
        %5436 = vst [vmem:[%s340 + $0x20] sm:$0xff] %v5404
        %5437 = vst [vmem:[%s340 + $0x28] sm:$0xff] %v5405
        %5438 = vst [vmem:[%s340 + $0x30] sm:$0xff] %v5406
        %5439 = vst [vmem:[%s340 + $0x38] sm:$0xff] %v5407
        %5440 = vst [vmem:[%s340 + $0x40] sm:$0xff] %v5408
        %5441 = vst [vmem:[%s340 + $0x48] sm:$0xff] %v5409
        %5442 = vst [vmem:[%s340 + $0x50] sm:$0xff] %v5410
        %5443 = vst [vmem:[%s340 + $0x58] sm:$0xff] %v5411
        %5444 = vst [vmem:[%s340 + $0x60] sm:$0xff] %v5412
        %5445 = vst [vmem:[%s340 + $0x68] sm:$0xff] %v5413
        %5446 = vst [vmem:[%s340 + $0x70] sm:$0xff] %v5414
        %5447 = vst [vmem:[%s340 + $0x78] sm:$0xff] %v5415
        %5448 = vst [vmem:[%s340 + $0x80] sm:$0xff] %v5416
        %5449 = vst [vmem:[%s340 + $0x88] sm:$0xff] %v5417
        %5450 = vst [vmem:[%s340 + $0x90] sm:$0xff] %v5418
        %5451 = vst [vmem:[%s340 + $0x98] sm:$0xff] %v5419
        %5452 = vst [vmem:[%s340 + $0xa0] sm:$0xff] %v5420
        %5453 = vst [vmem:[%s340 + $0xa8] sm:$0xff] %v5421
        %5454 = vst [vmem:[%s340 + $0xb0] sm:$0xff] %v5422
        %5455 = vst [vmem:[%s340 + $0xb8] sm:$0xff] %v5423
        %5456 = vst [vmem:[%s340 + $0xc0] sm:$0xff] %v5424
        %5457 = vst [vmem:[%s340 + $0xc8] sm:$0xff] %v5425
        %5458 = vst [vmem:[%s340 + $0xd0] sm:$0xff] %v5426
        %5459 = vst [vmem:[%s340 + $0xd8] sm:$0xff] %v5427
        %5460 = vst [vmem:[%s340 + $0xe0] sm:$0xff] %v5428
        %5461 = vst [vmem:[%s340 + $0xe8] sm:$0xff] %v5429
        %5462 = vst [vmem:[%s340 + $0xf0] sm:$0xff] %v5430
        %5463 = vst [vmem:[%s340 + $0xf8] sm:$0xff] %v5431
        %s5464 = sand.u32 %s186, 1
        %s5465 = scalar_lea.sflag [#allocation5], %s5464
        %s5466 = sand.u32 %s186, 1
        %s5467 = smul.addr %s5466, 256
        %s5468 = scalar_lea.vmem [#allocation11], %s5467
        // Predicated region
        $region65: #{tpu_custom_call.1} parent=47 // pred_check
          %p5469 = pneg %p196
        $region66: #{tpu_custom_call.1} parent=47 // pred_check_branch
          %5471 = sbr.rel (%p5469) target = $region68
        $region67: #{tpu_custom_call.1} parent=47 // pred_region
          %s5473 = ssub.s32 4096, 4096
          %5474 = vsyncadd %s5465, %s5473
          %s5475 = smul.addr %s26, 32
          %s5476 = smul.addr %s5475, 128
          %s5477 = scalar_lea.hbm %s7, %s5476
          %s5478 = sshll.u32 %s5468, 4
          %s5479 = int_to_ptr.vmem [resolvable:$true] %s5478
          %5484 = dma.vmem_to_hbm [thread:$0]  %s5479, 4096, %s5477, %s5465, 128, 128, 8
        $region68: #{tpu_custom_call.1} parent=47 // pred_fallthru
          _
      $region48: #{tpu_custom_call.1} parent=5 // pred_fallthru
        _
      %p5485 = scmp.le.s32.totalorder 2, %s21
      // Predicated region
      $region69: #{tpu_custom_call.1} parent=5 // pred_check
        %p5486 = pneg %p5485
      $region70: #{tpu_custom_call.1} parent=5 // pred_check_branch
        %5488 = sbr.rel (%p5486) target = $region72
      $region71: #{tpu_custom_call.1} parent=5 // pred_region
        %s5489 = ssub.s32 %s21, 2
        // Predicated region
        $region73: #{tpu_custom_call.1} parent=71 // pred_check
          %p5490 = pneg %p202
        $region74: #{tpu_custom_call.1} parent=71 // pred_check_branch
          %5492 = sbr.rel (%p5490) target = $region76
        $region75: #{tpu_custom_call.1} parent=71 // pred_region
          %s5493 = sand.u32 %s187, 1
          %s5494 = scalar_lea.sflag [#allocation5], %s5493
          %s5495 = sand.u32 %s187, 1
          %s5496 = smul.addr %s5495, 256
          %s5497 = scalar_lea.vmem [#allocation11], %s5496
          %5498 = dma.done %s5494, 4096
        $region76: #{tpu_custom_call.1} parent=71 // pred_fallthru
          _
      $region72: #{tpu_custom_call.1} parent=5 // pred_fallthru
        _
    $region6: #{tpu_custom_call.1} parent=1 // loop_footer
      %s25 = sadd.s32 1, %s21
    $region7: #{tpu_custom_call.1} parent=1 // loop_footer_branch
      %20 = sbr.rel target = $region3
    $region8: #{tpu_custom_call.1} parent=1 // loop_exit
      _
    %5499 = vsyncpa [#allocation4], 1
    %s5500 = scalar_lea.sflag [#allocation4], 1
    %5501 = vsyncpa %s5500, 1
    %5502 = vsyncpa [#allocation7], 1
    %5503 = vsyncpa [#allocation10], 1
    %5504 = vsyncpa [#allocation5], 1
    %s5505 = scalar_lea.sflag [#allocation5], 1
    %5506 = vsyncpa %s5505, 1

</llo_original>
